<compile_context>
chip_gen: v6e
topology: v6e:2x2x1
jax: 0.10.0
libtpu: 0.0.40
codegen_flags: <defaults>
</compile_context>

<pallas_src>
import functools

import jax
import jax.numpy as jnp
import numpy as np
from jax.experimental import pallas as pl
from jax.experimental.pallas import tpu as pltpu


# ---------------------------------------------------------------------------
# Fused Conv2d(k=4, s=2, p=1) + bias + ReLU + MaxPool2d(2, 2) kernel
# ---------------------------------------------------------------------------

def _conv_relu_pool_kernel(zo_ref, wp_ref, b_ref, o_ref, *, tp):
    """One grid step = one image x one tile of `tp` pooled output rows.

    zo_ref: [1, tp, K, PW]    K = Cin*36 patch rows (6x6 tap neighbourhood per pooled px)
    wp_ref: [4, Cout, K]      conv weights, zero-embedded per 2x2 pool-window parity
    b_ref:  [Cout, 1]         bias
    o_ref:  [1, tp, Cout, PW] pooled output tile (lane dim = pooled width)
    """
    w0 = wp_ref[0]                      # [Cout, K]
    w1 = wp_ref[1]
    w2 = wp_ref[2]
    w3 = wp_ref[3]
    bias = b_ref[...]                   # [Cout, 1]

    for ph in range(tp):                # static unroll, tp <= 8
        patch = zo_ref[0, ph]           # [K, PW] contiguous load
        acc = jnp.dot(w0, patch, preferred_element_type=jnp.float32)
        acc = jnp.maximum(acc, jnp.dot(w1, patch, preferred_element_type=jnp.float32))
        acc = jnp.maximum(acc, jnp.dot(w2, patch, preferred_element_type=jnp.float32))
        acc = jnp.maximum(acc, jnp.dot(w3, patch, preferred_element_type=jnp.float32))
        # max over the 2x2 window commutes with (+bias) and ReLU
        o_ref[0, ph] = jnp.maximum(acc + bias, 0.0).astype(o_ref.dtype)


def conv_relu_pool(x_nhcw, w_packed, b_col, *, tp_max=8):
    """x_nhcw: [N, H, Cin, W] f32 -> pooled [N, H//4, Cout, W//4] (PyTorch floor pooling)."""
    N, H, Cin, W = x_nhcw.shape
    _, Cout, K = w_packed.shape
    assert K == Cin * 36
    PH, PW = H // 4, W // 4             # == (H//2)//2, (W//2)//2 for k=4,s=2,p=1 + pool
    assert PH >= 1 and PW >= 1, "image too small for two conv+pool stages"

    tp = min(PH, tp_max)                # pooled rows per grid step
    n_tiles = pl.cdiv(PH, tp)
    PHt = n_tiles * tp                  # row-padded pooled height (cropped at the end)

    # Conv padding (=1) plus bottom zero-padding so every tile's taps are in range.
    pad_bottom = max(1, 4 * PHt + 1 - H)
    xp = jnp.pad(x_nhcw, ((0, 0), (1, pad_bottom), (0, 0), (1, 1)))

    # Patch rows: zo[n, i, c*36 + u*6 + v, j] = xpad[n, 4i+u, c, 4j+v]
    taps = [xp[:, u:u + 4 * PHt:4, :, v:v + 4 * PW:4]
            for u in range(6) for v in range(6)]           # 36 x [N, PHt, Cin, PW]
    zo = jnp.stack(taps, axis=3).reshape(N, PHt, Cin * 36, PW)

    kernel = functools.partial(_conv_relu_pool_kernel, tp=tp)
    out = pl.pallas_call(
        kernel,
        out_shape=jax.ShapeDtypeStruct((N, PHt, Cout, PW), jnp.float32),
        grid=(N, n_tiles),
        in_specs=[
            pl.BlockSpec((1, tp, K, PW), lambda n, t: (n, t, 0, 0)),
            pl.BlockSpec((4, Cout, K), lambda n, t: (0, 0, 0)),
            pl.BlockSpec((Cout, 1), lambda n, t: (0, 0)),
        ],
        out_specs=pl.BlockSpec((1, tp, Cout, PW), lambda n, t: (n, t, 0, 0)),
        compiler_params=pltpu.CompilerParams(
            dimension_semantics=("parallel", "parallel")),
    )(zo, w_packed, b_col)
    return out[:, :PH]                  # crop row padding (floor-pool semantics)


# ---------------------------------------------------------------------------
# Fused fcn1 + ReLU + fcn2 head (single VMEM-resident kernel)
# ---------------------------------------------------------------------------

def _mlp_kernel(x_ref, w1_ref, b1_ref, w2_ref, b2_ref, o_ref):
    h = jnp.dot(x_ref[...], w1_ref[...], preferred_element_type=jnp.float32)
    h = jnp.maximum(h + b1_ref[...], 0.0)
    y = jnp.dot(h, w2_ref[...], preferred_element_type=jnp.float32) + b2_ref[...]
    o_ref[...] = y.astype(o_ref.dtype)


_VMEM_SPEC = pl.BlockSpec(memory_space=pltpu.MemorySpace.VMEM)


def mlp_head(x, w1t, b1, w2t, b2):
    N = x.shape[0]
    return pl.pallas_call(
        _mlp_kernel,
        out_shape=jax.ShapeDtypeStruct((N, 1), jnp.float32),
        in_specs=[_VMEM_SPEC] * 5,
        out_specs=_VMEM_SPEC,
    )(x, w1t, b1, w2t, b2)


# ---------------------------------------------------------------------------
# Parameters (PyTorch layout) + one-time re-layout for the kernels
# ---------------------------------------------------------------------------

def init_raw_params(key, image_size=(3, 810, 510)):
    """PyTorch-layout parameters of BasicCnnRegression (uniform +-1/sqrt(fan_in))."""
    C, H, W = image_size
    F = H // 4 // 4 * (W // 4 // 4) * 12            # linear_line_size
    ks = jax.random.split(key, 8)

    def u(k, shape, fan_in):
        b = 1.0 / float(fan_in) ** 0.5
        return jax.random.uniform(k, shape, jnp.float32, -b, b)

    return {
        "conv1_w": u(ks[0], (6, C, 4, 4), C * 16),
        "conv1_b": u(ks[1], (6,), C * 16),
        "conv2_w": u(ks[2], (12, 6, 4, 4), 6 * 16),
        "conv2_b": u(ks[3], (12,), 6 * 16),
        "fcn1_w": u(ks[4], (120, F), F),
        "fcn1_b": u(ks[5], (120,), F),
        "fcn2_w": u(ks[6], (1, 120), 120),
        "fcn2_b": u(ks[7], (1,), 120),
    }


def _pack_conv_weight(w):
    """[Cout, Cin, 4, 4] -> [4, Cout, Cin*36].

    The 4x4 kernel is zero-embedded into the 6x6 tap neighbourhood of a pooled output,
    one copy per 2x2 pool-window position (row parity rp, col parity cp)."""
    cout, cin = w.shape[:2]
    w6 = jnp.zeros((2, 2, cout, cin, 6, 6), w.dtype)
    for rp in range(2):
        for cp in range(2):
            w6 = w6.at[rp, cp, :, :, 2 * rp:2 * rp + 4, 2 * cp:2 * cp + 4].set(w)
    return w6.reshape(4, cout, cin * 36)


def pack_params(raw):
    """One-time re-layout of the PyTorch-style parameters for the Pallas kernels."""
    return {
        "conv1_wp": _pack_conv_weight(raw["conv1_w"]),
        "conv1_b": raw["conv1_b"].reshape(-1, 1),
        "conv2_wp": _pack_conv_weight(raw["conv2_w"]),
        "conv2_b": raw["conv2_b"].reshape(-1, 1),
        "fcn1_wt": raw["fcn1_w"].T,                 # [F, 120]
        "fcn1_b": raw["fcn1_b"].reshape(1, -1),
        "fcn2_wt": raw["fcn2_w"].T,                 # [120, 1]
        "fcn2_b": raw["fcn2_b"].reshape(1, -1),
    }


def forward(params, x):
    """x: [N, C, H, W] float32 -> [N, 1] float32 (matches BasicCnnRegression.forward)."""
    N = x.shape[0]
    y = jnp.transpose(x, (0, 2, 1, 3))              # NCHW -> NHCW (kept between stages)
    y = conv_relu_pool(y, params["conv1_wp"], params["conv1_b"])
    y = conv_relu_pool(y, params["conv2_wp"], params["conv2_b"])
    y = jnp.transpose(y, (0, 2, 1, 3))              # NHCW -> NCHW (tiny tensor)
    y = y.reshape(N, -1)                            # Flatten in (C, H, W) order
    assert y.shape[1] == params["fcn1_wt"].shape[0]
    return mlp_head(y, params["fcn1_wt"], params["fcn1_b"],
                    params["fcn2_wt"], params["fcn2_b"])


# ---------------------------------------------------------------------------
# Pure-JAX reference (same math as the PyTorch module) for a sanity check
# ---------------------------------------------------------------------------

def reference_forward(raw, x):
    hi = jax.lax.Precision.HIGHEST

    def block(x, w, b):
        y = jax.lax.conv_general_dilated(
            x, w, window_strides=(2, 2), padding=((1, 1), (1, 1)),
            dimension_numbers=("NCHW", "OIHW", "NCHW"), precision=hi)
        y = jnp.maximum(y + b.reshape(1, -1, 1, 1), 0.0)
        return jax.lax.reduce_window(y, -jnp.inf, jax.lax.max,
                                     (1, 1, 2, 2), (1, 1, 2, 2), "VALID")

    y = block(x, raw["conv1_w"], raw["conv1_b"])
    y = block(y, raw["conv2_w"], raw["conv2_b"])
    y = y.reshape(x.shape[0], -1)
    y = jnp.maximum(jnp.dot(y, raw["fcn1_w"].T, precision=hi) + raw["fcn1_b"], 0.0)
    return jnp.dot(y, raw["fcn2_w"].T, precision=hi) + raw["fcn2_b"]


if __name__ == "__main__":
    # Small stand-in for the default (3, 810, 510); exercises multi-tile pooled rows,
    # odd intermediate sizes and floor pooling.
    image_size = (3, 40, 36)
    batch = 2

    key = jax.random.PRNGKey(0)
    pkey, xkey = jax.random.split(key)
    raw = init_raw_params(pkey, image_size)
    params = pack_params(raw)
    x = jax.random.normal(xkey, (batch,) + image_size, dtype=jnp.float32)

    out = jax.jit(forward)(params, x)
    jax.block_until_ready(out)
    assert out.shape == (batch, 1), out.shape

    ref = jax.jit(reference_forward)(raw, x)
    jax.block_until_ready(ref)
    np.testing.assert_allclose(np.asarray(out), np.asarray(ref), rtol=5e-2, atol=5e-3)

    print("KERNEL_OK")
</pallas_src>

<mosaic_0001>
module attributes {stable_mosaic.version = 11 : i64} {
  func.func @_conv_relu_pool_kernel(%arg0: i32, %arg1: i32, %arg2: memref<1x8x108x9xf32, #tpu.memory_space<vmem>>, %arg3: memref<4x6x108xf32, #tpu.memory_space<vmem>>, %arg4: memref<6x1xf32, #tpu.memory_space<vmem>>, %arg5: memref<1x8x6x9xf32, #tpu.memory_space<vmem>>) attributes {dimension_semantics = [#tpu.dimension_semantics<parallel>, #tpu.dimension_semantics<parallel>], iteration_bounds = array<i64: 2, 2>, scalar_prefetch = 0 : i64, scratch_operands = 0 : i64, tpu.core_type = #tpu.core_type<tc>, window_params = [{transform_indices = @transform_0, window_bounds = array<i64: 1, 8, 108, 9>}, {pipeline_mode = #tpu.pipeline_mode<synchronous>, transform_indices = @transform_1, window_bounds = array<i64: 4, 6, 108>}, {pipeline_mode = #tpu.pipeline_mode<synchronous>, transform_indices = @transform_2, window_bounds = array<i64: 6, 1>}, {transform_indices = @transform_3, window_bounds = array<i64: 1, 8, 6, 9>}]} {
    %c0 = arith.constant 0 : index
    %c0_0 = arith.constant 0 : index
    %c0_1 = arith.constant 0 : index
    %0 = vector.load %arg3[%c0, %c0_0, %c0_1] : memref<4x6x108xf32, #tpu.memory_space<vmem>>, vector<1x6x108xf32>
    %1 = vector.shape_cast %0 : vector<1x6x108xf32> to vector<6x108xf32>
    %c1 = arith.constant 1 : index
    %c0_2 = arith.constant 0 : index
    %c0_3 = arith.constant 0 : index
    %2 = vector.load %arg3[%c1, %c0_2, %c0_3] : memref<4x6x108xf32, #tpu.memory_space<vmem>>, vector<1x6x108xf32>
    %3 = vector.shape_cast %2 : vector<1x6x108xf32> to vector<6x108xf32>
    %c2 = arith.constant 2 : index
    %c0_4 = arith.constant 0 : index
    %c0_5 = arith.constant 0 : index
    %4 = vector.load %arg3[%c2, %c0_4, %c0_5] : memref<4x6x108xf32, #tpu.memory_space<vmem>>, vector<1x6x108xf32>
    %5 = vector.shape_cast %4 : vector<1x6x108xf32> to vector<6x108xf32>
    %c3 = arith.constant 3 : index
    %c0_6 = arith.constant 0 : index
    %c0_7 = arith.constant 0 : index
    %6 = vector.load %arg3[%c3, %c0_6, %c0_7] : memref<4x6x108xf32, #tpu.memory_space<vmem>>, vector<1x6x108xf32>
    %7 = vector.shape_cast %6 : vector<1x6x108xf32> to vector<6x108xf32>
    %c0_8 = arith.constant 0 : index
    %c0_9 = arith.constant 0 : index
    %8 = vector.load %arg4[%c0_8, %c0_9] : memref<6x1xf32, #tpu.memory_space<vmem>>, vector<6x1xf32>
    %c0_10 = arith.constant 0 : index
    %c0_11 = arith.constant 0 : index
    %c0_12 = arith.constant 0 : index
    %c0_13 = arith.constant 0 : index
    %9 = vector.load %arg2[%c0_10, %c0_11, %c0_12, %c0_13] : memref<1x8x108x9xf32, #tpu.memory_space<vmem>>, vector<1x1x108x9xf32>
    %10 = vector.shape_cast %9 : vector<1x1x108x9xf32> to vector<108x9xf32>
    %cst = arith.constant dense<0.000000e+00> : vector<6x9xf32>
    %11 = tpu.matmul %1, %10, %cst {dimension_numbers = #tpu.dot_dimension_numbers<[1], [0], [0], [1], [0, 0, 1, 1], [], []>} : vector<6x108xf32>, vector<108x9xf32>, vector<6x9xf32> -> vector<6x9xf32>
    %cst_14 = arith.constant dense<0.000000e+00> : vector<6x9xf32>
    %12 = tpu.matmul %3, %10, %cst_14 {dimension_numbers = #tpu.dot_dimension_numbers<[1], [0], [0], [1], [0, 0, 1, 1], [], []>} : vector<6x108xf32>, vector<108x9xf32>, vector<6x9xf32> -> vector<6x9xf32>
    %13 = arith.maximumf %11, %12 : vector<6x9xf32>
    %cst_15 = arith.constant dense<0.000000e+00> : vector<6x9xf32>
    %14 = tpu.matmul %5, %10, %cst_15 {dimension_numbers = #tpu.dot_dimension_numbers<[1], [0], [0], [1], [0, 0, 1, 1], [], []>} : vector<6x108xf32>, vector<108x9xf32>, vector<6x9xf32> -> vector<6x9xf32>
    %15 = arith.maximumf %13, %14 : vector<6x9xf32>
    %cst_16 = arith.constant dense<0.000000e+00> : vector<6x9xf32>
    %16 = tpu.matmul %7, %10, %cst_16 {dimension_numbers = #tpu.dot_dimension_numbers<[1], [0], [0], [1], [0, 0, 1, 1], [], []>} : vector<6x108xf32>, vector<108x9xf32>, vector<6x9xf32> -> vector<6x9xf32>
    %17 = arith.maximumf %15, %16 : vector<6x9xf32>
    %18 = vector.broadcast %8 : vector<6x1xf32> to vector<6x9xf32>
    %19 = arith.addf %17, %18 : vector<6x9xf32>
    %cst_17 = arith.constant 0.000000e+00 : f32
    %20 = vector.broadcast %cst_17 : f32 to vector<6x9xf32>
    %21 = arith.maximumf %19, %20 : vector<6x9xf32>
    %c0_18 = arith.constant 0 : index
    %c0_19 = arith.constant 0 : index
    %c0_20 = arith.constant 0 : index
    %c0_21 = arith.constant 0 : index
    %22 = vector.load %arg5[%c0_18, %c0_19, %c0_20, %c0_21] : memref<1x8x6x9xf32, #tpu.memory_space<vmem>>, vector<1x1x6x9xf32>
    %23 = vector.shape_cast %22 : vector<1x1x6x9xf32> to vector<6x9xf32>
    %24 = vector.shape_cast %21 : vector<6x9xf32> to vector<1x1x6x9xf32>
    tpu.vector_store %arg5[%c0_18, %c0_19, %c0_20, %c0_21], %24 {strides = array<i32>} : memref<1x8x6x9xf32, #tpu.memory_space<vmem>>, vector<1x1x6x9xf32>,
    %c0_22 = arith.constant 0 : index
    %c1_23 = arith.constant 1 : index
    %c0_24 = arith.constant 0 : index
    %c0_25 = arith.constant 0 : index
    %25 = vector.load %arg2[%c0_22, %c1_23, %c0_24, %c0_25] : memref<1x8x108x9xf32, #tpu.memory_space<vmem>>, vector<1x1x108x9xf32>
    %26 = vector.shape_cast %25 : vector<1x1x108x9xf32> to vector<108x9xf32>
    %cst_26 = arith.constant dense<0.000000e+00> : vector<6x9xf32>
    %27 = tpu.matmul %1, %26, %cst_26 {dimension_numbers = #tpu.dot_dimension_numbers<[1], [0], [0], [1], [0, 0, 1, 1], [], []>} : vector<6x108xf32>, vector<108x9xf32>, vector<6x9xf32> -> vector<6x9xf32>
    %cst_27 = arith.constant dense<0.000000e+00> : vector<6x9xf32>
    %28 = tpu.matmul %3, %26, %cst_27 {dimension_numbers = #tpu.dot_dimension_numbers<[1], [0], [0], [1], [0, 0, 1, 1], [], []>} : vector<6x108xf32>, vector<108x9xf32>, vector<6x9xf32> -> vector<6x9xf32>
    %29 = arith.maximumf %27, %28 : vector<6x9xf32>
    %cst_28 = arith.constant dense<0.000000e+00> : vector<6x9xf32>
    %30 = tpu.matmul %5, %26, %cst_28 {dimension_numbers = #tpu.dot_dimension_numbers<[1], [0], [0], [1], [0, 0, 1, 1], [], []>} : vector<6x108xf32>, vector<108x9xf32>, vector<6x9xf32> -> vector<6x9xf32>
    %31 = arith.maximumf %29, %30 : vector<6x9xf32>
    %cst_29 = arith.constant dense<0.000000e+00> : vector<6x9xf32>
    %32 = tpu.matmul %7, %26, %cst_29 {dimension_numbers = #tpu.dot_dimension_numbers<[1], [0], [0], [1], [0, 0, 1, 1], [], []>} : vector<6x108xf32>, vector<108x9xf32>, vector<6x9xf32> -> vector<6x9xf32>
    %33 = arith.maximumf %31, %32 : vector<6x9xf32>
    %34 = vector.broadcast %8 : vector<6x1xf32> to vector<6x9xf32>
    %35 = arith.addf %33, %34 : vector<6x9xf32>
    %cst_30 = arith.constant 0.000000e+00 : f32
    %36 = vector.broadcast %cst_30 : f32 to vector<6x9xf32>
    %37 = arith.maximumf %35, %36 : vector<6x9xf32>
    %c0_31 = arith.constant 0 : index
    %c1_32 = arith.constant 1 : index
    %c0_33 = arith.constant 0 : index
    %c0_34 = arith.constant 0 : index
    %38 = vector.load %arg5[%c0_31, %c1_32, %c0_33, %c0_34] : memref<1x8x6x9xf32, #tpu.memory_space<vmem>>, vector<1x1x6x9xf32>
    %39 = vector.shape_cast %38 : vector<1x1x6x9xf32> to vector<6x9xf32>
    %40 = vector.shape_cast %37 : vector<6x9xf32> to vector<1x1x6x9xf32>
    tpu.vector_store %arg5[%c0_31, %c1_32, %c0_33, %c0_34], %40 {strides = array<i32>} : memref<1x8x6x9xf32, #tpu.memory_space<vmem>>, vector<1x1x6x9xf32>,
    %c0_35 = arith.constant 0 : index
    %c2_36 = arith.constant 2 : index
    %c0_37 = arith.constant 0 : index
    %c0_38 = arith.constant 0 : index
    %41 = vector.load %arg2[%c0_35, %c2_36, %c0_37, %c0_38] : memref<1x8x108x9xf32, #tpu.memory_space<vmem>>, vector<1x1x108x9xf32>
    %42 = vector.shape_cast %41 : vector<1x1x108x9xf32> to vector<108x9xf32>
    %cst_39 = arith.constant dense<0.000000e+00> : vector<6x9xf32>
    %43 = tpu.matmul %1, %42, %cst_39 {dimension_numbers = #tpu.dot_dimension_numbers<[1], [0], [0], [1], [0, 0, 1, 1], [], []>} : vector<6x108xf32>, vector<108x9xf32>, vector<6x9xf32> -> vector<6x9xf32>
    %cst_40 = arith.constant dense<0.000000e+00> : vector<6x9xf32>
    %44 = tpu.matmul %3, %42, %cst_40 {dimension_numbers = #tpu.dot_dimension_numbers<[1], [0], [0], [1], [0, 0, 1, 1], [], []>} : vector<6x108xf32>, vector<108x9xf32>, vector<6x9xf32> -> vector<6x9xf32>
    %45 = arith.maximumf %43, %44 : vector<6x9xf32>
    %cst_41 = arith.constant dense<0.000000e+00> : vector<6x9xf32>
    %46 = tpu.matmul %5, %42, %cst_41 {dimension_numbers = #tpu.dot_dimension_numbers<[1], [0], [0], [1], [0, 0, 1, 1], [], []>} : vector<6x108xf32>, vector<108x9xf32>, vector<6x9xf32> -> vector<6x9xf32>
    %47 = arith.maximumf %45, %46 : vector<6x9xf32>
    %cst_42 = arith.constant dense<0.000000e+00> : vector<6x9xf32>
    %48 = tpu.matmul %7, %42, %cst_42 {dimension_numbers = #tpu.dot_dimension_numbers<[1], [0], [0], [1], [0, 0, 1, 1], [], []>} : vector<6x108xf32>, vector<108x9xf32>, vector<6x9xf32> -> vector<6x9xf32>
    %49 = arith.maximumf %47, %48 : vector<6x9xf32>
    %50 = vector.broadcast %8 : vector<6x1xf32> to vector<6x9xf32>
    %51 = arith.addf %49, %50 : vector<6x9xf32>
    %cst_43 = arith.constant 0.000000e+00 : f32
    %52 = vector.broadcast %cst_43 : f32 to vector<6x9xf32>
    %53 = arith.maximumf %51, %52 : vector<6x9xf32>
    %c0_44 = arith.constant 0 : index
    %c2_45 = arith.constant 2 : index
    %c0_46 = arith.constant 0 : index
    %c0_47 = arith.constant 0 : index
    %54 = vector.load %arg5[%c0_44, %c2_45, %c0_46, %c0_47] : memref<1x8x6x9xf32, #tpu.memory_space<vmem>>, vector<1x1x6x9xf32>
    %55 = vector.shape_cast %54 : vector<1x1x6x9xf32> to vector<6x9xf32>
    %56 = vector.shape_cast %53 : vector<6x9xf32> to vector<1x1x6x9xf32>
    tpu.vector_store %arg5[%c0_44, %c2_45, %c0_46, %c0_47], %56 {strides = array<i32>} : memref<1x8x6x9xf32, #tpu.memory_space<vmem>>, vector<1x1x6x9xf32>,
    %c0_48 = arith.constant 0 : index
    %c3_49 = arith.constant 3 : index
    %c0_50 = arith.constant 0 : index
    %c0_51 = arith.constant 0 : index
    %57 = vector.load %arg2[%c0_48, %c3_49, %c0_50, %c0_51] : memref<1x8x108x9xf32, #tpu.memory_space<vmem>>, vector<1x1x108x9xf32>
    %58 = vector.shape_cast %57 : vector<1x1x108x9xf32> to vector<108x9xf32>
    %cst_52 = arith.constant dense<0.000000e+00> : vector<6x9xf32>
    %59 = tpu.matmul %1, %58, %cst_52 {dimension_numbers = #tpu.dot_dimension_numbers<[1], [0], [0], [1], [0, 0, 1, 1], [], []>} : vector<6x108xf32>, vector<108x9xf32>, vector<6x9xf32> -> vector<6x9xf32>
    %cst_53 = arith.constant dense<0.000000e+00> : vector<6x9xf32>
    %60 = tpu.matmul %3, %58, %cst_53 {dimension_numbers = #tpu.dot_dimension_numbers<[1], [0], [0], [1], [0, 0, 1, 1], [], []>} : vector<6x108xf32>, vector<108x9xf32>, vector<6x9xf32> -> vector<6x9xf32>
    %61 = arith.maximumf %59, %60 : vector<6x9xf32>
    %cst_54 = arith.constant dense<0.000000e+00> : vector<6x9xf32>
    %62 = tpu.matmul %5, %58, %cst_54 {dimension_numbers = #tpu.dot_dimension_numbers<[1], [0], [0], [1], [0, 0, 1, 1], [], []>} : vector<6x108xf32>, vector<108x9xf32>, vector<6x9xf32> -> vector<6x9xf32>
    %63 = arith.maximumf %61, %62 : vector<6x9xf32>
    %cst_55 = arith.constant dense<0.000000e+00> : vector<6x9xf32>
    %64 = tpu.matmul %7, %58, %cst_55 {dimension_numbers = #tpu.dot_dimension_numbers<[1], [0], [0], [1], [0, 0, 1, 1], [], []>} : vector<6x108xf32>, vector<108x9xf32>, vector<6x9xf32> -> vector<6x9xf32>
    %65 = arith.maximumf %63, %64 : vector<6x9xf32>
    %66 = vector.broadcast %8 : vector<6x1xf32> to vector<6x9xf32>
    %67 = arith.addf %65, %66 : vector<6x9xf32>
    %cst_56 = arith.constant 0.000000e+00 : f32
    %68 = vector.broadcast %cst_56 : f32 to vector<6x9xf32>
    %69 = arith.maximumf %67, %68 : vector<6x9xf32>
    %c0_57 = arith.constant 0 : index
    %c3_58 = arith.constant 3 : index
    %c0_59 = arith.constant 0 : index
    %c0_60 = arith.constant 0 : index
    %70 = vector.load %arg5[%c0_57, %c3_58, %c0_59, %c0_60] : memref<1x8x6x9xf32, #tpu.memory_space<vmem>>, vector<1x1x6x9xf32>
    %71 = vector.shape_cast %70 : vector<1x1x6x9xf32> to vector<6x9xf32>
    %72 = vector.shape_cast %69 : vector<6x9xf32> to vector<1x1x6x9xf32>
    tpu.vector_store %arg5[%c0_57, %c3_58, %c0_59, %c0_60], %72 {strides = array<i32>} : memref<1x8x6x9xf32, #tpu.memory_space<vmem>>, vector<1x1x6x9xf32>,
    %c0_61 = arith.constant 0 : index
    %c4 = arith.constant 4 : index
    %c0_62 = arith.constant 0 : index
    %c0_63 = arith.constant 0 : index
    %73 = vector.load %arg2[%c0_61, %c4, %c0_62, %c0_63] : memref<1x8x108x9xf32, #tpu.memory_space<vmem>>, vector<1x1x108x9xf32>
    %74 = vector.shape_cast %73 : vector<1x1x108x9xf32> to vector<108x9xf32>
    %cst_64 = arith.constant dense<0.000000e+00> : vector<6x9xf32>
    %75 = tpu.matmul %1, %74, %cst_64 {dimension_numbers = #tpu.dot_dimension_numbers<[1], [0], [0], [1], [0, 0, 1, 1], [], []>} : vector<6x108xf32>, vector<108x9xf32>, vector<6x9xf32> -> vector<6x9xf32>
    %cst_65 = arith.constant dense<0.000000e+00> : vector<6x9xf32>
    %76 = tpu.matmul %3, %74, %cst_65 {dimension_numbers = #tpu.dot_dimension_numbers<[1], [0], [0], [1], [0, 0, 1, 1], [], []>} : vector<6x108xf32>, vector<108x9xf32>, vector<6x9xf32> -> vector<6x9xf32>
    %77 = arith.maximumf %75, %76 : vector<6x9xf32>
    %cst_66 = arith.constant dense<0.000000e+00> : vector<6x9xf32>
    %78 = tpu.matmul %5, %74, %cst_66 {dimension_numbers = #tpu.dot_dimension_numbers<[1], [0], [0], [1], [0, 0, 1, 1], [], []>} : vector<6x108xf32>, vector<108x9xf32>, vector<6x9xf32> -> vector<6x9xf32>
    %79 = arith.maximumf %77, %78 : vector<6x9xf32>
    %cst_67 = arith.constant dense<0.000000e+00> : vector<6x9xf32>
    %80 = tpu.matmul %7, %74, %cst_67 {dimension_numbers = #tpu.dot_dimension_numbers<[1], [0], [0], [1], [0, 0, 1, 1], [], []>} : vector<6x108xf32>, vector<108x9xf32>, vector<6x9xf32> -> vector<6x9xf32>
    %81 = arith.maximumf %79, %80 : vector<6x9xf32>
    %82 = vector.broadcast %8 : vector<6x1xf32> to vector<6x9xf32>
    %83 = arith.addf %81, %82 : vector<6x9xf32>
    %cst_68 = arith.constant 0.000000e+00 : f32
    %84 = vector.broadcast %cst_68 : f32 to vector<6x9xf32>
    %85 = arith.maximumf %83, %84 : vector<6x9xf32>
    %c0_69 = arith.constant 0 : index
    %c4_70 = arith.constant 4 : index
    %c0_71 = arith.constant 0 : index
    %c0_72 = arith.constant 0 : index
    %86 = vector.load %arg5[%c0_69, %c4_70, %c0_71, %c0_72] : memref<1x8x6x9xf32, #tpu.memory_space<vmem>>, vector<1x1x6x9xf32>
    %87 = vector.shape_cast %86 : vector<1x1x6x9xf32> to vector<6x9xf32>
    %88 = vector.shape_cast %85 : vector<6x9xf32> to vector<1x1x6x9xf32>
    tpu.vector_store %arg5[%c0_69, %c4_70, %c0_71, %c0_72], %88 {strides = array<i32>} : memref<1x8x6x9xf32, #tpu.memory_space<vmem>>, vector<1x1x6x9xf32>,
    %c0_73 = arith.constant 0 : index
    %c5 = arith.constant 5 : index
    %c0_74 = arith.constant 0 : index
    %c0_75 = arith.constant 0 : index
    %89 = vector.load %arg2[%c0_73, %c5, %c0_74, %c0_75] : memref<1x8x108x9xf32, #tpu.memory_space<vmem>>, vector<1x1x108x9xf32>
    %90 = vector.shape_cast %89 : vector<1x1x108x9xf32> to vector<108x9xf32>
    %cst_76 = arith.constant dense<0.000000e+00> : vector<6x9xf32>
    %91 = tpu.matmul %1, %90, %cst_76 {dimension_numbers = #tpu.dot_dimension_numbers<[1], [0], [0], [1], [0, 0, 1, 1], [], []>} : vector<6x108xf32>, vector<108x9xf32>, vector<6x9xf32> -> vector<6x9xf32>
    %cst_77 = arith.constant dense<0.000000e+00> : vector<6x9xf32>
    %92 = tpu.matmul %3, %90, %cst_77 {dimension_numbers = #tpu.dot_dimension_numbers<[1], [0], [0], [1], [0, 0, 1, 1], [], []>} : vector<6x108xf32>, vector<108x9xf32>, vector<6x9xf32> -> vector<6x9xf32>
    %93 = arith.maximumf %91, %92 : vector<6x9xf32>
    %cst_78 = arith.constant dense<0.000000e+00> : vector<6x9xf32>
    %94 = tpu.matmul %5, %90, %cst_78 {dimension_numbers = #tpu.dot_dimension_numbers<[1], [0], [0], [1], [0, 0, 1, 1], [], []>} : vector<6x108xf32>, vector<108x9xf32>, vector<6x9xf32> -> vector<6x9xf32>
    %95 = arith.maximumf %93, %94 : vector<6x9xf32>
    %cst_79 = arith.constant dense<0.000000e+00> : vector<6x9xf32>
    %96 = tpu.matmul %7, %90, %cst_79 {dimension_numbers = #tpu.dot_dimension_numbers<[1], [0], [0], [1], [0, 0, 1, 1], [], []>} : vector<6x108xf32>, vector<108x9xf32>, vector<6x9xf32> -> vector<6x9xf32>
    %97 = arith.maximumf %95, %96 : vector<6x9xf32>
    %98 = vector.broadcast %8 : vector<6x1xf32> to vector<6x9xf32>
    %99 = arith.addf %97, %98 : vector<6x9xf32>
    %cst_80 = arith.constant 0.000000e+00 : f32
    %100 = vector.broadcast %cst_80 : f32 to vector<6x9xf32>
    %101 = arith.maximumf %99, %100 : vector<6x9xf32>
    %c0_81 = arith.constant 0 : index
    %c5_82 = arith.constant 5 : index
    %c0_83 = arith.constant 0 : index
    %c0_84 = arith.constant 0 : index
    %102 = vector.load %arg5[%c0_81, %c5_82, %c0_83, %c0_84] : memref<1x8x6x9xf32, #tpu.memory_space<vmem>>, vector<1x1x6x9xf32>
    %103 = vector.shape_cast %102 : vector<1x1x6x9xf32> to vector<6x9xf32>
    %104 = vector.shape_cast %101 : vector<6x9xf32> to vector<1x1x6x9xf32>
    tpu.vector_store %arg5[%c0_81, %c5_82, %c0_83, %c0_84], %104 {strides = array<i32>} : memref<1x8x6x9xf32, #tpu.memory_space<vmem>>, vector<1x1x6x9xf32>,
    %c0_85 = arith.constant 0 : index
    %c6 = arith.constant 6 : index
    %c0_86 = arith.constant 0 : index
    %c0_87 = arith.constant 0 : index
    %105 = vector.load %arg2[%c0_85, %c6, %c0_86, %c0_87] : memref<1x8x108x9xf32, #tpu.memory_space<vmem>>, vector<1x1x108x9xf32>
    %106 = vector.shape_cast %105 : vector<1x1x108x9xf32> to vector<108x9xf32>
    %cst_88 = arith.constant dense<0.000000e+00> : vector<6x9xf32>
    %107 = tpu.matmul %1, %106, %cst_88 {dimension_numbers = #tpu.dot_dimension_numbers<[1], [0], [0], [1], [0, 0, 1, 1], [], []>} : vector<6x108xf32>, vector<108x9xf32>, vector<6x9xf32> -> vector<6x9xf32>
    %cst_89 = arith.constant dense<0.000000e+00> : vector<6x9xf32>
    %108 = tpu.matmul %3, %106, %cst_89 {dimension_numbers = #tpu.dot_dimension_numbers<[1], [0], [0], [1], [0, 0, 1, 1], [], []>} : vector<6x108xf32>, vector<108x9xf32>, vector<6x9xf32> -> vector<6x9xf32>
    %109 = arith.maximumf %107, %108 : vector<6x9xf32>
    %cst_90 = arith.constant dense<0.000000e+00> : vector<6x9xf32>
    %110 = tpu.matmul %5, %106, %cst_90 {dimension_numbers = #tpu.dot_dimension_numbers<[1], [0], [0], [1], [0, 0, 1, 1], [], []>} : vector<6x108xf32>, vector<108x9xf32>, vector<6x9xf32> -> vector<6x9xf32>
    %111 = arith.maximumf %109, %110 : vector<6x9xf32>
    %cst_91 = arith.constant dense<0.000000e+00> : vector<6x9xf32>
    %112 = tpu.matmul %7, %106, %cst_91 {dimension_numbers = #tpu.dot_dimension_numbers<[1], [0], [0], [1], [0, 0, 1, 1], [], []>} : vector<6x108xf32>, vector<108x9xf32>, vector<6x9xf32> -> vector<6x9xf32>
    %113 = arith.maximumf %111, %112 : vector<6x9xf32>
    %114 = vector.broadcast %8 : vector<6x1xf32> to vector<6x9xf32>
    %115 = arith.addf %113, %114 : vector<6x9xf32>
    %cst_92 = arith.constant 0.000000e+00 : f32
    %116 = vector.broadcast %cst_92 : f32 to vector<6x9xf32>
    %117 = arith.maximumf %115, %116 : vector<6x9xf32>
    %c0_93 = arith.constant 0 : index
    %c6_94 = arith.constant 6 : index
    %c0_95 = arith.constant 0 : index
    %c0_96 = arith.constant 0 : index
    %118 = vector.load %arg5[%c0_93, %c6_94, %c0_95, %c0_96] : memref<1x8x6x9xf32, #tpu.memory_space<vmem>>, vector<1x1x6x9xf32>
    %119 = vector.shape_cast %118 : vector<1x1x6x9xf32> to vector<6x9xf32>
    %120 = vector.shape_cast %117 : vector<6x9xf32> to vector<1x1x6x9xf32>
    tpu.vector_store %arg5[%c0_93, %c6_94, %c0_95, %c0_96], %120 {strides = array<i32>} : memref<1x8x6x9xf32, #tpu.memory_space<vmem>>, vector<1x1x6x9xf32>,
    %c0_97 = arith.constant 0 : index
    %c7 = arith.constant 7 : index
    %c0_98 = arith.constant 0 : index
    %c0_99 = arith.constant 0 : index
    %121 = vector.load %arg2[%c0_97, %c7, %c0_98, %c0_99] : memref<1x8x108x9xf32, #tpu.memory_space<vmem>>, vector<1x1x108x9xf32>
    %122 = vector.shape_cast %121 : vector<1x1x108x9xf32> to vector<108x9xf32>
    %cst_100 = arith.constant dense<0.000000e+00> : vector<6x9xf32>
    %123 = tpu.matmul %1, %122, %cst_100 {dimension_numbers = #tpu.dot_dimension_numbers<[1], [0], [0], [1], [0, 0, 1, 1], [], []>} : vector<6x108xf32>, vector<108x9xf32>, vector<6x9xf32> -> vector<6x9xf32>
    %cst_101 = arith.constant dense<0.000000e+00> : vector<6x9xf32>
    %124 = tpu.matmul %3, %122, %cst_101 {dimension_numbers = #tpu.dot_dimension_numbers<[1], [0], [0], [1], [0, 0, 1, 1], [], []>} : vector<6x108xf32>, vector<108x9xf32>, vector<6x9xf32> -> vector<6x9xf32>
    %125 = arith.maximumf %123, %124 : vector<6x9xf32>
    %cst_102 = arith.constant dense<0.000000e+00> : vector<6x9xf32>
    %126 = tpu.matmul %5, %122, %cst_102 {dimension_numbers = #tpu.dot_dimension_numbers<[1], [0], [0], [1], [0, 0, 1, 1], [], []>} : vector<6x108xf32>, vector<108x9xf32>, vector<6x9xf32> -> vector<6x9xf32>
    %127 = arith.maximumf %125, %126 : vector<6x9xf32>
    %cst_103 = arith.constant dense<0.000000e+00> : vector<6x9xf32>
    %128 = tpu.matmul %7, %122, %cst_103 {dimension_numbers = #tpu.dot_dimension_numbers<[1], [0], [0], [1], [0, 0, 1, 1], [], []>} : vector<6x108xf32>, vector<108x9xf32>, vector<6x9xf32> -> vector<6x9xf32>
    %129 = arith.maximumf %127, %128 : vector<6x9xf32>
    %130 = vector.broadcast %8 : vector<6x1xf32> to vector<6x9xf32>
    %131 = arith.addf %129, %130 : vector<6x9xf32>
    %cst_104 = arith.constant 0.000000e+00 : f32
    %132 = vector.broadcast %cst_104 : f32 to vector<6x9xf32>
    %133 = arith.maximumf %131, %132 : vector<6x9xf32>
    %c0_105 = arith.constant 0 : index
    %c7_106 = arith.constant 7 : index
    %c0_107 = arith.constant 0 : index
    %c0_108 = arith.constant 0 : index
    %134 = vector.load %arg5[%c0_105, %c7_106, %c0_107, %c0_108] : memref<1x8x6x9xf32, #tpu.memory_space<vmem>>, vector<1x1x6x9xf32>
    %135 = vector.shape_cast %134 : vector<1x1x6x9xf32> to vector<6x9xf32>
    %136 = vector.shape_cast %133 : vector<6x9xf32> to vector<1x1x6x9xf32>
    tpu.vector_store %arg5[%c0_105, %c7_106, %c0_107, %c0_108], %136 {strides = array<i32>} : memref<1x8x6x9xf32, #tpu.memory_space<vmem>>, vector<1x1x6x9xf32>,
    return
  }
  func.func @transform_0(%arg0: i32, %arg1: i32) -> (i32, i32, i32, i32) {
    %c0_i32 = arith.constant 0 : i32
    %c0_i32_0 = arith.constant 0 : i32
    %c0_i32_1 = arith.constant 0 : i32
    return %arg0, %arg1, %c0_i32, %c0_i32_0 : i32, i32, i32, i32
  }
  func.func @transform_1(%arg0: i32, %arg1: i32) -> (i32, i32, i32) {
    %c0_i32 = arith.constant 0 : i32
    %c0_i32_0 = arith.constant 0 : i32
    %c0_i32_1 = arith.constant 0 : i32
    %c0_i32_2 = arith.constant 0 : i32
    return %c0_i32, %c0_i32_0, %c0_i32_1 : i32, i32, i32
  }
  func.func @transform_2(%arg0: i32, %arg1: i32) -> (i32, i32) {
    %c0_i32 = arith.constant 0 : i32
    %c0_i32_0 = arith.constant 0 : i32
    %c0_i32_1 = arith.constant 0 : i32
    return %c0_i32, %c0_i32_0 : i32, i32
  }
  func.func @transform_3(%arg0: i32, %arg1: i32) -> (i32, i32, i32, i32) {
    %c0_i32 = arith.constant 0 : i32
    %c0_i32_0 = arith.constant 0 : i32
    %c0_i32_1 = arith.constant 0 : i32
    return %arg0, %arg1, %c0_i32, %c0_i32_0 : i32, i32, i32, i32
  }
}

module attributes {stable_mosaic.version = 11 : i64} {
  func.func @_conv_relu_pool_kernel(%arg0: i32, %arg1: i32, %arg2: memref<1x2x216x2xf32, #tpu.memory_space<vmem>>, %arg3: memref<4x12x216xf32, #tpu.memory_space<vmem>>, %arg4: memref<12x1xf32, #tpu.memory_space<vmem>>, %arg5: memref<1x2x12x2xf32, #tpu.memory_space<vmem>>) attributes {dimension_semantics = [#tpu.dimension_semantics<parallel>, #tpu.dimension_semantics<parallel>], iteration_bounds = array<i64: 2, 1>, scalar_prefetch = 0 : i64, scratch_operands = 0 : i64, tpu.core_type = #tpu.core_type<tc>, window_params = [{transform_indices = @transform_0, window_bounds = array<i64: 1, 2, 216, 2>}, {pipeline_mode = #tpu.pipeline_mode<synchronous>, transform_indices = @transform_1, window_bounds = array<i64: 4, 12, 216>}, {pipeline_mode = #tpu.pipeline_mode<synchronous>, transform_indices = @transform_2, window_bounds = array<i64: 12, 1>}, {transform_indices = @transform_3, window_bounds = array<i64: 1, 2, 12, 2>}]} {
    %c0 = arith.constant 0 : index
    %c0_0 = arith.constant 0 : index
    %c0_1 = arith.constant 0 : index
    %0 = vector.load %arg3[%c0, %c0_0, %c0_1] : memref<4x12x216xf32, #tpu.memory_space<vmem>>, vector<1x12x216xf32>
    %1 = vector.shape_cast %0 : vector<1x12x216xf32> to vector<12x216xf32>
    %c1 = arith.constant 1 : index
    %c0_2 = arith.constant 0 : index
    %c0_3 = arith.constant 0 : index
    %2 = vector.load %arg3[%c1, %c0_2, %c0_3] : memref<4x12x216xf32, #tpu.memory_space<vmem>>, vector<1x12x216xf32>
    %3 = vector.shape_cast %2 : vector<1x12x216xf32> to vector<12x216xf32>
    %c2 = arith.constant 2 : index
    %c0_4 = arith.constant 0 : index
    %c0_5 = arith.constant 0 : index
    %4 = vector.load %arg3[%c2, %c0_4, %c0_5] : memref<4x12x216xf32, #tpu.memory_space<vmem>>, vector<1x12x216xf32>
    %5 = vector.shape_cast %4 : vector<1x12x216xf32> to vector<12x216xf32>
    %c3 = arith.constant 3 : index
    %c0_6 = arith.constant 0 : index
    %c0_7 = arith.constant 0 : index
    %6 = vector.load %arg3[%c3, %c0_6, %c0_7] : memref<4x12x216xf32, #tpu.memory_space<vmem>>, vector<1x12x216xf32>
    %7 = vector.shape_cast %6 : vector<1x12x216xf32> to vector<12x216xf32>
    %c0_8 = arith.constant 0 : index
    %c0_9 = arith.constant 0 : index
    %8 = vector.load %arg4[%c0_8, %c0_9] : memref<12x1xf32, #tpu.memory_space<vmem>>, vector<12x1xf32>
    %c0_10 = arith.constant 0 : index
    %c0_11 = arith.constant 0 : index
    %c0_12 = arith.constant 0 : index
    %c0_13 = arith.constant 0 : index
    %9 = vector.load %arg2[%c0_10, %c0_11, %c0_12, %c0_13] : memref<1x2x216x2xf32, #tpu.memory_space<vmem>>, vector<1x1x216x2xf32>
    %10 = vector.shape_cast %9 : vector<1x1x216x2xf32> to vector<216x2xf32>
    %cst = arith.constant dense<0.000000e+00> : vector<12x2xf32>
    %11 = tpu.matmul %1, %10, %cst {dimension_numbers = #tpu.dot_dimension_numbers<[1], [0], [0], [1], [0, 0, 1, 1], [], []>} : vector<12x216xf32>, vector<216x2xf32>, vector<12x2xf32> -> vector<12x2xf32>
    %cst_14 = arith.constant dense<0.000000e+00> : vector<12x2xf32>
    %12 = tpu.matmul %3, %10, %cst_14 {dimension_numbers = #tpu.dot_dimension_numbers<[1], [0], [0], [1], [0, 0, 1, 1], [], []>} : vector<12x216xf32>, vector<216x2xf32>, vector<12x2xf32> -> vector<12x2xf32>
    %13 = arith.maximumf %11, %12 : vector<12x2xf32>
    %cst_15 = arith.constant dense<0.000000e+00> : vector<12x2xf32>
    %14 = tpu.matmul %5, %10, %cst_15 {dimension_numbers = #tpu.dot_dimension_numbers<[1], [0], [0], [1], [0, 0, 1, 1], [], []>} : vector<12x216xf32>, vector<216x2xf32>, vector<12x2xf32> -> vector<12x2xf32>
    %15 = arith.maximumf %13, %14 : vector<12x2xf32>
    %cst_16 = arith.constant dense<0.000000e+00> : vector<12x2xf32>
    %16 = tpu.matmul %7, %10, %cst_16 {dimension_numbers = #tpu.dot_dimension_numbers<[1], [0], [0], [1], [0, 0, 1, 1], [], []>} : vector<12x216xf32>, vector<216x2xf32>, vector<12x2xf32> -> vector<12x2xf32>
    %17 = arith.maximumf %15, %16 : vector<12x2xf32>
    %18 = vector.broadcast %8 : vector<12x1xf32> to vector<12x2xf32>
    %19 = arith.addf %17, %18 : vector<12x2xf32>
    %cst_17 = arith.constant 0.000000e+00 : f32
    %20 = vector.broadcast %cst_17 : f32 to vector<12x2xf32>
    %21 = arith.maximumf %19, %20 : vector<12x2xf32>
    %c0_18 = arith.constant 0 : index
    %c0_19 = arith.constant 0 : index
    %c0_20 = arith.constant 0 : index
    %c0_21 = arith.constant 0 : index
    %22 = vector.load %arg5[%c0_18, %c0_19, %c0_20, %c0_21] : memref<1x2x12x2xf32, #tpu.memory_space<vmem>>, vector<1x1x12x2xf32>
    %23 = vector.shape_cast %22 : vector<1x1x12x2xf32> to vector<12x2xf32>
    %24 = vector.shape_cast %21 : vector<12x2xf32> to vector<1x1x12x2xf32>
    tpu.vector_store %arg5[%c0_18, %c0_19, %c0_20, %c0_21], %24 {strides = array<i32>} : memref<1x2x12x2xf32, #tpu.memory_space<vmem>>, vector<1x1x12x2xf32>,
    %c0_22 = arith.constant 0 : index
    %c1_23 = arith.constant 1 : index
    %c0_24 = arith.constant 0 : index
    %c0_25 = arith.constant 0 : index
    %25 = vector.load %arg2[%c0_22, %c1_23, %c0_24, %c0_25] : memref<1x2x216x2xf32, #tpu.memory_space<vmem>>, vector<1x1x216x2xf32>
    %26 = vector.shape_cast %25 : vector<1x1x216x2xf32> to vector<216x2xf32>
    %cst_26 = arith.constant dense<0.000000e+00> : vector<12x2xf32>
    %27 = tpu.matmul %1, %26, %cst_26 {dimension_numbers = #tpu.dot_dimension_numbers<[1], [0], [0], [1], [0, 0, 1, 1], [], []>} : vector<12x216xf32>, vector<216x2xf32>, vector<12x2xf32> -> vector<12x2xf32>
    %cst_27 = arith.constant dense<0.000000e+00> : vector<12x2xf32>
    %28 = tpu.matmul %3, %26, %cst_27 {dimension_numbers = #tpu.dot_dimension_numbers<[1], [0], [0], [1], [0, 0, 1, 1], [], []>} : vector<12x216xf32>, vector<216x2xf32>, vector<12x2xf32> -> vector<12x2xf32>
    %29 = arith.maximumf %27, %28 : vector<12x2xf32>
    %cst_28 = arith.constant dense<0.000000e+00> : vector<12x2xf32>
    %30 = tpu.matmul %5, %26, %cst_28 {dimension_numbers = #tpu.dot_dimension_numbers<[1], [0], [0], [1], [0, 0, 1, 1], [], []>} : vector<12x216xf32>, vector<216x2xf32>, vector<12x2xf32> -> vector<12x2xf32>
    %31 = arith.maximumf %29, %30 : vector<12x2xf32>
    %cst_29 = arith.constant dense<0.000000e+00> : vector<12x2xf32>
    %32 = tpu.matmul %7, %26, %cst_29 {dimension_numbers = #tpu.dot_dimension_numbers<[1], [0], [0], [1], [0, 0, 1, 1], [], []>} : vector<12x216xf32>, vector<216x2xf32>, vector<12x2xf32> -> vector<12x2xf32>
    %33 = arith.maximumf %31, %32 : vector<12x2xf32>
    %34 = vector.broadcast %8 : vector<12x1xf32> to vector<12x2xf32>
    %35 = arith.addf %33, %34 : vector<12x2xf32>
    %cst_30 = arith.constant 0.000000e+00 : f32
    %36 = vector.broadcast %cst_30 : f32 to vector<12x2xf32>
    %37 = arith.maximumf %35, %36 : vector<12x2xf32>
    %c0_31 = arith.constant 0 : index
    %c1_32 = arith.constant 1 : index
    %c0_33 = arith.constant 0 : index
    %c0_34 = arith.constant 0 : index
    %38 = vector.load %arg5[%c0_31, %c1_32, %c0_33, %c0_34] : memref<1x2x12x2xf32, #tpu.memory_space<vmem>>, vector<1x1x12x2xf32>
    %39 = vector.shape_cast %38 : vector<1x1x12x2xf32> to vector<12x2xf32>
    %40 = vector.shape_cast %37 : vector<12x2xf32> to vector<1x1x12x2xf32>
    tpu.vector_store %arg5[%c0_31, %c1_32, %c0_33, %c0_34], %40 {strides = array<i32>} : memref<1x2x12x2xf32, #tpu.memory_space<vmem>>, vector<1x1x12x2xf32>,
    return
  }
  func.func @transform_0(%arg0: i32, %arg1: i32) -> (i32, i32, i32, i32) {
    %c0_i32 = arith.constant 0 : i32
    %c0_i32_0 = arith.constant 0 : i32
    %c0_i32_1 = arith.constant 0 : i32
    return %arg0, %arg1, %c0_i32, %c0_i32_0 : i32, i32, i32, i32
  }
  func.func @transform_1(%arg0: i32, %arg1: i32) -> (i32, i32, i32) {
    %c0_i32 = arith.constant 0 : i32
    %c0_i32_0 = arith.constant 0 : i32
    %c0_i32_1 = arith.constant 0 : i32
    %c0_i32_2 = arith.constant 0 : i32
    return %c0_i32, %c0_i32_0, %c0_i32_1 : i32, i32, i32
  }
  func.func @transform_2(%arg0: i32, %arg1: i32) -> (i32, i32) {
    %c0_i32 = arith.constant 0 : i32
    %c0_i32_0 = arith.constant 0 : i32
    %c0_i32_1 = arith.constant 0 : i32
    return %c0_i32, %c0_i32_0 : i32, i32
  }
  func.func @transform_3(%arg0: i32, %arg1: i32) -> (i32, i32, i32, i32) {
    %c0_i32 = arith.constant 0 : i32
    %c0_i32_0 = arith.constant 0 : i32
    %c0_i32_1 = arith.constant 0 : i32
    return %arg0, %arg1, %c0_i32, %c0_i32_0 : i32, i32, i32, i32
  }
}

module attributes {stable_mosaic.version = 11 : i64} {
  func.func @_mlp_kernel(%arg0: memref<2x48xf32, #tpu.memory_space<vmem>>, %arg1: memref<48x120xf32, #tpu.memory_space<vmem>>, %arg2: memref<1x120xf32, #tpu.memory_space<vmem>>, %arg3: memref<120x1xf32, #tpu.memory_space<vmem>>, %arg4: memref<1x1xf32, #tpu.memory_space<vmem>>, %arg5: memref<2x1xf32, #tpu.memory_space<vmem>>) attributes {dimension_semantics = [], scalar_prefetch = 0 : i64, scratch_operands = 0 : i64, tpu.core_type = #tpu.core_type<tc>} {
    %c0 = arith.constant 0 : index
    %c0_0 = arith.constant 0 : index
    %0 = vector.load %arg0[%c0, %c0_0] : memref<2x48xf32, #tpu.memory_space<vmem>>, vector<2x48xf32>
    %c0_1 = arith.constant 0 : index
    %c0_2 = arith.constant 0 : index
    %1 = vector.load %arg1[%c0_1, %c0_2] : memref<48x120xf32, #tpu.memory_space<vmem>>, vector<48x120xf32>
    %cst = arith.constant dense<0.000000e+00> : vector<2x120xf32>
    %2 = tpu.matmul %0, %1, %cst {dimension_numbers = #tpu.dot_dimension_numbers<[1], [0], [0], [1], [0, 0, 1, 1], [], []>} : vector<2x48xf32>, vector<48x120xf32>, vector<2x120xf32> -> vector<2x120xf32>
    %c0_3 = arith.constant 0 : index
    %c0_4 = arith.constant 0 : index
    %3 = vector.load %arg2[%c0_3, %c0_4] : memref<1x120xf32, #tpu.memory_space<vmem>>, vector<1x120xf32>
    %4 = vector.broadcast %3 : vector<1x120xf32> to vector<2x120xf32>
    %5 = arith.addf %2, %4 : vector<2x120xf32>
    %cst_5 = arith.constant 0.000000e+00 : f32
    %6 = vector.broadcast %cst_5 : f32 to vector<2x120xf32>
    %7 = arith.maximumf %5, %6 : vector<2x120xf32>
    %c0_6 = arith.constant 0 : index
    %c0_7 = arith.constant 0 : index
    %8 = vector.load %arg3[%c0_6, %c0_7] : memref<120x1xf32, #tpu.memory_space<vmem>>, vector<120x1xf32>
    %cst_8 = arith.constant dense<0.000000e+00> : vector<2x1xf32>
    %9 = tpu.matmul %7, %8, %cst_8 {dimension_numbers = #tpu.dot_dimension_numbers<[1], [0], [0], [1], [0, 0, 1, 1], [], []>} : vector<2x120xf32>, vector<120x1xf32>, vector<2x1xf32> -> vector<2x1xf32>
    %c0_9 = arith.constant 0 : index
    %c0_10 = arith.constant 0 : index
    %10 = vector.load %arg4[%c0_9, %c0_10] : memref<1x1xf32, #tpu.memory_space<vmem>>, vector<1x1xf32>
    %11 = vector.broadcast %10 : vector<1x1xf32> to vector<2x1xf32>
    %12 = arith.addf %9, %11 : vector<2x1xf32>
    %c0_11 = arith.constant 0 : index
    %c0_12 = arith.constant 0 : index
    %13 = vector.load %arg5[%c0_11, %c0_12] : memref<2x1xf32, #tpu.memory_space<vmem>>, vector<2x1xf32>
    tpu.vector_store %arg5[%c0_11, %c0_12], %12 {strides = array<i32>} : memref<2x1xf32, #tpu.memory_space<vmem>>, vector<2x1xf32>,
    return
  }
}

</mosaic_0001>

<llo_original>
// kernel: forward.3
$region0: #{forward.3}
  #allocation0 [shape = 'u32[]', space=smem, size = 0x4, offset = 0x4, fixed_abs, tag = 'smem constant byte address 0x4 - core index']
  #allocation1 [shape = 'u32[144,128]{1,0:T(1,128)}', space=vmem, size = 0x12000, scoped, tag = 'internal scratch']
  %s0 = inlined_call_operand.vmem [shape: f32[2,16,108,9], index: 0, kind: input, shape index: {}]
  %s1 = inlined_call_operand.vmem [shape: f32[4,6,108], index: 1, kind: input, shape index: {}]
  %s2 = inlined_call_operand.vmem [shape: f32[6,1], index: 2, kind: input, shape index: {}]
  %s3 = inlined_call_operand.vmem [shape: f32[2,16,6,9], index: 3, kind: output, shape index: {}]
  %s4 = sld [smem:[#allocation0]]
  $region45: #{forward.3} parent=0
    _
  %s6 = ssub.s32 1, %s4
  %s7 = scalar_select 0, %s6, %s4
  loop: start=0, step=1, limit=6
  $region2: #{forward.3} parent=0 // loop_pre_header
    _
  $region3: #{forward.3} parent=0 // loop_header
    %s9 = sphi 0, %s13
    %p10 = scmp.ge.s32.totalorder %s9, 6
    %s16 = sphi 0, %s28
    %s17 = sphi 0, %s24
    %s18 = sphi 0, %s16
    %s19 = sphi 0, %s17
    %s20 = sphi 0, %s18
    %s21 = sphi 0, %s19
    %s33 = sphi 0, %s35
    %s36 = sphi 0, %s33
    %s37 = sphi 0, %s36
    %s53 = sphi 0, %s37
    %s57 = sphi 0, %s57
    %s59 = sphi 0, %s57
    %s60 = sphi 0, %s59
    %s74 = sphi 0, %s60
    %s78 = sphi 0, %s78
    %s80 = sphi 0, %s78
    %s81 = sphi 0, %s80
    %s95 = sphi 0, %s81
    %s103 = sphi 0, %s105
    %s106 = sphi 0, %s103
    %s107 = sphi 0, %s106
    %s123 = sphi 0, %s107
  $region4: #{forward.3} parent=0 // loop_header_branch
    %12 = sbr.rel (%p10) target = $region8
  $region5: #{forward.3} parent=0 // loop_body
    %s14 = ssub.s32 %s9, 1
    %s15 = ssub.s32 %s9, 2
    %s22 = sadd.s32 1, %s17
    %p23 = scmp.ge.s32.totalorder %s22, 2
    %s24 = scalar_select %p23, 0, %s22
    %s25 = sadd.s32 1, %s16
    %s26 = scalar_select %p23, %s25, %s16
    %p27 = scmp.ge.s32.totalorder %s26, 2
    %s28 = scalar_select %p27, 0, %s26
    %s29 = ssub.s32 %s16, %s28
    %s30 = ssub.s32 %s17, %s24
    %s31 = sor.u32 %s29, %s30
    %p32 = scmp.eq.s32.totalorder %s31, 0
    %s34 = sadd.s32 %s33, 1
    %s35 = scalar_select %p32, %s33, %s34
    %p38 = pneg %p32
    %p39 = scmp.eq.s32.totalorder %s9, 3
    %p40 = por %p38, %p39
    %p41 = scmp.ne.s32.totalorder %s33, %s36
    %p42 = scmp.eq.s32.totalorder %s9, 0
    %p43 = por %p41, %p42
    %p44 = scmp.ne.s32.totalorder %s33, %s36
    %p45 = scmp.eq.s32.totalorder %s14, 3
    %p46 = por %p44, %p45
    %p47 = scmp.ne.s32.totalorder %s36, %s37
    %p48 = scmp.eq.s32.totalorder %s14, 0
    %p49 = por %p47, %p48
    %p50 = scmp.ne.s32.totalorder %s36, %s37
    %p51 = scmp.eq.s32.totalorder %s15, 3
    %p52 = por %p50, %p51
    %p54 = scmp.ne.s32.totalorder %s37, %s53
    %p55 = scmp.eq.s32.totalorder %s15, 0
    %p56 = por %p54, %p55
    %s58 = sadd.s32 %s57, 1
    %p61 = scmp.eq.s32.totalorder %s9, 3
    %p62 = scmp.ne.s32.totalorder %s57, %s59
    %p63 = scmp.eq.s32.totalorder %s9, 0
    %p64 = por %p62, %p63
    %p65 = scmp.ne.s32.totalorder %s57, %s59
    %p66 = scmp.eq.s32.totalorder %s14, 3
    %p67 = por %p65, %p66
    %p68 = scmp.ne.s32.totalorder %s59, %s60
    %p69 = scmp.eq.s32.totalorder %s14, 0
    %p70 = por %p68, %p69
    %p71 = scmp.ne.s32.totalorder %s59, %s60
    %p72 = scmp.eq.s32.totalorder %s15, 3
    %p73 = por %p71, %p72
    %p75 = scmp.ne.s32.totalorder %s60, %s74
    %p76 = scmp.eq.s32.totalorder %s15, 0
    %p77 = por %p75, %p76
    %s79 = sadd.s32 %s78, 1
    %p82 = scmp.eq.s32.totalorder %s9, 3
    %p83 = scmp.ne.s32.totalorder %s78, %s80
    %p84 = scmp.eq.s32.totalorder %s9, 0
    %p85 = por %p83, %p84
    %p86 = scmp.ne.s32.totalorder %s78, %s80
    %p87 = scmp.eq.s32.totalorder %s14, 3
    %p88 = por %p86, %p87
    %p89 = scmp.ne.s32.totalorder %s80, %s81
    %p90 = scmp.eq.s32.totalorder %s14, 0
    %p91 = por %p89, %p90
    %p92 = scmp.ne.s32.totalorder %s80, %s81
    %p93 = scmp.eq.s32.totalorder %s15, 3
    %p94 = por %p92, %p93
    %p96 = scmp.ne.s32.totalorder %s81, %s95
    %p97 = scmp.eq.s32.totalorder %s15, 0
    %p98 = por %p96, %p97
    %s99 = ssub.s32 %s16, %s28
    %s100 = ssub.s32 %s17, %s24
    %s101 = sor.u32 %s99, %s100
    %p102 = scmp.eq.s32.totalorder %s101, 0
    %s104 = sadd.s32 %s103, 1
    %s105 = scalar_select %p102, %s103, %s104
    %p108 = pneg %p102
    %p109 = scmp.eq.s32.totalorder %s9, 3
    %p110 = por %p108, %p109
    %p111 = scmp.ne.s32.totalorder %s103, %s106
    %p112 = scmp.eq.s32.totalorder %s9, 0
    %p113 = por %p111, %p112
    %p114 = scmp.ne.s32.totalorder %s103, %s106
    %p115 = scmp.eq.s32.totalorder %s14, 3
    %p116 = por %p114, %p115
    %p117 = scmp.ne.s32.totalorder %s106, %s107
    %p118 = scmp.eq.s32.totalorder %s14, 0
    %p119 = por %p117, %p118
    %p120 = scmp.ne.s32.totalorder %s106, %s107
    %p121 = scmp.eq.s32.totalorder %s15, 3
    %p122 = por %p120, %p121
    %p124 = scmp.ne.s32.totalorder %s107, %s123
    %p125 = scmp.eq.s32.totalorder %s15, 0
    %p126 = por %p124, %p125
    %p127 = scmp.le.s32.totalorder 1, %s9
    %p128 = scmp.lt.s32.totalorder %s9, 5
    %p129 = pnand %p127, %p128
    %p130 = pneg %p129
    // Predicated region
    $region9: #{forward.3} parent=5 // pred_check
      _
    $region10: #{forward.3} parent=5 // pred_check_branch
      %132 = sbr.rel (%p129) target = $region12
    $region11: #{forward.3} parent=5 // pred_region
      %s133 = ssub.s32 %s9, 1
      // Predicated region
      $region13: #{forward.3} parent=11 // pred_check
        %p134 = pneg %p70
      $region14: #{forward.3} parent=11 // pred_check_branch
        %136 = sbr.rel (%p134) target = $region16
      $region15: #{forward.3} parent=11 // pred_region
        _
      $region16: #{forward.3} parent=11 // pred_fallthru
        _
      // Predicated region
      $region17: #{forward.3} parent=11 // pred_check
        %p137 = pneg %p91
      $region18: #{forward.3} parent=11 // pred_check_branch
        %139 = sbr.rel (%p137) target = $region20
      $region19: #{forward.3} parent=11 // pred_region
        _
      $region20: #{forward.3} parent=11 // pred_fallthru
        _
    $region12: #{forward.3} parent=5 // pred_fallthru
      _
    %p140 = scmp.lt.s32.totalorder %s9, 4
    // Predicated region
    $region21: #{forward.3} parent=5 // pred_check
      %p141 = pneg %p140
    $region22: #{forward.3} parent=5 // pred_check_branch
      %143 = sbr.rel (%p141) target = $region24
    $region23: #{forward.3} parent=5 // pred_region
      // Predicated region
      $region25: #{forward.3} parent=23 // pred_check
        %p144 = pneg %p43
      $region26: #{forward.3} parent=23 // pred_check_branch
        %146 = sbr.rel (%p144) target = $region28
      $region27: #{forward.3} parent=23 // pred_region
        %s147 = smul.u32 8, %s17
        %p148 = scmp.lt.s32.totalorder %s16, 1
        %s149 = scalar_select %p148, %s16, 1
        %p150 = scmp.lt.s32.totalorder %s147, 15
        %s151 = scalar_select %p150, %s147, 15
        %s152 = smul.addr %s151, 14
        %s153 = smul.addr %s149, 224
        %s154 = sadd.s32 %s152, %s153
        %s155 = smul.addr %s154, 8
        %s156 = scalar_lea.vmem %s0, %s155
        %s157 = smul.u32 8, %s17
      $region28: #{forward.3} parent=23 // pred_fallthru
        _
    $region24: #{forward.3} parent=5 // pred_fallthru
      _
    %p158 = scmp.le.s32.totalorder 1, %s9
    %p159 = scmp.lt.s32.totalorder %s9, 5
    %p160 = pnand %p158, %p159
    %p161 = pneg %p160
    // Predicated region
    $region29: #{forward.3} parent=5 // pred_check
      _
    $region30: #{forward.3} parent=5 // pred_check_branch
      %163 = sbr.rel (%p160) target = $region32
    $region31: #{forward.3} parent=5 // pred_region
      %s164 = ssub.s32 %s9, 1
      %s165 = smul.u32 8, %s19
      %p166 = scmp.lt.s32.totalorder %s18, 1
      %s167 = scalar_select %p166, %s18, 1
      %p168 = scmp.lt.s32.totalorder %s165, 15
      %s169 = scalar_select %p168, %s165, 15
      %s170 = smul.addr %s169, 14
      %s171 = smul.addr %s167, 224
      %s172 = sadd.s32 %s170, %s171
      %s173 = smul.addr %s172, 8
      %s174 = scalar_lea.vmem %s0, %s173
      %p175 = pneg %p49
      %p176 = pneg %p46
      %p177 = pneg %p70
      %p178 = pneg %p67
      %p179 = pneg %p91
      %p180 = pneg %p88
      %p181 = pneg %p119
      %p182 = pneg %p116
      %s183 = smul.u32 8, %s19
      %p184 = scmp.lt.s32.totalorder %s18, 1
      %s185 = scalar_select %p184, %s18, 1
      %p186 = scmp.lt.s32.totalorder %s183, 15
      %s187 = scalar_select %p186, %s183, 15
      %s188 = smul.addr %s185, 16
      %s189 = sadd.s32 %s187, %s188
      %s190 = smul.addr %s189, 8
      %s191 = scalar_lea.vmem %s3, %s190
      %s192 = smul.u32 8, %s19
      %p193 = scmp.lt.s32.totalorder %s18, 1
      %s194 = scalar_select %p193, %s18, 1
      %p195 = scmp.lt.s32.totalorder %s192, 15
      %s196 = scalar_select %p195, %s192, 15
      %s197 = smul.addr %s196, 14
      %s198 = smul.addr %s194, 224
      %s199 = sadd.s32 %s197, %s198
      %s200 = smul.addr %s199, 8
      %s201 = scalar_lea.vmem %s0, %s200
      %s202 = smul.u32 8, %s19
      %s203 = smul.u32 8, %s19
      %p204 = scmp.lt.s32.totalorder %s18, 1
      %s205 = scalar_select %p204, %s18, 1
      %p206 = scmp.lt.s32.totalorder %s203, 15
      %s207 = scalar_select %p206, %s203, 15
      %s208 = smul.addr %s205, 16
      %s209 = sadd.s32 %s207, %s208
      %s210 = smul.addr %s209, 8
      %s211 = scalar_lea.vmem %s3, %s210
      %s212 = smul.u32 8, %s19
      %v213 = vld [vmem:[%s1] sm:$0x3f]
      %s214 = scalar_lea.vmem %s1, 8
      %v215 = vld [vmem:[%s214] sm:$0x3f]
      %s216 = scalar_lea.vmem %s1, 16
      %v217 = vld [vmem:[%s216] sm:$0x3f]
      %s218 = scalar_lea.vmem %s1, 24
      %v219 = vld [vmem:[%s218] sm:$0x3f]
      %v220 = vld [vmem:[%s2] sm:$0x3f]
      %v221 = vld [vmem:[%s201] sm:$0xff]
      %v222 = vld [vmem:[%s201 + $0x8] sm:$0xff]
      %v223 = vld [vmem:[%s201 + $0x10] sm:$0xff]
      %v224 = vld [vmem:[%s201 + $0x18] sm:$0xff]
      %v225 = vld [vmem:[%s201 + $0x20] sm:$0xff]
      %v226 = vld [vmem:[%s201 + $0x28] sm:$0xff]
      %v227 = vld [vmem:[%s201 + $0x30] sm:$0xff]
      %v228 = vld [vmem:[%s201 + $0x38] sm:$0xff]
      %v229 = vld [vmem:[%s201 + $0x40] sm:$0xff]
      %v230 = vld [vmem:[%s201 + $0x48] sm:$0xff]
      %v231 = vld [vmem:[%s201 + $0x50] sm:$0xff]
      %v232 = vld [vmem:[%s201 + $0x58] sm:$0xff]
      %v233 = vld [vmem:[%s201 + $0x60] sm:$0xff]
      %v234 = vld [vmem:[%s201 + $0x68] sm:$0xf]
      %vm235 = vcmask 883712
      %v237 = vsel %vm235, %v213, 0
      %vm239 = vcmask 1043456
      %v241 = vsel %vm239, %v234, 0
      %243 = vmatprep.subr.mxu0 0.0
      %244 = vmatpush1.msra.mxu0 0.0
      %245 = vmatprep.subr.mxu0 0.0
      %246 = vmatpush1.msra.mxu0 0.0
      %247 = vmatprep.subr.mxu0 0.0
      %248 = vmatpush1.msra.mxu0 %v241
      %249 = vmatprep.subr.mxu0 0.0
      %250 = vmatpush1.msra.mxu0 %v233
      %251 = vmatprep.subr.mxu0 0.0
      %252 = vmatpush1.msra.mxu0 %v232
      %253 = vmatprep.subr.mxu0 0.0
      %254 = vmatpush1.msra.mxu0 %v231
      %255 = vmatprep.subr.mxu0 0.0
      %256 = vmatpush1.msra.mxu0 %v230
      %257 = vmatprep.subr.mxu0 0.0
      %258 = vmatpush1.msra.mxu0 %v229
      %259 = vmatprep.subr.mxu0 0.0
      %260 = vmatpush1.msra.mxu0 %v228
      %261 = vmatprep.subr.mxu0 0.0
      %262 = vmatpush1.msra.mxu0 %v227
      %263 = vmatprep.subr.mxu0 0.0
      %264 = vmatpush1.msra.mxu0 %v226
      %265 = vmatprep.subr.mxu0 0.0
      %266 = vmatpush1.msra.mxu0 %v225
      %267 = vmatprep.subr.mxu0 0.0
      %268 = vmatpush1.msra.mxu0 %v224
      %269 = vmatprep.subr.mxu0 0.0
      %270 = vmatpush1.msra.mxu0 %v223
      %271 = vmatprep.subr.mxu0 0.0
      %272 = vmatpush1.msra.mxu0 %v222
      %273 = vmatprep.subr.mxu0 0.0
      %274 = vmatpush1.msra.mxu0 %v221
      %275 = vmatprep.subr.mxu0 0.0
      %276 = vmatpush2.msra.mxu0 0.0
      %277 = vmatprep.subr.mxu0 0.0
      %278 = vmatpush2.msra.mxu0 0.0
      %279 = vmatprep.subr.mxu0 0.0
      %280 = vmatpush2.msra.mxu0 0.0
      %281 = vmatprep.subr.mxu0 0.0
      %282 = vmatpush2.msra.mxu0 0.0
      %283 = vmatprep.subr.mxu0 0.0
      %284 = vmatpush2.msra.mxu0 0.0
      %285 = vmatprep.subr.mxu0 0.0
      %286 = vmatpush2.msra.mxu0 0.0
      %287 = vmatprep.subr.mxu0 0.0
      %288 = vmatpush2.msra.mxu0 0.0
      %289 = vmatprep.subr.mxu0 0.0
      %290 = vmatpush2.msra.mxu0 0.0
      %291 = vmatprep.subr.mxu0 0.0
      %292 = vmatpush2.msra.mxu0 0.0
      %293 = vmatprep.subr.mxu0 0.0
      %294 = vmatpush2.msra.mxu0 0.0
      %295 = vmatprep.subr.mxu0 0.0
      %296 = vmatpush2.msra.mxu0 0.0
      %297 = vmatprep.subr.mxu0 0.0
      %298 = vmatpush2.msra.mxu0 0.0
      %299 = vmatprep.subr.mxu0 0.0
      %300 = vmatpush2.msra.mxu0 0.0
      %301 = vmatprep.subr.mxu0 0.0
      %302 = vmatpush2.msra.mxu0 0.0
      %303 = vmatprep.subr.mxu0 0.0
      %304 = vmatpush2.msra.mxu0 0.0
      %305 = vmatprep.subr.mxu0 0.0
      %306 = vmatpush2.msra.mxu0 0.0
      %307 = vmatprep.mubr.f32.mxu0 0.0
      %308 = vmatmul.mubr.f32.gmra.mxu0 %v237
      %v309 = vpop.f32.mrf.mxu0
      %v310 = vadd.f32 0.0, %v309
      %v311 = vpop.f32.mrf.mxu0
      %312 = vdwg.mxu0
      %v314 = vsel %vm235, %v215, 0
      %316 = vmatprep.subr.mxu0 0.0
      %317 = vmatpush1.msra.mxu0 0.0
      %318 = vmatprep.subr.mxu0 0.0
      %319 = vmatpush1.msra.mxu0 0.0
      %320 = vmatprep.subr.mxu0 0.0
      %321 = vmatpush1.msra.mxu0 %v241
      %322 = vmatprep.subr.mxu0 0.0
      %323 = vmatpush1.msra.mxu0 %v233
      %324 = vmatprep.subr.mxu0 0.0
      %325 = vmatpush1.msra.mxu0 %v232
      %326 = vmatprep.subr.mxu0 0.0
      %327 = vmatpush1.msra.mxu0 %v231
      %328 = vmatprep.subr.mxu0 0.0
      %329 = vmatpush1.msra.mxu0 %v230
      %330 = vmatprep.subr.mxu0 0.0
      %331 = vmatpush1.msra.mxu0 %v229
      %332 = vmatprep.subr.mxu0 0.0
      %333 = vmatpush1.msra.mxu0 %v228
      %334 = vmatprep.subr.mxu0 0.0
      %335 = vmatpush1.msra.mxu0 %v227
      %336 = vmatprep.subr.mxu0 0.0
      %337 = vmatpush1.msra.mxu0 %v226
      %338 = vmatprep.subr.mxu0 0.0
      %339 = vmatpush1.msra.mxu0 %v225
      %340 = vmatprep.subr.mxu0 0.0
      %341 = vmatpush1.msra.mxu0 %v224
      %342 = vmatprep.subr.mxu0 0.0
      %343 = vmatpush1.msra.mxu0 %v223
      %344 = vmatprep.subr.mxu0 0.0
      %345 = vmatpush1.msra.mxu0 %v222
      %346 = vmatprep.subr.mxu0 0.0
      %347 = vmatpush1.msra.mxu0 %v221
      %348 = vmatprep.subr.mxu0 0.0
      %349 = vmatpush2.msra.mxu0 0.0
      %350 = vmatprep.subr.mxu0 0.0
      %351 = vmatpush2.msra.mxu0 0.0
      %352 = vmatprep.subr.mxu0 0.0
      %353 = vmatpush2.msra.mxu0 0.0
      %354 = vmatprep.subr.mxu0 0.0
      %355 = vmatpush2.msra.mxu0 0.0
      %356 = vmatprep.subr.mxu0 0.0
      %357 = vmatpush2.msra.mxu0 0.0
      %358 = vmatprep.subr.mxu0 0.0
      %359 = vmatpush2.msra.mxu0 0.0
      %360 = vmatprep.subr.mxu0 0.0
      %361 = vmatpush2.msra.mxu0 0.0
      %362 = vmatprep.subr.mxu0 0.0
      %363 = vmatpush2.msra.mxu0 0.0
      %364 = vmatprep.subr.mxu0 0.0
      %365 = vmatpush2.msra.mxu0 0.0
      %366 = vmatprep.subr.mxu0 0.0
      %367 = vmatpush2.msra.mxu0 0.0
      %368 = vmatprep.subr.mxu0 0.0
      %369 = vmatpush2.msra.mxu0 0.0
      %370 = vmatprep.subr.mxu0 0.0
      %371 = vmatpush2.msra.mxu0 0.0
      %372 = vmatprep.subr.mxu0 0.0
      %373 = vmatpush2.msra.mxu0 0.0
      %374 = vmatprep.subr.mxu0 0.0
      %375 = vmatpush2.msra.mxu0 0.0
      %376 = vmatprep.subr.mxu0 0.0
      %377 = vmatpush2.msra.mxu0 0.0
      %378 = vmatprep.subr.mxu0 0.0
      %379 = vmatpush2.msra.mxu0 0.0
      %380 = vmatprep.mubr.f32.mxu0 0.0
      %381 = vmatmul.mubr.f32.gmra.mxu0 %v314
      %v382 = vpop.f32.mrf.mxu0
      %v383 = vadd.f32 0.0, %v382
      %v384 = vpop.f32.mrf.mxu0
      %385 = vdwg.mxu0
      %v386 = vmax.f32 %v310, %v383
      %v388 = vsel %vm235, %v217, 0
      %390 = vmatprep.subr.mxu0 0.0
      %391 = vmatpush1.msra.mxu0 0.0
      %392 = vmatprep.subr.mxu0 0.0
      %393 = vmatpush1.msra.mxu0 0.0
      %394 = vmatprep.subr.mxu0 0.0
      %395 = vmatpush1.msra.mxu0 %v241
      %396 = vmatprep.subr.mxu0 0.0
      %397 = vmatpush1.msra.mxu0 %v233
      %398 = vmatprep.subr.mxu0 0.0
      %399 = vmatpush1.msra.mxu0 %v232
      %400 = vmatprep.subr.mxu0 0.0
      %401 = vmatpush1.msra.mxu0 %v231
      %402 = vmatprep.subr.mxu0 0.0
      %403 = vmatpush1.msra.mxu0 %v230
      %404 = vmatprep.subr.mxu0 0.0
      %405 = vmatpush1.msra.mxu0 %v229
      %406 = vmatprep.subr.mxu0 0.0
      %407 = vmatpush1.msra.mxu0 %v228
      %408 = vmatprep.subr.mxu0 0.0
      %409 = vmatpush1.msra.mxu0 %v227
      %410 = vmatprep.subr.mxu0 0.0
      %411 = vmatpush1.msra.mxu0 %v226
      %412 = vmatprep.subr.mxu0 0.0
      %413 = vmatpush1.msra.mxu0 %v225
      %414 = vmatprep.subr.mxu0 0.0
      %415 = vmatpush1.msra.mxu0 %v224
      %416 = vmatprep.subr.mxu0 0.0
      %417 = vmatpush1.msra.mxu0 %v223
      %418 = vmatprep.subr.mxu0 0.0
      %419 = vmatpush1.msra.mxu0 %v222
      %420 = vmatprep.subr.mxu0 0.0
      %421 = vmatpush1.msra.mxu0 %v221
      %422 = vmatprep.subr.mxu0 0.0
      %423 = vmatpush2.msra.mxu0 0.0
      %424 = vmatprep.subr.mxu0 0.0
      %425 = vmatpush2.msra.mxu0 0.0
      %426 = vmatprep.subr.mxu0 0.0
      %427 = vmatpush2.msra.mxu0 0.0
      %428 = vmatprep.subr.mxu0 0.0
      %429 = vmatpush2.msra.mxu0 0.0
      %430 = vmatprep.subr.mxu0 0.0
      %431 = vmatpush2.msra.mxu0 0.0
      %432 = vmatprep.subr.mxu0 0.0
      %433 = vmatpush2.msra.mxu0 0.0
      %434 = vmatprep.subr.mxu0 0.0
      %435 = vmatpush2.msra.mxu0 0.0
      %436 = vmatprep.subr.mxu0 0.0
      %437 = vmatpush2.msra.mxu0 0.0
      %438 = vmatprep.subr.mxu0 0.0
      %439 = vmatpush2.msra.mxu0 0.0
      %440 = vmatprep.subr.mxu0 0.0
      %441 = vmatpush2.msra.mxu0 0.0
      %442 = vmatprep.subr.mxu0 0.0
      %443 = vmatpush2.msra.mxu0 0.0
      %444 = vmatprep.subr.mxu0 0.0
      %445 = vmatpush2.msra.mxu0 0.0
      %446 = vmatprep.subr.mxu0 0.0
      %447 = vmatpush2.msra.mxu0 0.0
      %448 = vmatprep.subr.mxu0 0.0
      %449 = vmatpush2.msra.mxu0 0.0
      %450 = vmatprep.subr.mxu0 0.0
      %451 = vmatpush2.msra.mxu0 0.0
      %452 = vmatprep.subr.mxu0 0.0
      %453 = vmatpush2.msra.mxu0 0.0
      %454 = vmatprep.mubr.f32.mxu0 0.0
      %455 = vmatmul.mubr.f32.gmra.mxu0 %v388
      %v456 = vpop.f32.mrf.mxu0
      %v457 = vadd.f32 0.0, %v456
      %v458 = vpop.f32.mrf.mxu0
      %459 = vdwg.mxu0
      %v460 = vmax.f32 %v386, %v457
      %v462 = vsel %vm235, %v219, 0
      %464 = vmatprep.subr.mxu0 0.0
      %465 = vmatpush1.msra.mxu0 0.0
      %466 = vmatprep.subr.mxu0 0.0
      %467 = vmatpush1.msra.mxu0 0.0
      %468 = vmatprep.subr.mxu0 0.0
      %469 = vmatpush1.msra.mxu0 %v241
      %470 = vmatprep.subr.mxu0 0.0
      %471 = vmatpush1.msra.mxu0 %v233
      %472 = vmatprep.subr.mxu0 0.0
      %473 = vmatpush1.msra.mxu0 %v232
      %474 = vmatprep.subr.mxu0 0.0
      %475 = vmatpush1.msra.mxu0 %v231
      %476 = vmatprep.subr.mxu0 0.0
      %477 = vmatpush1.msra.mxu0 %v230
      %478 = vmatprep.subr.mxu0 0.0
      %479 = vmatpush1.msra.mxu0 %v229
      %480 = vmatprep.subr.mxu0 0.0
      %481 = vmatpush1.msra.mxu0 %v228
      %482 = vmatprep.subr.mxu0 0.0
      %483 = vmatpush1.msra.mxu0 %v227
      %484 = vmatprep.subr.mxu0 0.0
      %485 = vmatpush1.msra.mxu0 %v226
      %486 = vmatprep.subr.mxu0 0.0
      %487 = vmatpush1.msra.mxu0 %v225
      %488 = vmatprep.subr.mxu0 0.0
      %489 = vmatpush1.msra.mxu0 %v224
      %490 = vmatprep.subr.mxu0 0.0
      %491 = vmatpush1.msra.mxu0 %v223
      %492 = vmatprep.subr.mxu0 0.0
      %493 = vmatpush1.msra.mxu0 %v222
      %494 = vmatprep.subr.mxu0 0.0
      %495 = vmatpush1.msra.mxu0 %v221
      %496 = vmatprep.subr.mxu0 0.0
      %497 = vmatpush2.msra.mxu0 0.0
      %498 = vmatprep.subr.mxu0 0.0
      %499 = vmatpush2.msra.mxu0 0.0
      %500 = vmatprep.subr.mxu0 0.0
      %501 = vmatpush2.msra.mxu0 0.0
      %502 = vmatprep.subr.mxu0 0.0
      %503 = vmatpush2.msra.mxu0 0.0
      %504 = vmatprep.subr.mxu0 0.0
      %505 = vmatpush2.msra.mxu0 0.0
      %506 = vmatprep.subr.mxu0 0.0
      %507 = vmatpush2.msra.mxu0 0.0
      %508 = vmatprep.subr.mxu0 0.0
      %509 = vmatpush2.msra.mxu0 0.0
      %510 = vmatprep.subr.mxu0 0.0
      %511 = vmatpush2.msra.mxu0 0.0
      %512 = vmatprep.subr.mxu0 0.0
      %513 = vmatpush2.msra.mxu0 0.0
      %514 = vmatprep.subr.mxu0 0.0
      %515 = vmatpush2.msra.mxu0 0.0
      %516 = vmatprep.subr.mxu0 0.0
      %517 = vmatpush2.msra.mxu0 0.0
      %518 = vmatprep.subr.mxu0 0.0
      %519 = vmatpush2.msra.mxu0 0.0
      %520 = vmatprep.subr.mxu0 0.0
      %521 = vmatpush2.msra.mxu0 0.0
      %522 = vmatprep.subr.mxu0 0.0
      %523 = vmatpush2.msra.mxu0 0.0
      %524 = vmatprep.subr.mxu0 0.0
      %525 = vmatpush2.msra.mxu0 0.0
      %526 = vmatprep.subr.mxu0 0.0
      %527 = vmatpush2.msra.mxu0 0.0
      %528 = vmatprep.mubr.f32.mxu0 0.0
      %529 = vmatmul.mubr.f32.gmra.mxu0 %v462
      %v530 = vpop.f32.mrf.mxu0
      %v531 = vadd.f32 0.0, %v530
      %v532 = vpop.f32.mrf.mxu0
      %533 = vdwg.mxu0
      %v534 = vmax.f32 %v460, %v531
      %536 = vset.pattern.permute.xlu0 0
      %537 = vperm.xlu0 %536, %v220
      %v538 = vpop.permute.xlu0 %537
      %v540 = vadd.f32 %v534, %v538
      %v541 = vmax.f32 %v540, 0.0
      %vm542 = vcmask 70656
      %543 = vst.msk [vmem:[%s211] sm:$0x3f] %vm542, %v541
      %s544 = scalar_lea.vmem %s201, 112
      %v545 = vld [vmem:[%s544] sm:$0xff]
      %v546 = vld [vmem:[%s544 + $0x8] sm:$0xff]
      %v547 = vld [vmem:[%s544 + $0x10] sm:$0xff]
      %v548 = vld [vmem:[%s544 + $0x18] sm:$0xff]
      %v549 = vld [vmem:[%s544 + $0x20] sm:$0xff]
      %v550 = vld [vmem:[%s544 + $0x28] sm:$0xff]
      %v551 = vld [vmem:[%s544 + $0x30] sm:$0xff]
      %v552 = vld [vmem:[%s544 + $0x38] sm:$0xff]
      %v553 = vld [vmem:[%s544 + $0x40] sm:$0xff]
      %v554 = vld [vmem:[%s544 + $0x48] sm:$0xff]
      %v555 = vld [vmem:[%s544 + $0x50] sm:$0xff]
      %v556 = vld [vmem:[%s544 + $0x58] sm:$0xff]
      %v557 = vld [vmem:[%s544 + $0x60] sm:$0xff]
      %v558 = vld [vmem:[%s544 + $0x68] sm:$0xf]
      %v560 = vsel %vm239, %v558, 0
      %562 = vmatprep.subr.mxu0 0.0
      %563 = vmatpush1.msra.mxu0 0.0
      %564 = vmatprep.subr.mxu0 0.0
      %565 = vmatpush1.msra.mxu0 0.0
      %566 = vmatprep.subr.mxu0 0.0
      %567 = vmatpush1.msra.mxu0 %v560
      %568 = vmatprep.subr.mxu0 0.0
      %569 = vmatpush1.msra.mxu0 %v557
      %570 = vmatprep.subr.mxu0 0.0
      %571 = vmatpush1.msra.mxu0 %v556
      %572 = vmatprep.subr.mxu0 0.0
      %573 = vmatpush1.msra.mxu0 %v555
      %574 = vmatprep.subr.mxu0 0.0
      %575 = vmatpush1.msra.mxu0 %v554
      %576 = vmatprep.subr.mxu0 0.0
      %577 = vmatpush1.msra.mxu0 %v553
      %578 = vmatprep.subr.mxu0 0.0
      %579 = vmatpush1.msra.mxu0 %v552
      %580 = vmatprep.subr.mxu0 0.0
      %581 = vmatpush1.msra.mxu0 %v551
      %582 = vmatprep.subr.mxu0 0.0
      %583 = vmatpush1.msra.mxu0 %v550
      %584 = vmatprep.subr.mxu0 0.0
      %585 = vmatpush1.msra.mxu0 %v549
      %586 = vmatprep.subr.mxu0 0.0
      %587 = vmatpush1.msra.mxu0 %v548
      %588 = vmatprep.subr.mxu0 0.0
      %589 = vmatpush1.msra.mxu0 %v547
      %590 = vmatprep.subr.mxu0 0.0
      %591 = vmatpush1.msra.mxu0 %v546
      %592 = vmatprep.subr.mxu0 0.0
      %593 = vmatpush1.msra.mxu0 %v545
      %594 = vmatprep.subr.mxu0 0.0
      %595 = vmatpush2.msra.mxu0 0.0
      %596 = vmatprep.subr.mxu0 0.0
      %597 = vmatpush2.msra.mxu0 0.0
      %598 = vmatprep.subr.mxu0 0.0
      %599 = vmatpush2.msra.mxu0 0.0
      %600 = vmatprep.subr.mxu0 0.0
      %601 = vmatpush2.msra.mxu0 0.0
      %602 = vmatprep.subr.mxu0 0.0
      %603 = vmatpush2.msra.mxu0 0.0
      %604 = vmatprep.subr.mxu0 0.0
      %605 = vmatpush2.msra.mxu0 0.0
      %606 = vmatprep.subr.mxu0 0.0
      %607 = vmatpush2.msra.mxu0 0.0
      %608 = vmatprep.subr.mxu0 0.0
      %609 = vmatpush2.msra.mxu0 0.0
      %610 = vmatprep.subr.mxu0 0.0
      %611 = vmatpush2.msra.mxu0 0.0
      %612 = vmatprep.subr.mxu0 0.0
      %613 = vmatpush2.msra.mxu0 0.0
      %614 = vmatprep.subr.mxu0 0.0
      %615 = vmatpush2.msra.mxu0 0.0
      %616 = vmatprep.subr.mxu0 0.0
      %617 = vmatpush2.msra.mxu0 0.0
      %618 = vmatprep.subr.mxu0 0.0
      %619 = vmatpush2.msra.mxu0 0.0
      %620 = vmatprep.subr.mxu0 0.0
      %621 = vmatpush2.msra.mxu0 0.0
      %622 = vmatprep.subr.mxu0 0.0
      %623 = vmatpush2.msra.mxu0 0.0
      %624 = vmatprep.subr.mxu0 0.0
      %625 = vmatpush2.msra.mxu0 0.0
      %626 = vmatprep.mubr.f32.mxu0 0.0
      %627 = vmatmul.mubr.f32.gmra.mxu0 %v237
      %v628 = vpop.f32.mrf.mxu0
      %v629 = vadd.f32 0.0, %v628
      %v630 = vpop.f32.mrf.mxu0
      %631 = vdwg.mxu0
      %632 = vmatprep.subr.mxu0 0.0
      %633 = vmatpush1.msra.mxu0 0.0
      %634 = vmatprep.subr.mxu0 0.0
      %635 = vmatpush1.msra.mxu0 0.0
      %636 = vmatprep.subr.mxu0 0.0
      %637 = vmatpush1.msra.mxu0 %v560
      %638 = vmatprep.subr.mxu0 0.0
      %639 = vmatpush1.msra.mxu0 %v557
      %640 = vmatprep.subr.mxu0 0.0
      %641 = vmatpush1.msra.mxu0 %v556
      %642 = vmatprep.subr.mxu0 0.0
      %643 = vmatpush1.msra.mxu0 %v555
      %644 = vmatprep.subr.mxu0 0.0
      %645 = vmatpush1.msra.mxu0 %v554
      %646 = vmatprep.subr.mxu0 0.0
      %647 = vmatpush1.msra.mxu0 %v553
      %648 = vmatprep.subr.mxu0 0.0
      %649 = vmatpush1.msra.mxu0 %v552
      %650 = vmatprep.subr.mxu0 0.0
      %651 = vmatpush1.msra.mxu0 %v551
      %652 = vmatprep.subr.mxu0 0.0
      %653 = vmatpush1.msra.mxu0 %v550
      %654 = vmatprep.subr.mxu0 0.0
      %655 = vmatpush1.msra.mxu0 %v549
      %656 = vmatprep.subr.mxu0 0.0
      %657 = vmatpush1.msra.mxu0 %v548
      %658 = vmatprep.subr.mxu0 0.0
      %659 = vmatpush1.msra.mxu0 %v547
      %660 = vmatprep.subr.mxu0 0.0
      %661 = vmatpush1.msra.mxu0 %v546
      %662 = vmatprep.subr.mxu0 0.0
      %663 = vmatpush1.msra.mxu0 %v545
      %664 = vmatprep.subr.mxu0 0.0
      %665 = vmatpush2.msra.mxu0 0.0
      %666 = vmatprep.subr.mxu0 0.0
      %667 = vmatpush2.msra.mxu0 0.0
      %668 = vmatprep.subr.mxu0 0.0
      %669 = vmatpush2.msra.mxu0 0.0
      %670 = vmatprep.subr.mxu0 0.0
      %671 = vmatpush2.msra.mxu0 0.0
      %672 = vmatprep.subr.mxu0 0.0
      %673 = vmatpush2.msra.mxu0 0.0
      %674 = vmatprep.subr.mxu0 0.0
      %675 = vmatpush2.msra.mxu0 0.0
      %676 = vmatprep.subr.mxu0 0.0
      %677 = vmatpush2.msra.mxu0 0.0
      %678 = vmatprep.subr.mxu0 0.0
      %679 = vmatpush2.msra.mxu0 0.0
      %680 = vmatprep.subr.mxu0 0.0
      %681 = vmatpush2.msra.mxu0 0.0
      %682 = vmatprep.subr.mxu0 0.0
      %683 = vmatpush2.msra.mxu0 0.0
      %684 = vmatprep.subr.mxu0 0.0
      %685 = vmatpush2.msra.mxu0 0.0
      %686 = vmatprep.subr.mxu0 0.0
      %687 = vmatpush2.msra.mxu0 0.0
      %688 = vmatprep.subr.mxu0 0.0
      %689 = vmatpush2.msra.mxu0 0.0
      %690 = vmatprep.subr.mxu0 0.0
      %691 = vmatpush2.msra.mxu0 0.0
      %692 = vmatprep.subr.mxu0 0.0
      %693 = vmatpush2.msra.mxu0 0.0
      %694 = vmatprep.subr.mxu0 0.0
      %695 = vmatpush2.msra.mxu0 0.0
      %696 = vmatprep.mubr.f32.mxu0 0.0
      %697 = vmatmul.mubr.f32.gmra.mxu0 %v314
      %v698 = vpop.f32.mrf.mxu0
      %v699 = vadd.f32 0.0, %v698
      %v700 = vpop.f32.mrf.mxu0
      %701 = vdwg.mxu0
      %v702 = vmax.f32 %v629, %v699
      %703 = vmatprep.subr.mxu0 0.0
      %704 = vmatpush1.msra.mxu0 0.0
      %705 = vmatprep.subr.mxu0 0.0
      %706 = vmatpush1.msra.mxu0 0.0
      %707 = vmatprep.subr.mxu0 0.0
      %708 = vmatpush1.msra.mxu0 %v560
      %709 = vmatprep.subr.mxu0 0.0
      %710 = vmatpush1.msra.mxu0 %v557
      %711 = vmatprep.subr.mxu0 0.0
      %712 = vmatpush1.msra.mxu0 %v556
      %713 = vmatprep.subr.mxu0 0.0
      %714 = vmatpush1.msra.mxu0 %v555
      %715 = vmatprep.subr.mxu0 0.0
      %716 = vmatpush1.msra.mxu0 %v554
      %717 = vmatprep.subr.mxu0 0.0
      %718 = vmatpush1.msra.mxu0 %v553
      %719 = vmatprep.subr.mxu0 0.0
      %720 = vmatpush1.msra.mxu0 %v552
      %721 = vmatprep.subr.mxu0 0.0
      %722 = vmatpush1.msra.mxu0 %v551
      %723 = vmatprep.subr.mxu0 0.0
      %724 = vmatpush1.msra.mxu0 %v550
      %725 = vmatprep.subr.mxu0 0.0
      %726 = vmatpush1.msra.mxu0 %v549
      %727 = vmatprep.subr.mxu0 0.0
      %728 = vmatpush1.msra.mxu0 %v548
      %729 = vmatprep.subr.mxu0 0.0
      %730 = vmatpush1.msra.mxu0 %v547
      %731 = vmatprep.subr.mxu0 0.0
      %732 = vmatpush1.msra.mxu0 %v546
      %733 = vmatprep.subr.mxu0 0.0
      %734 = vmatpush1.msra.mxu0 %v545
      %735 = vmatprep.subr.mxu0 0.0
      %736 = vmatpush2.msra.mxu0 0.0
      %737 = vmatprep.subr.mxu0 0.0
      %738 = vmatpush2.msra.mxu0 0.0
      %739 = vmatprep.subr.mxu0 0.0
      %740 = vmatpush2.msra.mxu0 0.0
      %741 = vmatprep.subr.mxu0 0.0
      %742 = vmatpush2.msra.mxu0 0.0
      %743 = vmatprep.subr.mxu0 0.0
      %744 = vmatpush2.msra.mxu0 0.0
      %745 = vmatprep.subr.mxu0 0.0
      %746 = vmatpush2.msra.mxu0 0.0
      %747 = vmatprep.subr.mxu0 0.0
      %748 = vmatpush2.msra.mxu0 0.0
      %749 = vmatprep.subr.mxu0 0.0
      %750 = vmatpush2.msra.mxu0 0.0
      %751 = vmatprep.subr.mxu0 0.0
      %752 = vmatpush2.msra.mxu0 0.0
      %753 = vmatprep.subr.mxu0 0.0
      %754 = vmatpush2.msra.mxu0 0.0
      %755 = vmatprep.subr.mxu0 0.0
      %756 = vmatpush2.msra.mxu0 0.0
      %757 = vmatprep.subr.mxu0 0.0
      %758 = vmatpush2.msra.mxu0 0.0
      %759 = vmatprep.subr.mxu0 0.0
      %760 = vmatpush2.msra.mxu0 0.0
      %761 = vmatprep.subr.mxu0 0.0
      %762 = vmatpush2.msra.mxu0 0.0
      %763 = vmatprep.subr.mxu0 0.0
      %764 = vmatpush2.msra.mxu0 0.0
      %765 = vmatprep.subr.mxu0 0.0
      %766 = vmatpush2.msra.mxu0 0.0
      %767 = vmatprep.mubr.f32.mxu0 0.0
      %768 = vmatmul.mubr.f32.gmra.mxu0 %v388
      %v769 = vpop.f32.mrf.mxu0
      %v770 = vadd.f32 0.0, %v769
      %v771 = vpop.f32.mrf.mxu0
      %772 = vdwg.mxu0
      %v773 = vmax.f32 %v702, %v770
      %774 = vmatprep.subr.mxu0 0.0
      %775 = vmatpush1.msra.mxu0 0.0
      %776 = vmatprep.subr.mxu0 0.0
      %777 = vmatpush1.msra.mxu0 0.0
      %778 = vmatprep.subr.mxu0 0.0
      %779 = vmatpush1.msra.mxu0 %v560
      %780 = vmatprep.subr.mxu0 0.0
      %781 = vmatpush1.msra.mxu0 %v557
      %782 = vmatprep.subr.mxu0 0.0
      %783 = vmatpush1.msra.mxu0 %v556
      %784 = vmatprep.subr.mxu0 0.0
      %785 = vmatpush1.msra.mxu0 %v555
      %786 = vmatprep.subr.mxu0 0.0
      %787 = vmatpush1.msra.mxu0 %v554
      %788 = vmatprep.subr.mxu0 0.0
      %789 = vmatpush1.msra.mxu0 %v553
      %790 = vmatprep.subr.mxu0 0.0
      %791 = vmatpush1.msra.mxu0 %v552
      %792 = vmatprep.subr.mxu0 0.0
      %793 = vmatpush1.msra.mxu0 %v551
      %794 = vmatprep.subr.mxu0 0.0
      %795 = vmatpush1.msra.mxu0 %v550
      %796 = vmatprep.subr.mxu0 0.0
      %797 = vmatpush1.msra.mxu0 %v549
      %798 = vmatprep.subr.mxu0 0.0
      %799 = vmatpush1.msra.mxu0 %v548
      %800 = vmatprep.subr.mxu0 0.0
      %801 = vmatpush1.msra.mxu0 %v547
      %802 = vmatprep.subr.mxu0 0.0
      %803 = vmatpush1.msra.mxu0 %v546
      %804 = vmatprep.subr.mxu0 0.0
      %805 = vmatpush1.msra.mxu0 %v545
      %806 = vmatprep.subr.mxu0 0.0
      %807 = vmatpush2.msra.mxu0 0.0
      %808 = vmatprep.subr.mxu0 0.0
      %809 = vmatpush2.msra.mxu0 0.0
      %810 = vmatprep.subr.mxu0 0.0
      %811 = vmatpush2.msra.mxu0 0.0
      %812 = vmatprep.subr.mxu0 0.0
      %813 = vmatpush2.msra.mxu0 0.0
      %814 = vmatprep.subr.mxu0 0.0
      %815 = vmatpush2.msra.mxu0 0.0
      %816 = vmatprep.subr.mxu0 0.0
      %817 = vmatpush2.msra.mxu0 0.0
      %818 = vmatprep.subr.mxu0 0.0
      %819 = vmatpush2.msra.mxu0 0.0
      %820 = vmatprep.subr.mxu0 0.0
      %821 = vmatpush2.msra.mxu0 0.0
      %822 = vmatprep.subr.mxu0 0.0
      %823 = vmatpush2.msra.mxu0 0.0
      %824 = vmatprep.subr.mxu0 0.0
      %825 = vmatpush2.msra.mxu0 0.0
      %826 = vmatprep.subr.mxu0 0.0
      %827 = vmatpush2.msra.mxu0 0.0
      %828 = vmatprep.subr.mxu0 0.0
      %829 = vmatpush2.msra.mxu0 0.0
      %830 = vmatprep.subr.mxu0 0.0
      %831 = vmatpush2.msra.mxu0 0.0
      %832 = vmatprep.subr.mxu0 0.0
      %833 = vmatpush2.msra.mxu0 0.0
      %834 = vmatprep.subr.mxu0 0.0
      %835 = vmatpush2.msra.mxu0 0.0
      %836 = vmatprep.subr.mxu0 0.0
      %837 = vmatpush2.msra.mxu0 0.0
      %838 = vmatprep.mubr.f32.mxu0 0.0
      %839 = vmatmul.mubr.f32.gmra.mxu0 %v462
      %v840 = vpop.f32.mrf.mxu0
      %v841 = vadd.f32 0.0, %v840
      %v842 = vpop.f32.mrf.mxu0
      %843 = vdwg.mxu0
      %v844 = vmax.f32 %v773, %v841
      %v845 = vadd.f32 %v844, %v538
      %v846 = vmax.f32 %v845, 0.0
      %s847 = scalar_lea.vmem %s211, 8
      %848 = vst.msk [vmem:[%s847] sm:$0x3f] %vm542, %v846
      %s849 = scalar_lea.vmem %s201, 224
      %v850 = vld [vmem:[%s849] sm:$0xff]
      %v851 = vld [vmem:[%s849 + $0x8] sm:$0xff]
      %v852 = vld [vmem:[%s849 + $0x10] sm:$0xff]
      %v853 = vld [vmem:[%s849 + $0x18] sm:$0xff]
      %v854 = vld [vmem:[%s849 + $0x20] sm:$0xff]
      %v855 = vld [vmem:[%s849 + $0x28] sm:$0xff]
      %v856 = vld [vmem:[%s849 + $0x30] sm:$0xff]
      %v857 = vld [vmem:[%s849 + $0x38] sm:$0xff]
      %v858 = vld [vmem:[%s849 + $0x40] sm:$0xff]
      %v859 = vld [vmem:[%s849 + $0x48] sm:$0xff]
      %v860 = vld [vmem:[%s849 + $0x50] sm:$0xff]
      %v861 = vld [vmem:[%s849 + $0x58] sm:$0xff]
      %v862 = vld [vmem:[%s849 + $0x60] sm:$0xff]
      %v863 = vld [vmem:[%s849 + $0x68] sm:$0xf]
      %v865 = vsel %vm239, %v863, 0
      %867 = vmatprep.subr.mxu0 0.0
      %868 = vmatpush1.msra.mxu0 0.0
      %869 = vmatprep.subr.mxu0 0.0
      %870 = vmatpush1.msra.mxu0 0.0
      %871 = vmatprep.subr.mxu0 0.0
      %872 = vmatpush1.msra.mxu0 %v865
      %873 = vmatprep.subr.mxu0 0.0
      %874 = vmatpush1.msra.mxu0 %v862
      %875 = vmatprep.subr.mxu0 0.0
      %876 = vmatpush1.msra.mxu0 %v861
      %877 = vmatprep.subr.mxu0 0.0
      %878 = vmatpush1.msra.mxu0 %v860
      %879 = vmatprep.subr.mxu0 0.0
      %880 = vmatpush1.msra.mxu0 %v859
      %881 = vmatprep.subr.mxu0 0.0
      %882 = vmatpush1.msra.mxu0 %v858
      %883 = vmatprep.subr.mxu0 0.0
      %884 = vmatpush1.msra.mxu0 %v857
      %885 = vmatprep.subr.mxu0 0.0
      %886 = vmatpush1.msra.mxu0 %v856
      %887 = vmatprep.subr.mxu0 0.0
      %888 = vmatpush1.msra.mxu0 %v855
      %889 = vmatprep.subr.mxu0 0.0
      %890 = vmatpush1.msra.mxu0 %v854
      %891 = vmatprep.subr.mxu0 0.0
      %892 = vmatpush1.msra.mxu0 %v853
      %893 = vmatprep.subr.mxu0 0.0
      %894 = vmatpush1.msra.mxu0 %v852
      %895 = vmatprep.subr.mxu0 0.0
      %896 = vmatpush1.msra.mxu0 %v851
      %897 = vmatprep.subr.mxu0 0.0
      %898 = vmatpush1.msra.mxu0 %v850
      %899 = vmatprep.subr.mxu0 0.0
      %900 = vmatpush2.msra.mxu0 0.0
      %901 = vmatprep.subr.mxu0 0.0
      %902 = vmatpush2.msra.mxu0 0.0
      %903 = vmatprep.subr.mxu0 0.0
      %904 = vmatpush2.msra.mxu0 0.0
      %905 = vmatprep.subr.mxu0 0.0
      %906 = vmatpush2.msra.mxu0 0.0
      %907 = vmatprep.subr.mxu0 0.0
      %908 = vmatpush2.msra.mxu0 0.0
      %909 = vmatprep.subr.mxu0 0.0
      %910 = vmatpush2.msra.mxu0 0.0
      %911 = vmatprep.subr.mxu0 0.0
      %912 = vmatpush2.msra.mxu0 0.0
      %913 = vmatprep.subr.mxu0 0.0
      %914 = vmatpush2.msra.mxu0 0.0
      %915 = vmatprep.subr.mxu0 0.0
      %916 = vmatpush2.msra.mxu0 0.0
      %917 = vmatprep.subr.mxu0 0.0
      %918 = vmatpush2.msra.mxu0 0.0
      %919 = vmatprep.subr.mxu0 0.0
      %920 = vmatpush2.msra.mxu0 0.0
      %921 = vmatprep.subr.mxu0 0.0
      %922 = vmatpush2.msra.mxu0 0.0
      %923 = vmatprep.subr.mxu0 0.0
      %924 = vmatpush2.msra.mxu0 0.0
      %925 = vmatprep.subr.mxu0 0.0
      %926 = vmatpush2.msra.mxu0 0.0
      %927 = vmatprep.subr.mxu0 0.0
      %928 = vmatpush2.msra.mxu0 0.0
      %929 = vmatprep.subr.mxu0 0.0
      %930 = vmatpush2.msra.mxu0 0.0
      %931 = vmatprep.mubr.f32.mxu0 0.0
      %932 = vmatmul.mubr.f32.gmra.mxu0 %v237
      %v933 = vpop.f32.mrf.mxu0
      %v934 = vadd.f32 0.0, %v933
      %v935 = vpop.f32.mrf.mxu0
      %936 = vdwg.mxu0
      %937 = vmatprep.subr.mxu0 0.0
      %938 = vmatpush1.msra.mxu0 0.0
      %939 = vmatprep.subr.mxu0 0.0
      %940 = vmatpush1.msra.mxu0 0.0
      %941 = vmatprep.subr.mxu0 0.0
      %942 = vmatpush1.msra.mxu0 %v865
      %943 = vmatprep.subr.mxu0 0.0
      %944 = vmatpush1.msra.mxu0 %v862
      %945 = vmatprep.subr.mxu0 0.0
      %946 = vmatpush1.msra.mxu0 %v861
      %947 = vmatprep.subr.mxu0 0.0
      %948 = vmatpush1.msra.mxu0 %v860
      %949 = vmatprep.subr.mxu0 0.0
      %950 = vmatpush1.msra.mxu0 %v859
      %951 = vmatprep.subr.mxu0 0.0
      %952 = vmatpush1.msra.mxu0 %v858
      %953 = vmatprep.subr.mxu0 0.0
      %954 = vmatpush1.msra.mxu0 %v857
      %955 = vmatprep.subr.mxu0 0.0
      %956 = vmatpush1.msra.mxu0 %v856
      %957 = vmatprep.subr.mxu0 0.0
      %958 = vmatpush1.msra.mxu0 %v855
      %959 = vmatprep.subr.mxu0 0.0
      %960 = vmatpush1.msra.mxu0 %v854
      %961 = vmatprep.subr.mxu0 0.0
      %962 = vmatpush1.msra.mxu0 %v853
      %963 = vmatprep.subr.mxu0 0.0
      %964 = vmatpush1.msra.mxu0 %v852
      %965 = vmatprep.subr.mxu0 0.0
      %966 = vmatpush1.msra.mxu0 %v851
      %967 = vmatprep.subr.mxu0 0.0
      %968 = vmatpush1.msra.mxu0 %v850
      %969 = vmatprep.subr.mxu0 0.0
      %970 = vmatpush2.msra.mxu0 0.0
      %971 = vmatprep.subr.mxu0 0.0
      %972 = vmatpush2.msra.mxu0 0.0
      %973 = vmatprep.subr.mxu0 0.0
      %974 = vmatpush2.msra.mxu0 0.0
      %975 = vmatprep.subr.mxu0 0.0
      %976 = vmatpush2.msra.mxu0 0.0
      %977 = vmatprep.subr.mxu0 0.0
      %978 = vmatpush2.msra.mxu0 0.0
      %979 = vmatprep.subr.mxu0 0.0
      %980 = vmatpush2.msra.mxu0 0.0
      %981 = vmatprep.subr.mxu0 0.0
      %982 = vmatpush2.msra.mxu0 0.0
      %983 = vmatprep.subr.mxu0 0.0
      %984 = vmatpush2.msra.mxu0 0.0
      %985 = vmatprep.subr.mxu0 0.0
      %986 = vmatpush2.msra.mxu0 0.0
      %987 = vmatprep.subr.mxu0 0.0
      %988 = vmatpush2.msra.mxu0 0.0
      %989 = vmatprep.subr.mxu0 0.0
      %990 = vmatpush2.msra.mxu0 0.0
      %991 = vmatprep.subr.mxu0 0.0
      %992 = vmatpush2.msra.mxu0 0.0
      %993 = vmatprep.subr.mxu0 0.0
      %994 = vmatpush2.msra.mxu0 0.0
      %995 = vmatprep.subr.mxu0 0.0
      %996 = vmatpush2.msra.mxu0 0.0
      %997 = vmatprep.subr.mxu0 0.0
      %998 = vmatpush2.msra.mxu0 0.0
      %999 = vmatprep.subr.mxu0 0.0
      %1000 = vmatpush2.msra.mxu0 0.0
      %1001 = vmatprep.mubr.f32.mxu0 0.0
      %1002 = vmatmul.mubr.f32.gmra.mxu0 %v314
      %v1003 = vpop.f32.mrf.mxu0
      %v1004 = vadd.f32 0.0, %v1003
      %v1005 = vpop.f32.mrf.mxu0
      %1006 = vdwg.mxu0
      %v1007 = vmax.f32 %v934, %v1004
      %1008 = vmatprep.subr.mxu0 0.0
      %1009 = vmatpush1.msra.mxu0 0.0
      %1010 = vmatprep.subr.mxu0 0.0
      %1011 = vmatpush1.msra.mxu0 0.0
      %1012 = vmatprep.subr.mxu0 0.0
      %1013 = vmatpush1.msra.mxu0 %v865
      %1014 = vmatprep.subr.mxu0 0.0
      %1015 = vmatpush1.msra.mxu0 %v862
      %1016 = vmatprep.subr.mxu0 0.0
      %1017 = vmatpush1.msra.mxu0 %v861
      %1018 = vmatprep.subr.mxu0 0.0
      %1019 = vmatpush1.msra.mxu0 %v860
      %1020 = vmatprep.subr.mxu0 0.0
      %1021 = vmatpush1.msra.mxu0 %v859
      %1022 = vmatprep.subr.mxu0 0.0
      %1023 = vmatpush1.msra.mxu0 %v858
      %1024 = vmatprep.subr.mxu0 0.0
      %1025 = vmatpush1.msra.mxu0 %v857
      %1026 = vmatprep.subr.mxu0 0.0
      %1027 = vmatpush1.msra.mxu0 %v856
      %1028 = vmatprep.subr.mxu0 0.0
      %1029 = vmatpush1.msra.mxu0 %v855
      %1030 = vmatprep.subr.mxu0 0.0
      %1031 = vmatpush1.msra.mxu0 %v854
      %1032 = vmatprep.subr.mxu0 0.0
      %1033 = vmatpush1.msra.mxu0 %v853
      %1034 = vmatprep.subr.mxu0 0.0
      %1035 = vmatpush1.msra.mxu0 %v852
      %1036 = vmatprep.subr.mxu0 0.0
      %1037 = vmatpush1.msra.mxu0 %v851
      %1038 = vmatprep.subr.mxu0 0.0
      %1039 = vmatpush1.msra.mxu0 %v850
      %1040 = vmatprep.subr.mxu0 0.0
      %1041 = vmatpush2.msra.mxu0 0.0
      %1042 = vmatprep.subr.mxu0 0.0
      %1043 = vmatpush2.msra.mxu0 0.0
      %1044 = vmatprep.subr.mxu0 0.0
      %1045 = vmatpush2.msra.mxu0 0.0
      %1046 = vmatprep.subr.mxu0 0.0
      %1047 = vmatpush2.msra.mxu0 0.0
      %1048 = vmatprep.subr.mxu0 0.0
      %1049 = vmatpush2.msra.mxu0 0.0
      %1050 = vmatprep.subr.mxu0 0.0
      %1051 = vmatpush2.msra.mxu0 0.0
      %1052 = vmatprep.subr.mxu0 0.0
      %1053 = vmatpush2.msra.mxu0 0.0
      %1054 = vmatprep.subr.mxu0 0.0
      %1055 = vmatpush2.msra.mxu0 0.0
      %1056 = vmatprep.subr.mxu0 0.0
      %1057 = vmatpush2.msra.mxu0 0.0
      %1058 = vmatprep.subr.mxu0 0.0
      %1059 = vmatpush2.msra.mxu0 0.0
      %1060 = vmatprep.subr.mxu0 0.0
      %1061 = vmatpush2.msra.mxu0 0.0
      %1062 = vmatprep.subr.mxu0 0.0
      %1063 = vmatpush2.msra.mxu0 0.0
      %1064 = vmatprep.subr.mxu0 0.0
      %1065 = vmatpush2.msra.mxu0 0.0
      %1066 = vmatprep.subr.mxu0 0.0
      %1067 = vmatpush2.msra.mxu0 0.0
      %1068 = vmatprep.subr.mxu0 0.0
      %1069 = vmatpush2.msra.mxu0 0.0
      %1070 = vmatprep.subr.mxu0 0.0
      %1071 = vmatpush2.msra.mxu0 0.0
      %1072 = vmatprep.mubr.f32.mxu0 0.0
      %1073 = vmatmul.mubr.f32.gmra.mxu0 %v388
      %v1074 = vpop.f32.mrf.mxu0
      %v1075 = vadd.f32 0.0, %v1074
      %v1076 = vpop.f32.mrf.mxu0
      %1077 = vdwg.mxu0
      %v1078 = vmax.f32 %v1007, %v1075
      %1079 = vmatprep.subr.mxu0 0.0
      %1080 = vmatpush1.msra.mxu0 0.0
      %1081 = vmatprep.subr.mxu0 0.0
      %1082 = vmatpush1.msra.mxu0 0.0
      %1083 = vmatprep.subr.mxu0 0.0
      %1084 = vmatpush1.msra.mxu0 %v865
      %1085 = vmatprep.subr.mxu0 0.0
      %1086 = vmatpush1.msra.mxu0 %v862
      %1087 = vmatprep.subr.mxu0 0.0
      %1088 = vmatpush1.msra.mxu0 %v861
      %1089 = vmatprep.subr.mxu0 0.0
      %1090 = vmatpush1.msra.mxu0 %v860
      %1091 = vmatprep.subr.mxu0 0.0
      %1092 = vmatpush1.msra.mxu0 %v859
      %1093 = vmatprep.subr.mxu0 0.0
      %1094 = vmatpush1.msra.mxu0 %v858
      %1095 = vmatprep.subr.mxu0 0.0
      %1096 = vmatpush1.msra.mxu0 %v857
      %1097 = vmatprep.subr.mxu0 0.0
      %1098 = vmatpush1.msra.mxu0 %v856
      %1099 = vmatprep.subr.mxu0 0.0
      %1100 = vmatpush1.msra.mxu0 %v855
      %1101 = vmatprep.subr.mxu0 0.0
      %1102 = vmatpush1.msra.mxu0 %v854
      %1103 = vmatprep.subr.mxu0 0.0
      %1104 = vmatpush1.msra.mxu0 %v853
      %1105 = vmatprep.subr.mxu0 0.0
      %1106 = vmatpush1.msra.mxu0 %v852
      %1107 = vmatprep.subr.mxu0 0.0
      %1108 = vmatpush1.msra.mxu0 %v851
      %1109 = vmatprep.subr.mxu0 0.0
      %1110 = vmatpush1.msra.mxu0 %v850
      %1111 = vmatprep.subr.mxu0 0.0
      %1112 = vmatpush2.msra.mxu0 0.0
      %1113 = vmatprep.subr.mxu0 0.0
      %1114 = vmatpush2.msra.mxu0 0.0
      %1115 = vmatprep.subr.mxu0 0.0
      %1116 = vmatpush2.msra.mxu0 0.0
      %1117 = vmatprep.subr.mxu0 0.0
      %1118 = vmatpush2.msra.mxu0 0.0
      %1119 = vmatprep.subr.mxu0 0.0
      %1120 = vmatpush2.msra.mxu0 0.0
      %1121 = vmatprep.subr.mxu0 0.0
      %1122 = vmatpush2.msra.mxu0 0.0
      %1123 = vmatprep.subr.mxu0 0.0
      %1124 = vmatpush2.msra.mxu0 0.0
      %1125 = vmatprep.subr.mxu0 0.0
      %1126 = vmatpush2.msra.mxu0 0.0
      %1127 = vmatprep.subr.mxu0 0.0
      %1128 = vmatpush2.msra.mxu0 0.0
      %1129 = vmatprep.subr.mxu0 0.0
      %1130 = vmatpush2.msra.mxu0 0.0
      %1131 = vmatprep.subr.mxu0 0.0
      %1132 = vmatpush2.msra.mxu0 0.0
      %1133 = vmatprep.subr.mxu0 0.0
      %1134 = vmatpush2.msra.mxu0 0.0
      %1135 = vmatprep.subr.mxu0 0.0
      %1136 = vmatpush2.msra.mxu0 0.0
      %1137 = vmatprep.subr.mxu0 0.0
      %1138 = vmatpush2.msra.mxu0 0.0
      %1139 = vmatprep.subr.mxu0 0.0
      %1140 = vmatpush2.msra.mxu0 0.0
      %1141 = vmatprep.subr.mxu0 0.0
      %1142 = vmatpush2.msra.mxu0 0.0
      %1143 = vmatprep.mubr.f32.mxu0 0.0
      %1144 = vmatmul.mubr.f32.gmra.mxu0 %v462
      %v1145 = vpop.f32.mrf.mxu0
      %v1146 = vadd.f32 0.0, %v1145
      %v1147 = vpop.f32.mrf.mxu0
      %1148 = vdwg.mxu0
      %v1149 = vmax.f32 %v1078, %v1146
      %v1150 = vadd.f32 %v1149, %v538
      %v1151 = vmax.f32 %v1150, 0.0
      %s1152 = scalar_lea.vmem %s211, 16
      %1153 = vst.msk [vmem:[%s1152] sm:$0x3f] %vm542, %v1151
      %s1154 = scalar_lea.vmem %s201, 336
      %v1155 = vld [vmem:[%s1154] sm:$0xff]
      %v1156 = vld [vmem:[%s1154 + $0x8] sm:$0xff]
      %v1157 = vld [vmem:[%s1154 + $0x10] sm:$0xff]
      %v1158 = vld [vmem:[%s1154 + $0x18] sm:$0xff]
      %v1159 = vld [vmem:[%s1154 + $0x20] sm:$0xff]
      %v1160 = vld [vmem:[%s1154 + $0x28] sm:$0xff]
      %v1161 = vld [vmem:[%s1154 + $0x30] sm:$0xff]
      %v1162 = vld [vmem:[%s1154 + $0x38] sm:$0xff]
      %v1163 = vld [vmem:[%s1154 + $0x40] sm:$0xff]
      %v1164 = vld [vmem:[%s1154 + $0x48] sm:$0xff]
      %v1165 = vld [vmem:[%s1154 + $0x50] sm:$0xff]
      %v1166 = vld [vmem:[%s1154 + $0x58] sm:$0xff]
      %v1167 = vld [vmem:[%s1154 + $0x60] sm:$0xff]
      %v1168 = vld [vmem:[%s1154 + $0x68] sm:$0xf]
      %v1170 = vsel %vm239, %v1168, 0
      %1172 = vmatprep.subr.mxu0 0.0
      %1173 = vmatpush1.msra.mxu0 0.0
      %1174 = vmatprep.subr.mxu0 0.0
      %1175 = vmatpush1.msra.mxu0 0.0
      %1176 = vmatprep.subr.mxu0 0.0
      %1177 = vmatpush1.msra.mxu0 %v1170
      %1178 = vmatprep.subr.mxu0 0.0
      %1179 = vmatpush1.msra.mxu0 %v1167
      %1180 = vmatprep.subr.mxu0 0.0
      %1181 = vmatpush1.msra.mxu0 %v1166
      %1182 = vmatprep.subr.mxu0 0.0
      %1183 = vmatpush1.msra.mxu0 %v1165
      %1184 = vmatprep.subr.mxu0 0.0
      %1185 = vmatpush1.msra.mxu0 %v1164
      %1186 = vmatprep.subr.mxu0 0.0
      %1187 = vmatpush1.msra.mxu0 %v1163
      %1188 = vmatprep.subr.mxu0 0.0
      %1189 = vmatpush1.msra.mxu0 %v1162
      %1190 = vmatprep.subr.mxu0 0.0
      %1191 = vmatpush1.msra.mxu0 %v1161
      %1192 = vmatprep.subr.mxu0 0.0
      %1193 = vmatpush1.msra.mxu0 %v1160
      %1194 = vmatprep.subr.mxu0 0.0
      %1195 = vmatpush1.msra.mxu0 %v1159
      %1196 = vmatprep.subr.mxu0 0.0
      %1197 = vmatpush1.msra.mxu0 %v1158
      %1198 = vmatprep.subr.mxu0 0.0
      %1199 = vmatpush1.msra.mxu0 %v1157
      %1200 = vmatprep.subr.mxu0 0.0
      %1201 = vmatpush1.msra.mxu0 %v1156
      %1202 = vmatprep.subr.mxu0 0.0
      %1203 = vmatpush1.msra.mxu0 %v1155
      %1204 = vmatprep.subr.mxu0 0.0
      %1205 = vmatpush2.msra.mxu0 0.0
      %1206 = vmatprep.subr.mxu0 0.0
      %1207 = vmatpush2.msra.mxu0 0.0
      %1208 = vmatprep.subr.mxu0 0.0
      %1209 = vmatpush2.msra.mxu0 0.0
      %1210 = vmatprep.subr.mxu0 0.0
      %1211 = vmatpush2.msra.mxu0 0.0
      %1212 = vmatprep.subr.mxu0 0.0
      %1213 = vmatpush2.msra.mxu0 0.0
      %1214 = vmatprep.subr.mxu0 0.0
      %1215 = vmatpush2.msra.mxu0 0.0
      %1216 = vmatprep.subr.mxu0 0.0
      %1217 = vmatpush2.msra.mxu0 0.0
      %1218 = vmatprep.subr.mxu0 0.0
      %1219 = vmatpush2.msra.mxu0 0.0
      %1220 = vmatprep.subr.mxu0 0.0
      %1221 = vmatpush2.msra.mxu0 0.0
      %1222 = vmatprep.subr.mxu0 0.0
      %1223 = vmatpush2.msra.mxu0 0.0
      %1224 = vmatprep.subr.mxu0 0.0
      %1225 = vmatpush2.msra.mxu0 0.0
      %1226 = vmatprep.subr.mxu0 0.0
      %1227 = vmatpush2.msra.mxu0 0.0
      %1228 = vmatprep.subr.mxu0 0.0
      %1229 = vmatpush2.msra.mxu0 0.0
      %1230 = vmatprep.subr.mxu0 0.0
      %1231 = vmatpush2.msra.mxu0 0.0
      %1232 = vmatprep.subr.mxu0 0.0
      %1233 = vmatpush2.msra.mxu0 0.0
      %1234 = vmatprep.subr.mxu0 0.0
      %1235 = vmatpush2.msra.mxu0 0.0
      %1236 = vmatprep.mubr.f32.mxu0 0.0
      %1237 = vmatmul.mubr.f32.gmra.mxu0 %v237
      %v1238 = vpop.f32.mrf.mxu0
      %v1239 = vadd.f32 0.0, %v1238
      %v1240 = vpop.f32.mrf.mxu0
      %1241 = vdwg.mxu0
      %1242 = vmatprep.subr.mxu0 0.0
      %1243 = vmatpush1.msra.mxu0 0.0
      %1244 = vmatprep.subr.mxu0 0.0
      %1245 = vmatpush1.msra.mxu0 0.0
      %1246 = vmatprep.subr.mxu0 0.0
      %1247 = vmatpush1.msra.mxu0 %v1170
      %1248 = vmatprep.subr.mxu0 0.0
      %1249 = vmatpush1.msra.mxu0 %v1167
      %1250 = vmatprep.subr.mxu0 0.0
      %1251 = vmatpush1.msra.mxu0 %v1166
      %1252 = vmatprep.subr.mxu0 0.0
      %1253 = vmatpush1.msra.mxu0 %v1165
      %1254 = vmatprep.subr.mxu0 0.0
      %1255 = vmatpush1.msra.mxu0 %v1164
      %1256 = vmatprep.subr.mxu0 0.0
      %1257 = vmatpush1.msra.mxu0 %v1163
      %1258 = vmatprep.subr.mxu0 0.0
      %1259 = vmatpush1.msra.mxu0 %v1162
      %1260 = vmatprep.subr.mxu0 0.0
      %1261 = vmatpush1.msra.mxu0 %v1161
      %1262 = vmatprep.subr.mxu0 0.0
      %1263 = vmatpush1.msra.mxu0 %v1160
      %1264 = vmatprep.subr.mxu0 0.0
      %1265 = vmatpush1.msra.mxu0 %v1159
      %1266 = vmatprep.subr.mxu0 0.0
      %1267 = vmatpush1.msra.mxu0 %v1158
      %1268 = vmatprep.subr.mxu0 0.0
      %1269 = vmatpush1.msra.mxu0 %v1157
      %1270 = vmatprep.subr.mxu0 0.0
      %1271 = vmatpush1.msra.mxu0 %v1156
      %1272 = vmatprep.subr.mxu0 0.0
      %1273 = vmatpush1.msra.mxu0 %v1155
      %1274 = vmatprep.subr.mxu0 0.0
      %1275 = vmatpush2.msra.mxu0 0.0
      %1276 = vmatprep.subr.mxu0 0.0
      %1277 = vmatpush2.msra.mxu0 0.0
      %1278 = vmatprep.subr.mxu0 0.0
      %1279 = vmatpush2.msra.mxu0 0.0
      %1280 = vmatprep.subr.mxu0 0.0
      %1281 = vmatpush2.msra.mxu0 0.0
      %1282 = vmatprep.subr.mxu0 0.0
      %1283 = vmatpush2.msra.mxu0 0.0
      %1284 = vmatprep.subr.mxu0 0.0
      %1285 = vmatpush2.msra.mxu0 0.0
      %1286 = vmatprep.subr.mxu0 0.0
      %1287 = vmatpush2.msra.mxu0 0.0
      %1288 = vmatprep.subr.mxu0 0.0
      %1289 = vmatpush2.msra.mxu0 0.0
      %1290 = vmatprep.subr.mxu0 0.0
      %1291 = vmatpush2.msra.mxu0 0.0
      %1292 = vmatprep.subr.mxu0 0.0
      %1293 = vmatpush2.msra.mxu0 0.0
      %1294 = vmatprep.subr.mxu0 0.0
      %1295 = vmatpush2.msra.mxu0 0.0
      %1296 = vmatprep.subr.mxu0 0.0
      %1297 = vmatpush2.msra.mxu0 0.0
      %1298 = vmatprep.subr.mxu0 0.0
      %1299 = vmatpush2.msra.mxu0 0.0
      %1300 = vmatprep.subr.mxu0 0.0
      %1301 = vmatpush2.msra.mxu0 0.0
      %1302 = vmatprep.subr.mxu0 0.0
      %1303 = vmatpush2.msra.mxu0 0.0
      %1304 = vmatprep.subr.mxu0 0.0
      %1305 = vmatpush2.msra.mxu0 0.0
      %1306 = vmatprep.mubr.f32.mxu0 0.0
      %1307 = vmatmul.mubr.f32.gmra.mxu0 %v314
      %v1308 = vpop.f32.mrf.mxu0
      %v1309 = vadd.f32 0.0, %v1308
      %v1310 = vpop.f32.mrf.mxu0
      %1311 = vdwg.mxu0
      %v1312 = vmax.f32 %v1239, %v1309
      %1313 = vmatprep.subr.mxu0 0.0
      %1314 = vmatpush1.msra.mxu0 0.0
      %1315 = vmatprep.subr.mxu0 0.0
      %1316 = vmatpush1.msra.mxu0 0.0
      %1317 = vmatprep.subr.mxu0 0.0
      %1318 = vmatpush1.msra.mxu0 %v1170
      %1319 = vmatprep.subr.mxu0 0.0
      %1320 = vmatpush1.msra.mxu0 %v1167
      %1321 = vmatprep.subr.mxu0 0.0
      %1322 = vmatpush1.msra.mxu0 %v1166
      %1323 = vmatprep.subr.mxu0 0.0
      %1324 = vmatpush1.msra.mxu0 %v1165
      %1325 = vmatprep.subr.mxu0 0.0
      %1326 = vmatpush1.msra.mxu0 %v1164
      %1327 = vmatprep.subr.mxu0 0.0
      %1328 = vmatpush1.msra.mxu0 %v1163
      %1329 = vmatprep.subr.mxu0 0.0
      %1330 = vmatpush1.msra.mxu0 %v1162
      %1331 = vmatprep.subr.mxu0 0.0
      %1332 = vmatpush1.msra.mxu0 %v1161
      %1333 = vmatprep.subr.mxu0 0.0
      %1334 = vmatpush1.msra.mxu0 %v1160
      %1335 = vmatprep.subr.mxu0 0.0
      %1336 = vmatpush1.msra.mxu0 %v1159
      %1337 = vmatprep.subr.mxu0 0.0
      %1338 = vmatpush1.msra.mxu0 %v1158
      %1339 = vmatprep.subr.mxu0 0.0
      %1340 = vmatpush1.msra.mxu0 %v1157
      %1341 = vmatprep.subr.mxu0 0.0
      %1342 = vmatpush1.msra.mxu0 %v1156
      %1343 = vmatprep.subr.mxu0 0.0
      %1344 = vmatpush1.msra.mxu0 %v1155
      %1345 = vmatprep.subr.mxu0 0.0
      %1346 = vmatpush2.msra.mxu0 0.0
      %1347 = vmatprep.subr.mxu0 0.0
      %1348 = vmatpush2.msra.mxu0 0.0
      %1349 = vmatprep.subr.mxu0 0.0
      %1350 = vmatpush2.msra.mxu0 0.0
      %1351 = vmatprep.subr.mxu0 0.0
      %1352 = vmatpush2.msra.mxu0 0.0
      %1353 = vmatprep.subr.mxu0 0.0
      %1354 = vmatpush2.msra.mxu0 0.0
      %1355 = vmatprep.subr.mxu0 0.0
      %1356 = vmatpush2.msra.mxu0 0.0
      %1357 = vmatprep.subr.mxu0 0.0
      %1358 = vmatpush2.msra.mxu0 0.0
      %1359 = vmatprep.subr.mxu0 0.0
      %1360 = vmatpush2.msra.mxu0 0.0
      %1361 = vmatprep.subr.mxu0 0.0
      %1362 = vmatpush2.msra.mxu0 0.0
      %1363 = vmatprep.subr.mxu0 0.0
      %1364 = vmatpush2.msra.mxu0 0.0
      %1365 = vmatprep.subr.mxu0 0.0
      %1366 = vmatpush2.msra.mxu0 0.0
      %1367 = vmatprep.subr.mxu0 0.0
      %1368 = vmatpush2.msra.mxu0 0.0
      %1369 = vmatprep.subr.mxu0 0.0
      %1370 = vmatpush2.msra.mxu0 0.0
      %1371 = vmatprep.subr.mxu0 0.0
      %1372 = vmatpush2.msra.mxu0 0.0
      %1373 = vmatprep.subr.mxu0 0.0
      %1374 = vmatpush2.msra.mxu0 0.0
      %1375 = vmatprep.subr.mxu0 0.0
      %1376 = vmatpush2.msra.mxu0 0.0
      %1377 = vmatprep.mubr.f32.mxu0 0.0
      %1378 = vmatmul.mubr.f32.gmra.mxu0 %v388
      %v1379 = vpop.f32.mrf.mxu0
      %v1380 = vadd.f32 0.0, %v1379
      %v1381 = vpop.f32.mrf.mxu0
      %1382 = vdwg.mxu0
      %v1383 = vmax.f32 %v1312, %v1380
      %1384 = vmatprep.subr.mxu0 0.0
      %1385 = vmatpush1.msra.mxu0 0.0
      %1386 = vmatprep.subr.mxu0 0.0
      %1387 = vmatpush1.msra.mxu0 0.0
      %1388 = vmatprep.subr.mxu0 0.0
      %1389 = vmatpush1.msra.mxu0 %v1170
      %1390 = vmatprep.subr.mxu0 0.0
      %1391 = vmatpush1.msra.mxu0 %v1167
      %1392 = vmatprep.subr.mxu0 0.0
      %1393 = vmatpush1.msra.mxu0 %v1166
      %1394 = vmatprep.subr.mxu0 0.0
      %1395 = vmatpush1.msra.mxu0 %v1165
      %1396 = vmatprep.subr.mxu0 0.0
      %1397 = vmatpush1.msra.mxu0 %v1164
      %1398 = vmatprep.subr.mxu0 0.0
      %1399 = vmatpush1.msra.mxu0 %v1163
      %1400 = vmatprep.subr.mxu0 0.0
      %1401 = vmatpush1.msra.mxu0 %v1162
      %1402 = vmatprep.subr.mxu0 0.0
      %1403 = vmatpush1.msra.mxu0 %v1161
      %1404 = vmatprep.subr.mxu0 0.0
      %1405 = vmatpush1.msra.mxu0 %v1160
      %1406 = vmatprep.subr.mxu0 0.0
      %1407 = vmatpush1.msra.mxu0 %v1159
      %1408 = vmatprep.subr.mxu0 0.0
      %1409 = vmatpush1.msra.mxu0 %v1158
      %1410 = vmatprep.subr.mxu0 0.0
      %1411 = vmatpush1.msra.mxu0 %v1157
      %1412 = vmatprep.subr.mxu0 0.0
      %1413 = vmatpush1.msra.mxu0 %v1156
      %1414 = vmatprep.subr.mxu0 0.0
      %1415 = vmatpush1.msra.mxu0 %v1155
      %1416 = vmatprep.subr.mxu0 0.0
      %1417 = vmatpush2.msra.mxu0 0.0
      %1418 = vmatprep.subr.mxu0 0.0
      %1419 = vmatpush2.msra.mxu0 0.0
      %1420 = vmatprep.subr.mxu0 0.0
      %1421 = vmatpush2.msra.mxu0 0.0
      %1422 = vmatprep.subr.mxu0 0.0
      %1423 = vmatpush2.msra.mxu0 0.0
      %1424 = vmatprep.subr.mxu0 0.0
      %1425 = vmatpush2.msra.mxu0 0.0
      %1426 = vmatprep.subr.mxu0 0.0
      %1427 = vmatpush2.msra.mxu0 0.0
      %1428 = vmatprep.subr.mxu0 0.0
      %1429 = vmatpush2.msra.mxu0 0.0
      %1430 = vmatprep.subr.mxu0 0.0
      %1431 = vmatpush2.msra.mxu0 0.0
      %1432 = vmatprep.subr.mxu0 0.0
      %1433 = vmatpush2.msra.mxu0 0.0
      %1434 = vmatprep.subr.mxu0 0.0
      %1435 = vmatpush2.msra.mxu0 0.0
      %1436 = vmatprep.subr.mxu0 0.0
      %1437 = vmatpush2.msra.mxu0 0.0
      %1438 = vmatprep.subr.mxu0 0.0
      %1439 = vmatpush2.msra.mxu0 0.0
      %1440 = vmatprep.subr.mxu0 0.0
      %1441 = vmatpush2.msra.mxu0 0.0
      %1442 = vmatprep.subr.mxu0 0.0
      %1443 = vmatpush2.msra.mxu0 0.0
      %1444 = vmatprep.subr.mxu0 0.0
      %1445 = vmatpush2.msra.mxu0 0.0
      %1446 = vmatprep.subr.mxu0 0.0
      %1447 = vmatpush2.msra.mxu0 0.0
      %1448 = vmatprep.mubr.f32.mxu0 0.0
      %1449 = vmatmul.mubr.f32.gmra.mxu0 %v462
      %v1450 = vpop.f32.mrf.mxu0
      %v1451 = vadd.f32 0.0, %v1450
      %v1452 = vpop.f32.mrf.mxu0
      %1453 = vdwg.mxu0
      %v1454 = vmax.f32 %v1383, %v1451
      %v1455 = vadd.f32 %v1454, %v538
      %v1456 = vmax.f32 %v1455, 0.0
      %s1457 = scalar_lea.vmem %s211, 24
      %1458 = vst.msk [vmem:[%s1457] sm:$0x3f] %vm542, %v1456
      %s1459 = scalar_lea.vmem %s201, 448
      %v1460 = vld [vmem:[%s1459] sm:$0xff]
      %v1461 = vld [vmem:[%s1459 + $0x8] sm:$0xff]
      %v1462 = vld [vmem:[%s1459 + $0x10] sm:$0xff]
      %v1463 = vld [vmem:[%s1459 + $0x18] sm:$0xff]
      %v1464 = vld [vmem:[%s1459 + $0x20] sm:$0xff]
      %v1465 = vld [vmem:[%s1459 + $0x28] sm:$0xff]
      %v1466 = vld [vmem:[%s1459 + $0x30] sm:$0xff]
      %v1467 = vld [vmem:[%s1459 + $0x38] sm:$0xff]
      %v1468 = vld [vmem:[%s1459 + $0x40] sm:$0xff]
      %v1469 = vld [vmem:[%s1459 + $0x48] sm:$0xff]
      %v1470 = vld [vmem:[%s1459 + $0x50] sm:$0xff]
      %v1471 = vld [vmem:[%s1459 + $0x58] sm:$0xff]
      %v1472 = vld [vmem:[%s1459 + $0x60] sm:$0xff]
      %v1473 = vld [vmem:[%s1459 + $0x68] sm:$0xf]
      %v1475 = vsel %vm239, %v1473, 0
      %1477 = vmatprep.subr.mxu0 0.0
      %1478 = vmatpush1.msra.mxu0 0.0
      %1479 = vmatprep.subr.mxu0 0.0
      %1480 = vmatpush1.msra.mxu0 0.0
      %1481 = vmatprep.subr.mxu0 0.0
      %1482 = vmatpush1.msra.mxu0 %v1475
      %1483 = vmatprep.subr.mxu0 0.0
      %1484 = vmatpush1.msra.mxu0 %v1472
      %1485 = vmatprep.subr.mxu0 0.0
      %1486 = vmatpush1.msra.mxu0 %v1471
      %1487 = vmatprep.subr.mxu0 0.0
      %1488 = vmatpush1.msra.mxu0 %v1470
      %1489 = vmatprep.subr.mxu0 0.0
      %1490 = vmatpush1.msra.mxu0 %v1469
      %1491 = vmatprep.subr.mxu0 0.0
      %1492 = vmatpush1.msra.mxu0 %v1468
      %1493 = vmatprep.subr.mxu0 0.0
      %1494 = vmatpush1.msra.mxu0 %v1467
      %1495 = vmatprep.subr.mxu0 0.0
      %1496 = vmatpush1.msra.mxu0 %v1466
      %1497 = vmatprep.subr.mxu0 0.0
      %1498 = vmatpush1.msra.mxu0 %v1465
      %1499 = vmatprep.subr.mxu0 0.0
      %1500 = vmatpush1.msra.mxu0 %v1464
      %1501 = vmatprep.subr.mxu0 0.0
      %1502 = vmatpush1.msra.mxu0 %v1463
      %1503 = vmatprep.subr.mxu0 0.0
      %1504 = vmatpush1.msra.mxu0 %v1462
      %1505 = vmatprep.subr.mxu0 0.0
      %1506 = vmatpush1.msra.mxu0 %v1461
      %1507 = vmatprep.subr.mxu0 0.0
      %1508 = vmatpush1.msra.mxu0 %v1460
      %1509 = vmatprep.subr.mxu0 0.0
      %1510 = vmatpush2.msra.mxu0 0.0
      %1511 = vmatprep.subr.mxu0 0.0
      %1512 = vmatpush2.msra.mxu0 0.0
      %1513 = vmatprep.subr.mxu0 0.0
      %1514 = vmatpush2.msra.mxu0 0.0
      %1515 = vmatprep.subr.mxu0 0.0
      %1516 = vmatpush2.msra.mxu0 0.0
      %1517 = vmatprep.subr.mxu0 0.0
      %1518 = vmatpush2.msra.mxu0 0.0
      %1519 = vmatprep.subr.mxu0 0.0
      %1520 = vmatpush2.msra.mxu0 0.0
      %1521 = vmatprep.subr.mxu0 0.0
      %1522 = vmatpush2.msra.mxu0 0.0
      %1523 = vmatprep.subr.mxu0 0.0
      %1524 = vmatpush2.msra.mxu0 0.0
      %1525 = vmatprep.subr.mxu0 0.0
      %1526 = vmatpush2.msra.mxu0 0.0
      %1527 = vmatprep.subr.mxu0 0.0
      %1528 = vmatpush2.msra.mxu0 0.0
      %1529 = vmatprep.subr.mxu0 0.0
      %1530 = vmatpush2.msra.mxu0 0.0
      %1531 = vmatprep.subr.mxu0 0.0
      %1532 = vmatpush2.msra.mxu0 0.0
      %1533 = vmatprep.subr.mxu0 0.0
      %1534 = vmatpush2.msra.mxu0 0.0
      %1535 = vmatprep.subr.mxu0 0.0
      %1536 = vmatpush2.msra.mxu0 0.0
      %1537 = vmatprep.subr.mxu0 0.0
      %1538 = vmatpush2.msra.mxu0 0.0
      %1539 = vmatprep.subr.mxu0 0.0
      %1540 = vmatpush2.msra.mxu0 0.0
      %1541 = vmatprep.mubr.f32.mxu0 0.0
      %1542 = vmatmul.mubr.f32.gmra.mxu0 %v237
      %v1543 = vpop.f32.mrf.mxu0
      %v1544 = vadd.f32 0.0, %v1543
      %v1545 = vpop.f32.mrf.mxu0
      %1546 = vdwg.mxu0
      %1547 = vmatprep.subr.mxu0 0.0
      %1548 = vmatpush1.msra.mxu0 0.0
      %1549 = vmatprep.subr.mxu0 0.0
      %1550 = vmatpush1.msra.mxu0 0.0
      %1551 = vmatprep.subr.mxu0 0.0
      %1552 = vmatpush1.msra.mxu0 %v1475
      %1553 = vmatprep.subr.mxu0 0.0
      %1554 = vmatpush1.msra.mxu0 %v1472
      %1555 = vmatprep.subr.mxu0 0.0
      %1556 = vmatpush1.msra.mxu0 %v1471
      %1557 = vmatprep.subr.mxu0 0.0
      %1558 = vmatpush1.msra.mxu0 %v1470
      %1559 = vmatprep.subr.mxu0 0.0
      %1560 = vmatpush1.msra.mxu0 %v1469
      %1561 = vmatprep.subr.mxu0 0.0
      %1562 = vmatpush1.msra.mxu0 %v1468
      %1563 = vmatprep.subr.mxu0 0.0
      %1564 = vmatpush1.msra.mxu0 %v1467
      %1565 = vmatprep.subr.mxu0 0.0
      %1566 = vmatpush1.msra.mxu0 %v1466
      %1567 = vmatprep.subr.mxu0 0.0
      %1568 = vmatpush1.msra.mxu0 %v1465
      %1569 = vmatprep.subr.mxu0 0.0
      %1570 = vmatpush1.msra.mxu0 %v1464
      %1571 = vmatprep.subr.mxu0 0.0
      %1572 = vmatpush1.msra.mxu0 %v1463
      %1573 = vmatprep.subr.mxu0 0.0
      %1574 = vmatpush1.msra.mxu0 %v1462
      %1575 = vmatprep.subr.mxu0 0.0
      %1576 = vmatpush1.msra.mxu0 %v1461
      %1577 = vmatprep.subr.mxu0 0.0
      %1578 = vmatpush1.msra.mxu0 %v1460
      %1579 = vmatprep.subr.mxu0 0.0
      %1580 = vmatpush2.msra.mxu0 0.0
      %1581 = vmatprep.subr.mxu0 0.0
      %1582 = vmatpush2.msra.mxu0 0.0
      %1583 = vmatprep.subr.mxu0 0.0
      %1584 = vmatpush2.msra.mxu0 0.0
      %1585 = vmatprep.subr.mxu0 0.0
      %1586 = vmatpush2.msra.mxu0 0.0
      %1587 = vmatprep.subr.mxu0 0.0
      %1588 = vmatpush2.msra.mxu0 0.0
      %1589 = vmatprep.subr.mxu0 0.0
      %1590 = vmatpush2.msra.mxu0 0.0
      %1591 = vmatprep.subr.mxu0 0.0
      %1592 = vmatpush2.msra.mxu0 0.0
      %1593 = vmatprep.subr.mxu0 0.0
      %1594 = vmatpush2.msra.mxu0 0.0
      %1595 = vmatprep.subr.mxu0 0.0
      %1596 = vmatpush2.msra.mxu0 0.0
      %1597 = vmatprep.subr.mxu0 0.0
      %1598 = vmatpush2.msra.mxu0 0.0
      %1599 = vmatprep.subr.mxu0 0.0
      %1600 = vmatpush2.msra.mxu0 0.0
      %1601 = vmatprep.subr.mxu0 0.0
      %1602 = vmatpush2.msra.mxu0 0.0
      %1603 = vmatprep.subr.mxu0 0.0
      %1604 = vmatpush2.msra.mxu0 0.0
      %1605 = vmatprep.subr.mxu0 0.0
      %1606 = vmatpush2.msra.mxu0 0.0
      %1607 = vmatprep.subr.mxu0 0.0
      %1608 = vmatpush2.msra.mxu0 0.0
      %1609 = vmatprep.subr.mxu0 0.0
      %1610 = vmatpush2.msra.mxu0 0.0
      %1611 = vmatprep.mubr.f32.mxu0 0.0
      %1612 = vmatmul.mubr.f32.gmra.mxu0 %v314
      %v1613 = vpop.f32.mrf.mxu0
      %v1614 = vadd.f32 0.0, %v1613
      %v1615 = vpop.f32.mrf.mxu0
      %1616 = vdwg.mxu0
      %v1617 = vmax.f32 %v1544, %v1614
      %1618 = vmatprep.subr.mxu0 0.0
      %1619 = vmatpush1.msra.mxu0 0.0
      %1620 = vmatprep.subr.mxu0 0.0
      %1621 = vmatpush1.msra.mxu0 0.0
      %1622 = vmatprep.subr.mxu0 0.0
      %1623 = vmatpush1.msra.mxu0 %v1475
      %1624 = vmatprep.subr.mxu0 0.0
      %1625 = vmatpush1.msra.mxu0 %v1472
      %1626 = vmatprep.subr.mxu0 0.0
      %1627 = vmatpush1.msra.mxu0 %v1471
      %1628 = vmatprep.subr.mxu0 0.0
      %1629 = vmatpush1.msra.mxu0 %v1470
      %1630 = vmatprep.subr.mxu0 0.0
      %1631 = vmatpush1.msra.mxu0 %v1469
      %1632 = vmatprep.subr.mxu0 0.0
      %1633 = vmatpush1.msra.mxu0 %v1468
      %1634 = vmatprep.subr.mxu0 0.0
      %1635 = vmatpush1.msra.mxu0 %v1467
      %1636 = vmatprep.subr.mxu0 0.0
      %1637 = vmatpush1.msra.mxu0 %v1466
      %1638 = vmatprep.subr.mxu0 0.0
      %1639 = vmatpush1.msra.mxu0 %v1465
      %1640 = vmatprep.subr.mxu0 0.0
      %1641 = vmatpush1.msra.mxu0 %v1464
      %1642 = vmatprep.subr.mxu0 0.0
      %1643 = vmatpush1.msra.mxu0 %v1463
      %1644 = vmatprep.subr.mxu0 0.0
      %1645 = vmatpush1.msra.mxu0 %v1462
      %1646 = vmatprep.subr.mxu0 0.0
      %1647 = vmatpush1.msra.mxu0 %v1461
      %1648 = vmatprep.subr.mxu0 0.0
      %1649 = vmatpush1.msra.mxu0 %v1460
      %1650 = vmatprep.subr.mxu0 0.0
      %1651 = vmatpush2.msra.mxu0 0.0
      %1652 = vmatprep.subr.mxu0 0.0
      %1653 = vmatpush2.msra.mxu0 0.0
      %1654 = vmatprep.subr.mxu0 0.0
      %1655 = vmatpush2.msra.mxu0 0.0
      %1656 = vmatprep.subr.mxu0 0.0
      %1657 = vmatpush2.msra.mxu0 0.0
      %1658 = vmatprep.subr.mxu0 0.0
      %1659 = vmatpush2.msra.mxu0 0.0
      %1660 = vmatprep.subr.mxu0 0.0
      %1661 = vmatpush2.msra.mxu0 0.0
      %1662 = vmatprep.subr.mxu0 0.0
      %1663 = vmatpush2.msra.mxu0 0.0
      %1664 = vmatprep.subr.mxu0 0.0
      %1665 = vmatpush2.msra.mxu0 0.0
      %1666 = vmatprep.subr.mxu0 0.0
      %1667 = vmatpush2.msra.mxu0 0.0
      %1668 = vmatprep.subr.mxu0 0.0
      %1669 = vmatpush2.msra.mxu0 0.0
      %1670 = vmatprep.subr.mxu0 0.0
      %1671 = vmatpush2.msra.mxu0 0.0
      %1672 = vmatprep.subr.mxu0 0.0
      %1673 = vmatpush2.msra.mxu0 0.0
      %1674 = vmatprep.subr.mxu0 0.0
      %1675 = vmatpush2.msra.mxu0 0.0
      %1676 = vmatprep.subr.mxu0 0.0
      %1677 = vmatpush2.msra.mxu0 0.0
      %1678 = vmatprep.subr.mxu0 0.0
      %1679 = vmatpush2.msra.mxu0 0.0
      %1680 = vmatprep.subr.mxu0 0.0
      %1681 = vmatpush2.msra.mxu0 0.0
      %1682 = vmatprep.mubr.f32.mxu0 0.0
      %1683 = vmatmul.mubr.f32.gmra.mxu0 %v388
      %v1684 = vpop.f32.mrf.mxu0
      %v1685 = vadd.f32 0.0, %v1684
      %v1686 = vpop.f32.mrf.mxu0
      %1687 = vdwg.mxu0
      %v1688 = vmax.f32 %v1617, %v1685
      %1689 = vmatprep.subr.mxu0 0.0
      %1690 = vmatpush1.msra.mxu0 0.0
      %1691 = vmatprep.subr.mxu0 0.0
      %1692 = vmatpush1.msra.mxu0 0.0
      %1693 = vmatprep.subr.mxu0 0.0
      %1694 = vmatpush1.msra.mxu0 %v1475
      %1695 = vmatprep.subr.mxu0 0.0
      %1696 = vmatpush1.msra.mxu0 %v1472
      %1697 = vmatprep.subr.mxu0 0.0
      %1698 = vmatpush1.msra.mxu0 %v1471
      %1699 = vmatprep.subr.mxu0 0.0
      %1700 = vmatpush1.msra.mxu0 %v1470
      %1701 = vmatprep.subr.mxu0 0.0
      %1702 = vmatpush1.msra.mxu0 %v1469
      %1703 = vmatprep.subr.mxu0 0.0
      %1704 = vmatpush1.msra.mxu0 %v1468
      %1705 = vmatprep.subr.mxu0 0.0
      %1706 = vmatpush1.msra.mxu0 %v1467
      %1707 = vmatprep.subr.mxu0 0.0
      %1708 = vmatpush1.msra.mxu0 %v1466
      %1709 = vmatprep.subr.mxu0 0.0
      %1710 = vmatpush1.msra.mxu0 %v1465
      %1711 = vmatprep.subr.mxu0 0.0
      %1712 = vmatpush1.msra.mxu0 %v1464
      %1713 = vmatprep.subr.mxu0 0.0
      %1714 = vmatpush1.msra.mxu0 %v1463
      %1715 = vmatprep.subr.mxu0 0.0
      %1716 = vmatpush1.msra.mxu0 %v1462
      %1717 = vmatprep.subr.mxu0 0.0
      %1718 = vmatpush1.msra.mxu0 %v1461
      %1719 = vmatprep.subr.mxu0 0.0
      %1720 = vmatpush1.msra.mxu0 %v1460
      %1721 = vmatprep.subr.mxu0 0.0
      %1722 = vmatpush2.msra.mxu0 0.0
      %1723 = vmatprep.subr.mxu0 0.0
      %1724 = vmatpush2.msra.mxu0 0.0
      %1725 = vmatprep.subr.mxu0 0.0
      %1726 = vmatpush2.msra.mxu0 0.0
      %1727 = vmatprep.subr.mxu0 0.0
      %1728 = vmatpush2.msra.mxu0 0.0
      %1729 = vmatprep.subr.mxu0 0.0
      %1730 = vmatpush2.msra.mxu0 0.0
      %1731 = vmatprep.subr.mxu0 0.0
      %1732 = vmatpush2.msra.mxu0 0.0
      %1733 = vmatprep.subr.mxu0 0.0
      %1734 = vmatpush2.msra.mxu0 0.0
      %1735 = vmatprep.subr.mxu0 0.0
      %1736 = vmatpush2.msra.mxu0 0.0
      %1737 = vmatprep.subr.mxu0 0.0
      %1738 = vmatpush2.msra.mxu0 0.0
      %1739 = vmatprep.subr.mxu0 0.0
      %1740 = vmatpush2.msra.mxu0 0.0
      %1741 = vmatprep.subr.mxu0 0.0
      %1742 = vmatpush2.msra.mxu0 0.0
      %1743 = vmatprep.subr.mxu0 0.0
      %1744 = vmatpush2.msra.mxu0 0.0
      %1745 = vmatprep.subr.mxu0 0.0
      %1746 = vmatpush2.msra.mxu0 0.0
      %1747 = vmatprep.subr.mxu0 0.0
      %1748 = vmatpush2.msra.mxu0 0.0
      %1749 = vmatprep.subr.mxu0 0.0
      %1750 = vmatpush2.msra.mxu0 0.0
      %1751 = vmatprep.subr.mxu0 0.0
      %1752 = vmatpush2.msra.mxu0 0.0
      %1753 = vmatprep.mubr.f32.mxu0 0.0
      %1754 = vmatmul.mubr.f32.gmra.mxu0 %v462
      %v1755 = vpop.f32.mrf.mxu0
      %v1756 = vadd.f32 0.0, %v1755
      %v1757 = vpop.f32.mrf.mxu0
      %1758 = vdwg.mxu0
      %v1759 = vmax.f32 %v1688, %v1756
      %v1760 = vadd.f32 %v1759, %v538
      %v1761 = vmax.f32 %v1760, 0.0
      %s1762 = scalar_lea.vmem %s211, 32
      %1763 = vst.msk [vmem:[%s1762] sm:$0x3f] %vm542, %v1761
      %s1764 = scalar_lea.vmem %s201, 560
      %v1765 = vld [vmem:[%s1764] sm:$0xff]
      %v1766 = vld [vmem:[%s1764 + $0x8] sm:$0xff]
      %v1767 = vld [vmem:[%s1764 + $0x10] sm:$0xff]
      %v1768 = vld [vmem:[%s1764 + $0x18] sm:$0xff]
      %v1769 = vld [vmem:[%s1764 + $0x20] sm:$0xff]
      %v1770 = vld [vmem:[%s1764 + $0x28] sm:$0xff]
      %v1771 = vld [vmem:[%s1764 + $0x30] sm:$0xff]
      %v1772 = vld [vmem:[%s1764 + $0x38] sm:$0xff]
      %v1773 = vld [vmem:[%s1764 + $0x40] sm:$0xff]
      %v1774 = vld [vmem:[%s1764 + $0x48] sm:$0xff]
      %v1775 = vld [vmem:[%s1764 + $0x50] sm:$0xff]
      %v1776 = vld [vmem:[%s1764 + $0x58] sm:$0xff]
      %v1777 = vld [vmem:[%s1764 + $0x60] sm:$0xff]
      %v1778 = vld [vmem:[%s1764 + $0x68] sm:$0xf]
      %v1780 = vsel %vm239, %v1778, 0
      %1782 = vmatprep.subr.mxu0 0.0
      %1783 = vmatpush1.msra.mxu0 0.0
      %1784 = vmatprep.subr.mxu0 0.0
      %1785 = vmatpush1.msra.mxu0 0.0
      %1786 = vmatprep.subr.mxu0 0.0
      %1787 = vmatpush1.msra.mxu0 %v1780
      %1788 = vmatprep.subr.mxu0 0.0
      %1789 = vmatpush1.msra.mxu0 %v1777
      %1790 = vmatprep.subr.mxu0 0.0
      %1791 = vmatpush1.msra.mxu0 %v1776
      %1792 = vmatprep.subr.mxu0 0.0
      %1793 = vmatpush1.msra.mxu0 %v1775
      %1794 = vmatprep.subr.mxu0 0.0
      %1795 = vmatpush1.msra.mxu0 %v1774
      %1796 = vmatprep.subr.mxu0 0.0
      %1797 = vmatpush1.msra.mxu0 %v1773
      %1798 = vmatprep.subr.mxu0 0.0
      %1799 = vmatpush1.msra.mxu0 %v1772
      %1800 = vmatprep.subr.mxu0 0.0
      %1801 = vmatpush1.msra.mxu0 %v1771
      %1802 = vmatprep.subr.mxu0 0.0
      %1803 = vmatpush1.msra.mxu0 %v1770
      %1804 = vmatprep.subr.mxu0 0.0
      %1805 = vmatpush1.msra.mxu0 %v1769
      %1806 = vmatprep.subr.mxu0 0.0
      %1807 = vmatpush1.msra.mxu0 %v1768
      %1808 = vmatprep.subr.mxu0 0.0
      %1809 = vmatpush1.msra.mxu0 %v1767
      %1810 = vmatprep.subr.mxu0 0.0
      %1811 = vmatpush1.msra.mxu0 %v1766
      %1812 = vmatprep.subr.mxu0 0.0
      %1813 = vmatpush1.msra.mxu0 %v1765
      %1814 = vmatprep.subr.mxu0 0.0
      %1815 = vmatpush2.msra.mxu0 0.0
      %1816 = vmatprep.subr.mxu0 0.0
      %1817 = vmatpush2.msra.mxu0 0.0
      %1818 = vmatprep.subr.mxu0 0.0
      %1819 = vmatpush2.msra.mxu0 0.0
      %1820 = vmatprep.subr.mxu0 0.0
      %1821 = vmatpush2.msra.mxu0 0.0
      %1822 = vmatprep.subr.mxu0 0.0
      %1823 = vmatpush2.msra.mxu0 0.0
      %1824 = vmatprep.subr.mxu0 0.0
      %1825 = vmatpush2.msra.mxu0 0.0
      %1826 = vmatprep.subr.mxu0 0.0
      %1827 = vmatpush2.msra.mxu0 0.0
      %1828 = vmatprep.subr.mxu0 0.0
      %1829 = vmatpush2.msra.mxu0 0.0
      %1830 = vmatprep.subr.mxu0 0.0
      %1831 = vmatpush2.msra.mxu0 0.0
      %1832 = vmatprep.subr.mxu0 0.0
      %1833 = vmatpush2.msra.mxu0 0.0
      %1834 = vmatprep.subr.mxu0 0.0
      %1835 = vmatpush2.msra.mxu0 0.0
      %1836 = vmatprep.subr.mxu0 0.0
      %1837 = vmatpush2.msra.mxu0 0.0
      %1838 = vmatprep.subr.mxu0 0.0
      %1839 = vmatpush2.msra.mxu0 0.0
      %1840 = vmatprep.subr.mxu0 0.0
      %1841 = vmatpush2.msra.mxu0 0.0
      %1842 = vmatprep.subr.mxu0 0.0
      %1843 = vmatpush2.msra.mxu0 0.0
      %1844 = vmatprep.subr.mxu0 0.0
      %1845 = vmatpush2.msra.mxu0 0.0
      %1846 = vmatprep.mubr.f32.mxu0 0.0
      %1847 = vmatmul.mubr.f32.gmra.mxu0 %v237
      %v1848 = vpop.f32.mrf.mxu0
      %v1849 = vadd.f32 0.0, %v1848
      %v1850 = vpop.f32.mrf.mxu0
      %1851 = vdwg.mxu0
      %1852 = vmatprep.subr.mxu0 0.0
      %1853 = vmatpush1.msra.mxu0 0.0
      %1854 = vmatprep.subr.mxu0 0.0
      %1855 = vmatpush1.msra.mxu0 0.0
      %1856 = vmatprep.subr.mxu0 0.0
      %1857 = vmatpush1.msra.mxu0 %v1780
      %1858 = vmatprep.subr.mxu0 0.0
      %1859 = vmatpush1.msra.mxu0 %v1777
      %1860 = vmatprep.subr.mxu0 0.0
      %1861 = vmatpush1.msra.mxu0 %v1776
      %1862 = vmatprep.subr.mxu0 0.0
      %1863 = vmatpush1.msra.mxu0 %v1775
      %1864 = vmatprep.subr.mxu0 0.0
      %1865 = vmatpush1.msra.mxu0 %v1774
      %1866 = vmatprep.subr.mxu0 0.0
      %1867 = vmatpush1.msra.mxu0 %v1773
      %1868 = vmatprep.subr.mxu0 0.0
      %1869 = vmatpush1.msra.mxu0 %v1772
      %1870 = vmatprep.subr.mxu0 0.0
      %1871 = vmatpush1.msra.mxu0 %v1771
      %1872 = vmatprep.subr.mxu0 0.0
      %1873 = vmatpush1.msra.mxu0 %v1770
      %1874 = vmatprep.subr.mxu0 0.0
      %1875 = vmatpush1.msra.mxu0 %v1769
      %1876 = vmatprep.subr.mxu0 0.0
      %1877 = vmatpush1.msra.mxu0 %v1768
      %1878 = vmatprep.subr.mxu0 0.0
      %1879 = vmatpush1.msra.mxu0 %v1767
      %1880 = vmatprep.subr.mxu0 0.0
      %1881 = vmatpush1.msra.mxu0 %v1766
      %1882 = vmatprep.subr.mxu0 0.0
      %1883 = vmatpush1.msra.mxu0 %v1765
      %1884 = vmatprep.subr.mxu0 0.0
      %1885 = vmatpush2.msra.mxu0 0.0
      %1886 = vmatprep.subr.mxu0 0.0
      %1887 = vmatpush2.msra.mxu0 0.0
      %1888 = vmatprep.subr.mxu0 0.0
      %1889 = vmatpush2.msra.mxu0 0.0
      %1890 = vmatprep.subr.mxu0 0.0
      %1891 = vmatpush2.msra.mxu0 0.0
      %1892 = vmatprep.subr.mxu0 0.0
      %1893 = vmatpush2.msra.mxu0 0.0
      %1894 = vmatprep.subr.mxu0 0.0
      %1895 = vmatpush2.msra.mxu0 0.0
      %1896 = vmatprep.subr.mxu0 0.0
      %1897 = vmatpush2.msra.mxu0 0.0
      %1898 = vmatprep.subr.mxu0 0.0
      %1899 = vmatpush2.msra.mxu0 0.0
      %1900 = vmatprep.subr.mxu0 0.0
      %1901 = vmatpush2.msra.mxu0 0.0
      %1902 = vmatprep.subr.mxu0 0.0
      %1903 = vmatpush2.msra.mxu0 0.0
      %1904 = vmatprep.subr.mxu0 0.0
      %1905 = vmatpush2.msra.mxu0 0.0
      %1906 = vmatprep.subr.mxu0 0.0
      %1907 = vmatpush2.msra.mxu0 0.0
      %1908 = vmatprep.subr.mxu0 0.0
      %1909 = vmatpush2.msra.mxu0 0.0
      %1910 = vmatprep.subr.mxu0 0.0
      %1911 = vmatpush2.msra.mxu0 0.0
      %1912 = vmatprep.subr.mxu0 0.0
      %1913 = vmatpush2.msra.mxu0 0.0
      %1914 = vmatprep.subr.mxu0 0.0
      %1915 = vmatpush2.msra.mxu0 0.0
      %1916 = vmatprep.mubr.f32.mxu0 0.0
      %1917 = vmatmul.mubr.f32.gmra.mxu0 %v314
      %v1918 = vpop.f32.mrf.mxu0
      %v1919 = vadd.f32 0.0, %v1918
      %v1920 = vpop.f32.mrf.mxu0
      %1921 = vdwg.mxu0
      %v1922 = vmax.f32 %v1849, %v1919
      %1923 = vmatprep.subr.mxu0 0.0
      %1924 = vmatpush1.msra.mxu0 0.0
      %1925 = vmatprep.subr.mxu0 0.0
      %1926 = vmatpush1.msra.mxu0 0.0
      %1927 = vmatprep.subr.mxu0 0.0
      %1928 = vmatpush1.msra.mxu0 %v1780
      %1929 = vmatprep.subr.mxu0 0.0
      %1930 = vmatpush1.msra.mxu0 %v1777
      %1931 = vmatprep.subr.mxu0 0.0
      %1932 = vmatpush1.msra.mxu0 %v1776
      %1933 = vmatprep.subr.mxu0 0.0
      %1934 = vmatpush1.msra.mxu0 %v1775
      %1935 = vmatprep.subr.mxu0 0.0
      %1936 = vmatpush1.msra.mxu0 %v1774
      %1937 = vmatprep.subr.mxu0 0.0
      %1938 = vmatpush1.msra.mxu0 %v1773
      %1939 = vmatprep.subr.mxu0 0.0
      %1940 = vmatpush1.msra.mxu0 %v1772
      %1941 = vmatprep.subr.mxu0 0.0
      %1942 = vmatpush1.msra.mxu0 %v1771
      %1943 = vmatprep.subr.mxu0 0.0
      %1944 = vmatpush1.msra.mxu0 %v1770
      %1945 = vmatprep.subr.mxu0 0.0
      %1946 = vmatpush1.msra.mxu0 %v1769
      %1947 = vmatprep.subr.mxu0 0.0
      %1948 = vmatpush1.msra.mxu0 %v1768
      %1949 = vmatprep.subr.mxu0 0.0
      %1950 = vmatpush1.msra.mxu0 %v1767
      %1951 = vmatprep.subr.mxu0 0.0
      %1952 = vmatpush1.msra.mxu0 %v1766
      %1953 = vmatprep.subr.mxu0 0.0
      %1954 = vmatpush1.msra.mxu0 %v1765
      %1955 = vmatprep.subr.mxu0 0.0
      %1956 = vmatpush2.msra.mxu0 0.0
      %1957 = vmatprep.subr.mxu0 0.0
      %1958 = vmatpush2.msra.mxu0 0.0
      %1959 = vmatprep.subr.mxu0 0.0
      %1960 = vmatpush2.msra.mxu0 0.0
      %1961 = vmatprep.subr.mxu0 0.0
      %1962 = vmatpush2.msra.mxu0 0.0
      %1963 = vmatprep.subr.mxu0 0.0
      %1964 = vmatpush2.msra.mxu0 0.0
      %1965 = vmatprep.subr.mxu0 0.0
      %1966 = vmatpush2.msra.mxu0 0.0
      %1967 = vmatprep.subr.mxu0 0.0
      %1968 = vmatpush2.msra.mxu0 0.0
      %1969 = vmatprep.subr.mxu0 0.0
      %1970 = vmatpush2.msra.mxu0 0.0
      %1971 = vmatprep.subr.mxu0 0.0
      %1972 = vmatpush2.msra.mxu0 0.0
      %1973 = vmatprep.subr.mxu0 0.0
      %1974 = vmatpush2.msra.mxu0 0.0
      %1975 = vmatprep.subr.mxu0 0.0
      %1976 = vmatpush2.msra.mxu0 0.0
      %1977 = vmatprep.subr.mxu0 0.0
      %1978 = vmatpush2.msra.mxu0 0.0
      %1979 = vmatprep.subr.mxu0 0.0
      %1980 = vmatpush2.msra.mxu0 0.0
      %1981 = vmatprep.subr.mxu0 0.0
      %1982 = vmatpush2.msra.mxu0 0.0
      %1983 = vmatprep.subr.mxu0 0.0
      %1984 = vmatpush2.msra.mxu0 0.0
      %1985 = vmatprep.subr.mxu0 0.0
      %1986 = vmatpush2.msra.mxu0 0.0
      %1987 = vmatprep.mubr.f32.mxu0 0.0
      %1988 = vmatmul.mubr.f32.gmra.mxu0 %v388
      %v1989 = vpop.f32.mrf.mxu0
      %v1990 = vadd.f32 0.0, %v1989
      %v1991 = vpop.f32.mrf.mxu0
      %1992 = vdwg.mxu0
      %v1993 = vmax.f32 %v1922, %v1990
      %1994 = vmatprep.subr.mxu0 0.0
      %1995 = vmatpush1.msra.mxu0 0.0
      %1996 = vmatprep.subr.mxu0 0.0
      %1997 = vmatpush1.msra.mxu0 0.0
      %1998 = vmatprep.subr.mxu0 0.0
      %1999 = vmatpush1.msra.mxu0 %v1780
      %2000 = vmatprep.subr.mxu0 0.0
      %2001 = vmatpush1.msra.mxu0 %v1777
      %2002 = vmatprep.subr.mxu0 0.0
      %2003 = vmatpush1.msra.mxu0 %v1776
      %2004 = vmatprep.subr.mxu0 0.0
      %2005 = vmatpush1.msra.mxu0 %v1775
      %2006 = vmatprep.subr.mxu0 0.0
      %2007 = vmatpush1.msra.mxu0 %v1774
      %2008 = vmatprep.subr.mxu0 0.0
      %2009 = vmatpush1.msra.mxu0 %v1773
      %2010 = vmatprep.subr.mxu0 0.0
      %2011 = vmatpush1.msra.mxu0 %v1772
      %2012 = vmatprep.subr.mxu0 0.0
      %2013 = vmatpush1.msra.mxu0 %v1771
      %2014 = vmatprep.subr.mxu0 0.0
      %2015 = vmatpush1.msra.mxu0 %v1770
      %2016 = vmatprep.subr.mxu0 0.0
      %2017 = vmatpush1.msra.mxu0 %v1769
      %2018 = vmatprep.subr.mxu0 0.0
      %2019 = vmatpush1.msra.mxu0 %v1768
      %2020 = vmatprep.subr.mxu0 0.0
      %2021 = vmatpush1.msra.mxu0 %v1767
      %2022 = vmatprep.subr.mxu0 0.0
      %2023 = vmatpush1.msra.mxu0 %v1766
      %2024 = vmatprep.subr.mxu0 0.0
      %2025 = vmatpush1.msra.mxu0 %v1765
      %2026 = vmatprep.subr.mxu0 0.0
      %2027 = vmatpush2.msra.mxu0 0.0
      %2028 = vmatprep.subr.mxu0 0.0
      %2029 = vmatpush2.msra.mxu0 0.0
      %2030 = vmatprep.subr.mxu0 0.0
      %2031 = vmatpush2.msra.mxu0 0.0
      %2032 = vmatprep.subr.mxu0 0.0
      %2033 = vmatpush2.msra.mxu0 0.0
      %2034 = vmatprep.subr.mxu0 0.0
      %2035 = vmatpush2.msra.mxu0 0.0
      %2036 = vmatprep.subr.mxu0 0.0
      %2037 = vmatpush2.msra.mxu0 0.0
      %2038 = vmatprep.subr.mxu0 0.0
      %2039 = vmatpush2.msra.mxu0 0.0
      %2040 = vmatprep.subr.mxu0 0.0
      %2041 = vmatpush2.msra.mxu0 0.0
      %2042 = vmatprep.subr.mxu0 0.0
      %2043 = vmatpush2.msra.mxu0 0.0
      %2044 = vmatprep.subr.mxu0 0.0
      %2045 = vmatpush2.msra.mxu0 0.0
      %2046 = vmatprep.subr.mxu0 0.0
      %2047 = vmatpush2.msra.mxu0 0.0
      %2048 = vmatprep.subr.mxu0 0.0
      %2049 = vmatpush2.msra.mxu0 0.0
      %2050 = vmatprep.subr.mxu0 0.0
      %2051 = vmatpush2.msra.mxu0 0.0
      %2052 = vmatprep.subr.mxu0 0.0
      %2053 = vmatpush2.msra.mxu0 0.0
      %2054 = vmatprep.subr.mxu0 0.0
      %2055 = vmatpush2.msra.mxu0 0.0
      %2056 = vmatprep.subr.mxu0 0.0
      %2057 = vmatpush2.msra.mxu0 0.0
      %2058 = vmatprep.mubr.f32.mxu0 0.0
      %2059 = vmatmul.mubr.f32.gmra.mxu0 %v462
      %v2060 = vpop.f32.mrf.mxu0
      %v2061 = vadd.f32 0.0, %v2060
      %v2062 = vpop.f32.mrf.mxu0
      %2063 = vdwg.mxu0
      %v2064 = vmax.f32 %v1993, %v2061
      %v2065 = vadd.f32 %v2064, %v538
      %v2066 = vmax.f32 %v2065, 0.0
      %s2067 = scalar_lea.vmem %s211, 40
      %2068 = vst.msk [vmem:[%s2067] sm:$0x3f] %vm542, %v2066
      %s2069 = scalar_lea.vmem %s201, 672
      %v2070 = vld [vmem:[%s2069] sm:$0xff]
      %v2071 = vld [vmem:[%s2069 + $0x8] sm:$0xff]
      %v2072 = vld [vmem:[%s2069 + $0x10] sm:$0xff]
      %v2073 = vld [vmem:[%s2069 + $0x18] sm:$0xff]
      %v2074 = vld [vmem:[%s2069 + $0x20] sm:$0xff]
      %v2075 = vld [vmem:[%s2069 + $0x28] sm:$0xff]
      %v2076 = vld [vmem:[%s2069 + $0x30] sm:$0xff]
      %v2077 = vld [vmem:[%s2069 + $0x38] sm:$0xff]
      %v2078 = vld [vmem:[%s2069 + $0x40] sm:$0xff]
      %v2079 = vld [vmem:[%s2069 + $0x48] sm:$0xff]
      %v2080 = vld [vmem:[%s2069 + $0x50] sm:$0xff]
      %v2081 = vld [vmem:[%s2069 + $0x58] sm:$0xff]
      %v2082 = vld [vmem:[%s2069 + $0x60] sm:$0xff]
      %v2083 = vld [vmem:[%s2069 + $0x68] sm:$0xf]
      %v2085 = vsel %vm239, %v2083, 0
      %2087 = vmatprep.subr.mxu0 0.0
      %2088 = vmatpush1.msra.mxu0 0.0
      %2089 = vmatprep.subr.mxu0 0.0
      %2090 = vmatpush1.msra.mxu0 0.0
      %2091 = vmatprep.subr.mxu0 0.0
      %2092 = vmatpush1.msra.mxu0 %v2085
      %2093 = vmatprep.subr.mxu0 0.0
      %2094 = vmatpush1.msra.mxu0 %v2082
      %2095 = vmatprep.subr.mxu0 0.0
      %2096 = vmatpush1.msra.mxu0 %v2081
      %2097 = vmatprep.subr.mxu0 0.0
      %2098 = vmatpush1.msra.mxu0 %v2080
      %2099 = vmatprep.subr.mxu0 0.0
      %2100 = vmatpush1.msra.mxu0 %v2079
      %2101 = vmatprep.subr.mxu0 0.0
      %2102 = vmatpush1.msra.mxu0 %v2078
      %2103 = vmatprep.subr.mxu0 0.0
      %2104 = vmatpush1.msra.mxu0 %v2077
      %2105 = vmatprep.subr.mxu0 0.0
      %2106 = vmatpush1.msra.mxu0 %v2076
      %2107 = vmatprep.subr.mxu0 0.0
      %2108 = vmatpush1.msra.mxu0 %v2075
      %2109 = vmatprep.subr.mxu0 0.0
      %2110 = vmatpush1.msra.mxu0 %v2074
      %2111 = vmatprep.subr.mxu0 0.0
      %2112 = vmatpush1.msra.mxu0 %v2073
      %2113 = vmatprep.subr.mxu0 0.0
      %2114 = vmatpush1.msra.mxu0 %v2072
      %2115 = vmatprep.subr.mxu0 0.0
      %2116 = vmatpush1.msra.mxu0 %v2071
      %2117 = vmatprep.subr.mxu0 0.0
      %2118 = vmatpush1.msra.mxu0 %v2070
      %2119 = vmatprep.subr.mxu0 0.0
      %2120 = vmatpush2.msra.mxu0 0.0
      %2121 = vmatprep.subr.mxu0 0.0
      %2122 = vmatpush2.msra.mxu0 0.0
      %2123 = vmatprep.subr.mxu0 0.0
      %2124 = vmatpush2.msra.mxu0 0.0
      %2125 = vmatprep.subr.mxu0 0.0
      %2126 = vmatpush2.msra.mxu0 0.0
      %2127 = vmatprep.subr.mxu0 0.0
      %2128 = vmatpush2.msra.mxu0 0.0
      %2129 = vmatprep.subr.mxu0 0.0
      %2130 = vmatpush2.msra.mxu0 0.0
      %2131 = vmatprep.subr.mxu0 0.0
      %2132 = vmatpush2.msra.mxu0 0.0
      %2133 = vmatprep.subr.mxu0 0.0
      %2134 = vmatpush2.msra.mxu0 0.0
      %2135 = vmatprep.subr.mxu0 0.0
      %2136 = vmatpush2.msra.mxu0 0.0
      %2137 = vmatprep.subr.mxu0 0.0
      %2138 = vmatpush2.msra.mxu0 0.0
      %2139 = vmatprep.subr.mxu0 0.0
      %2140 = vmatpush2.msra.mxu0 0.0
      %2141 = vmatprep.subr.mxu0 0.0
      %2142 = vmatpush2.msra.mxu0 0.0
      %2143 = vmatprep.subr.mxu0 0.0
      %2144 = vmatpush2.msra.mxu0 0.0
      %2145 = vmatprep.subr.mxu0 0.0
      %2146 = vmatpush2.msra.mxu0 0.0
      %2147 = vmatprep.subr.mxu0 0.0
      %2148 = vmatpush2.msra.mxu0 0.0
      %2149 = vmatprep.subr.mxu0 0.0
      %2150 = vmatpush2.msra.mxu0 0.0
      %2151 = vmatprep.mubr.f32.mxu0 0.0
      %2152 = vmatmul.mubr.f32.gmra.mxu0 %v237
      %v2153 = vpop.f32.mrf.mxu0
      %v2154 = vadd.f32 0.0, %v2153
      %v2155 = vpop.f32.mrf.mxu0
      %2156 = vdwg.mxu0
      %2157 = vmatprep.subr.mxu0 0.0
      %2158 = vmatpush1.msra.mxu0 0.0
      %2159 = vmatprep.subr.mxu0 0.0
      %2160 = vmatpush1.msra.mxu0 0.0
      %2161 = vmatprep.subr.mxu0 0.0
      %2162 = vmatpush1.msra.mxu0 %v2085
      %2163 = vmatprep.subr.mxu0 0.0
      %2164 = vmatpush1.msra.mxu0 %v2082
      %2165 = vmatprep.subr.mxu0 0.0
      %2166 = vmatpush1.msra.mxu0 %v2081
      %2167 = vmatprep.subr.mxu0 0.0
      %2168 = vmatpush1.msra.mxu0 %v2080
      %2169 = vmatprep.subr.mxu0 0.0
      %2170 = vmatpush1.msra.mxu0 %v2079
      %2171 = vmatprep.subr.mxu0 0.0
      %2172 = vmatpush1.msra.mxu0 %v2078
      %2173 = vmatprep.subr.mxu0 0.0
      %2174 = vmatpush1.msra.mxu0 %v2077
      %2175 = vmatprep.subr.mxu0 0.0
      %2176 = vmatpush1.msra.mxu0 %v2076
      %2177 = vmatprep.subr.mxu0 0.0
      %2178 = vmatpush1.msra.mxu0 %v2075
      %2179 = vmatprep.subr.mxu0 0.0
      %2180 = vmatpush1.msra.mxu0 %v2074
      %2181 = vmatprep.subr.mxu0 0.0
      %2182 = vmatpush1.msra.mxu0 %v2073
      %2183 = vmatprep.subr.mxu0 0.0
      %2184 = vmatpush1.msra.mxu0 %v2072
      %2185 = vmatprep.subr.mxu0 0.0
      %2186 = vmatpush1.msra.mxu0 %v2071
      %2187 = vmatprep.subr.mxu0 0.0
      %2188 = vmatpush1.msra.mxu0 %v2070
      %2189 = vmatprep.subr.mxu0 0.0
      %2190 = vmatpush2.msra.mxu0 0.0
      %2191 = vmatprep.subr.mxu0 0.0
      %2192 = vmatpush2.msra.mxu0 0.0
      %2193 = vmatprep.subr.mxu0 0.0
      %2194 = vmatpush2.msra.mxu0 0.0
      %2195 = vmatprep.subr.mxu0 0.0
      %2196 = vmatpush2.msra.mxu0 0.0
      %2197 = vmatprep.subr.mxu0 0.0
      %2198 = vmatpush2.msra.mxu0 0.0
      %2199 = vmatprep.subr.mxu0 0.0
      %2200 = vmatpush2.msra.mxu0 0.0
      %2201 = vmatprep.subr.mxu0 0.0
      %2202 = vmatpush2.msra.mxu0 0.0
      %2203 = vmatprep.subr.mxu0 0.0
      %2204 = vmatpush2.msra.mxu0 0.0
      %2205 = vmatprep.subr.mxu0 0.0
      %2206 = vmatpush2.msra.mxu0 0.0
      %2207 = vmatprep.subr.mxu0 0.0
      %2208 = vmatpush2.msra.mxu0 0.0
      %2209 = vmatprep.subr.mxu0 0.0
      %2210 = vmatpush2.msra.mxu0 0.0
      %2211 = vmatprep.subr.mxu0 0.0
      %2212 = vmatpush2.msra.mxu0 0.0
      %2213 = vmatprep.subr.mxu0 0.0
      %2214 = vmatpush2.msra.mxu0 0.0
      %2215 = vmatprep.subr.mxu0 0.0
      %2216 = vmatpush2.msra.mxu0 0.0
      %2217 = vmatprep.subr.mxu0 0.0
      %2218 = vmatpush2.msra.mxu0 0.0
      %2219 = vmatprep.subr.mxu0 0.0
      %2220 = vmatpush2.msra.mxu0 0.0
      %2221 = vmatprep.mubr.f32.mxu0 0.0
      %2222 = vmatmul.mubr.f32.gmra.mxu0 %v314
      %v2223 = vpop.f32.mrf.mxu0
      %v2224 = vadd.f32 0.0, %v2223
      %v2225 = vpop.f32.mrf.mxu0
      %2226 = vdwg.mxu0
      %v2227 = vmax.f32 %v2154, %v2224
      %2228 = vmatprep.subr.mxu0 0.0
      %2229 = vmatpush1.msra.mxu0 0.0
      %2230 = vmatprep.subr.mxu0 0.0
      %2231 = vmatpush1.msra.mxu0 0.0
      %2232 = vmatprep.subr.mxu0 0.0
      %2233 = vmatpush1.msra.mxu0 %v2085
      %2234 = vmatprep.subr.mxu0 0.0
      %2235 = vmatpush1.msra.mxu0 %v2082
      %2236 = vmatprep.subr.mxu0 0.0
      %2237 = vmatpush1.msra.mxu0 %v2081
      %2238 = vmatprep.subr.mxu0 0.0
      %2239 = vmatpush1.msra.mxu0 %v2080
      %2240 = vmatprep.subr.mxu0 0.0
      %2241 = vmatpush1.msra.mxu0 %v2079
      %2242 = vmatprep.subr.mxu0 0.0
      %2243 = vmatpush1.msra.mxu0 %v2078
      %2244 = vmatprep.subr.mxu0 0.0
      %2245 = vmatpush1.msra.mxu0 %v2077
      %2246 = vmatprep.subr.mxu0 0.0
      %2247 = vmatpush1.msra.mxu0 %v2076
      %2248 = vmatprep.subr.mxu0 0.0
      %2249 = vmatpush1.msra.mxu0 %v2075
      %2250 = vmatprep.subr.mxu0 0.0
      %2251 = vmatpush1.msra.mxu0 %v2074
      %2252 = vmatprep.subr.mxu0 0.0
      %2253 = vmatpush1.msra.mxu0 %v2073
      %2254 = vmatprep.subr.mxu0 0.0
      %2255 = vmatpush1.msra.mxu0 %v2072
      %2256 = vmatprep.subr.mxu0 0.0
      %2257 = vmatpush1.msra.mxu0 %v2071
      %2258 = vmatprep.subr.mxu0 0.0
      %2259 = vmatpush1.msra.mxu0 %v2070
      %2260 = vmatprep.subr.mxu0 0.0
      %2261 = vmatpush2.msra.mxu0 0.0
      %2262 = vmatprep.subr.mxu0 0.0
      %2263 = vmatpush2.msra.mxu0 0.0
      %2264 = vmatprep.subr.mxu0 0.0
      %2265 = vmatpush2.msra.mxu0 0.0
      %2266 = vmatprep.subr.mxu0 0.0
      %2267 = vmatpush2.msra.mxu0 0.0
      %2268 = vmatprep.subr.mxu0 0.0
      %2269 = vmatpush2.msra.mxu0 0.0
      %2270 = vmatprep.subr.mxu0 0.0
      %2271 = vmatpush2.msra.mxu0 0.0
      %2272 = vmatprep.subr.mxu0 0.0
      %2273 = vmatpush2.msra.mxu0 0.0
      %2274 = vmatprep.subr.mxu0 0.0
      %2275 = vmatpush2.msra.mxu0 0.0
      %2276 = vmatprep.subr.mxu0 0.0
      %2277 = vmatpush2.msra.mxu0 0.0
      %2278 = vmatprep.subr.mxu0 0.0
      %2279 = vmatpush2.msra.mxu0 0.0
      %2280 = vmatprep.subr.mxu0 0.0
      %2281 = vmatpush2.msra.mxu0 0.0
      %2282 = vmatprep.subr.mxu0 0.0
      %2283 = vmatpush2.msra.mxu0 0.0
      %2284 = vmatprep.subr.mxu0 0.0
      %2285 = vmatpush2.msra.mxu0 0.0
      %2286 = vmatprep.subr.mxu0 0.0
      %2287 = vmatpush2.msra.mxu0 0.0
      %2288 = vmatprep.subr.mxu0 0.0
      %2289 = vmatpush2.msra.mxu0 0.0
      %2290 = vmatprep.subr.mxu0 0.0
      %2291 = vmatpush2.msra.mxu0 0.0
      %2292 = vmatprep.mubr.f32.mxu0 0.0
      %2293 = vmatmul.mubr.f32.gmra.mxu0 %v388
      %v2294 = vpop.f32.mrf.mxu0
      %v2295 = vadd.f32 0.0, %v2294
      %v2296 = vpop.f32.mrf.mxu0
      %2297 = vdwg.mxu0
      %v2298 = vmax.f32 %v2227, %v2295
      %2299 = vmatprep.subr.mxu0 0.0
      %2300 = vmatpush1.msra.mxu0 0.0
      %2301 = vmatprep.subr.mxu0 0.0
      %2302 = vmatpush1.msra.mxu0 0.0
      %2303 = vmatprep.subr.mxu0 0.0
      %2304 = vmatpush1.msra.mxu0 %v2085
      %2305 = vmatprep.subr.mxu0 0.0
      %2306 = vmatpush1.msra.mxu0 %v2082
      %2307 = vmatprep.subr.mxu0 0.0
      %2308 = vmatpush1.msra.mxu0 %v2081
      %2309 = vmatprep.subr.mxu0 0.0
      %2310 = vmatpush1.msra.mxu0 %v2080
      %2311 = vmatprep.subr.mxu0 0.0
      %2312 = vmatpush1.msra.mxu0 %v2079
      %2313 = vmatprep.subr.mxu0 0.0
      %2314 = vmatpush1.msra.mxu0 %v2078
      %2315 = vmatprep.subr.mxu0 0.0
      %2316 = vmatpush1.msra.mxu0 %v2077
      %2317 = vmatprep.subr.mxu0 0.0
      %2318 = vmatpush1.msra.mxu0 %v2076
      %2319 = vmatprep.subr.mxu0 0.0
      %2320 = vmatpush1.msra.mxu0 %v2075
      %2321 = vmatprep.subr.mxu0 0.0
      %2322 = vmatpush1.msra.mxu0 %v2074
      %2323 = vmatprep.subr.mxu0 0.0
      %2324 = vmatpush1.msra.mxu0 %v2073
      %2325 = vmatprep.subr.mxu0 0.0
      %2326 = vmatpush1.msra.mxu0 %v2072
      %2327 = vmatprep.subr.mxu0 0.0
      %2328 = vmatpush1.msra.mxu0 %v2071
      %2329 = vmatprep.subr.mxu0 0.0
      %2330 = vmatpush1.msra.mxu0 %v2070
      %2331 = vmatprep.subr.mxu0 0.0
      %2332 = vmatpush2.msra.mxu0 0.0
      %2333 = vmatprep.subr.mxu0 0.0
      %2334 = vmatpush2.msra.mxu0 0.0
      %2335 = vmatprep.subr.mxu0 0.0
      %2336 = vmatpush2.msra.mxu0 0.0
      %2337 = vmatprep.subr.mxu0 0.0
      %2338 = vmatpush2.msra.mxu0 0.0
      %2339 = vmatprep.subr.mxu0 0.0
      %2340 = vmatpush2.msra.mxu0 0.0
      %2341 = vmatprep.subr.mxu0 0.0
      %2342 = vmatpush2.msra.mxu0 0.0
      %2343 = vmatprep.subr.mxu0 0.0
      %2344 = vmatpush2.msra.mxu0 0.0
      %2345 = vmatprep.subr.mxu0 0.0
      %2346 = vmatpush2.msra.mxu0 0.0
      %2347 = vmatprep.subr.mxu0 0.0
      %2348 = vmatpush2.msra.mxu0 0.0
      %2349 = vmatprep.subr.mxu0 0.0
      %2350 = vmatpush2.msra.mxu0 0.0
      %2351 = vmatprep.subr.mxu0 0.0
      %2352 = vmatpush2.msra.mxu0 0.0
      %2353 = vmatprep.subr.mxu0 0.0
      %2354 = vmatpush2.msra.mxu0 0.0
      %2355 = vmatprep.subr.mxu0 0.0
      %2356 = vmatpush2.msra.mxu0 0.0
      %2357 = vmatprep.subr.mxu0 0.0
      %2358 = vmatpush2.msra.mxu0 0.0
      %2359 = vmatprep.subr.mxu0 0.0
      %2360 = vmatpush2.msra.mxu0 0.0
      %2361 = vmatprep.subr.mxu0 0.0
      %2362 = vmatpush2.msra.mxu0 0.0
      %2363 = vmatprep.mubr.f32.mxu0 0.0
      %2364 = vmatmul.mubr.f32.gmra.mxu0 %v462
      %v2365 = vpop.f32.mrf.mxu0
      %v2366 = vadd.f32 0.0, %v2365
      %v2367 = vpop.f32.mrf.mxu0
      %2368 = vdwg.mxu0
      %v2369 = vmax.f32 %v2298, %v2366
      %v2370 = vadd.f32 %v2369, %v538
      %v2371 = vmax.f32 %v2370, 0.0
      %s2372 = scalar_lea.vmem %s211, 48
      %2373 = vst.msk [vmem:[%s2372] sm:$0x3f] %vm542, %v2371
      %s2374 = scalar_lea.vmem %s201, 784
      %v2375 = vld [vmem:[%s2374] sm:$0xff]
      %v2376 = vld [vmem:[%s2374 + $0x8] sm:$0xff]
      %v2377 = vld [vmem:[%s2374 + $0x10] sm:$0xff]
      %v2378 = vld [vmem:[%s2374 + $0x18] sm:$0xff]
      %v2379 = vld [vmem:[%s2374 + $0x20] sm:$0xff]
      %v2380 = vld [vmem:[%s2374 + $0x28] sm:$0xff]
      %v2381 = vld [vmem:[%s2374 + $0x30] sm:$0xff]
      %v2382 = vld [vmem:[%s2374 + $0x38] sm:$0xff]
      %v2383 = vld [vmem:[%s2374 + $0x40] sm:$0xff]
      %v2384 = vld [vmem:[%s2374 + $0x48] sm:$0xff]
      %v2385 = vld [vmem:[%s2374 + $0x50] sm:$0xff]
      %v2386 = vld [vmem:[%s2374 + $0x58] sm:$0xff]
      %v2387 = vld [vmem:[%s2374 + $0x60] sm:$0xff]
      %v2388 = vld [vmem:[%s2374 + $0x68] sm:$0xf]
      %v2390 = vsel %vm239, %v2388, 0
      %2392 = vmatprep.subr.mxu0 0.0
      %2393 = vmatpush1.msra.mxu0 0.0
      %2394 = vmatprep.subr.mxu0 0.0
      %2395 = vmatpush1.msra.mxu0 0.0
      %2396 = vmatprep.subr.mxu0 0.0
      %2397 = vmatpush1.msra.mxu0 %v2390
      %2398 = vmatprep.subr.mxu0 0.0
      %2399 = vmatpush1.msra.mxu0 %v2387
      %2400 = vmatprep.subr.mxu0 0.0
      %2401 = vmatpush1.msra.mxu0 %v2386
      %2402 = vmatprep.subr.mxu0 0.0
      %2403 = vmatpush1.msra.mxu0 %v2385
      %2404 = vmatprep.subr.mxu0 0.0
      %2405 = vmatpush1.msra.mxu0 %v2384
      %2406 = vmatprep.subr.mxu0 0.0
      %2407 = vmatpush1.msra.mxu0 %v2383
      %2408 = vmatprep.subr.mxu0 0.0
      %2409 = vmatpush1.msra.mxu0 %v2382
      %2410 = vmatprep.subr.mxu0 0.0
      %2411 = vmatpush1.msra.mxu0 %v2381
      %2412 = vmatprep.subr.mxu0 0.0
      %2413 = vmatpush1.msra.mxu0 %v2380
      %2414 = vmatprep.subr.mxu0 0.0
      %2415 = vmatpush1.msra.mxu0 %v2379
      %2416 = vmatprep.subr.mxu0 0.0
      %2417 = vmatpush1.msra.mxu0 %v2378
      %2418 = vmatprep.subr.mxu0 0.0
      %2419 = vmatpush1.msra.mxu0 %v2377
      %2420 = vmatprep.subr.mxu0 0.0
      %2421 = vmatpush1.msra.mxu0 %v2376
      %2422 = vmatprep.subr.mxu0 0.0
      %2423 = vmatpush1.msra.mxu0 %v2375
      %2424 = vmatprep.subr.mxu0 0.0
      %2425 = vmatpush2.msra.mxu0 0.0
      %2426 = vmatprep.subr.mxu0 0.0
      %2427 = vmatpush2.msra.mxu0 0.0
      %2428 = vmatprep.subr.mxu0 0.0
      %2429 = vmatpush2.msra.mxu0 0.0
      %2430 = vmatprep.subr.mxu0 0.0
      %2431 = vmatpush2.msra.mxu0 0.0
      %2432 = vmatprep.subr.mxu0 0.0
      %2433 = vmatpush2.msra.mxu0 0.0
      %2434 = vmatprep.subr.mxu0 0.0
      %2435 = vmatpush2.msra.mxu0 0.0
      %2436 = vmatprep.subr.mxu0 0.0
      %2437 = vmatpush2.msra.mxu0 0.0
      %2438 = vmatprep.subr.mxu0 0.0
      %2439 = vmatpush2.msra.mxu0 0.0
      %2440 = vmatprep.subr.mxu0 0.0
      %2441 = vmatpush2.msra.mxu0 0.0
      %2442 = vmatprep.subr.mxu0 0.0
      %2443 = vmatpush2.msra.mxu0 0.0
      %2444 = vmatprep.subr.mxu0 0.0
      %2445 = vmatpush2.msra.mxu0 0.0
      %2446 = vmatprep.subr.mxu0 0.0
      %2447 = vmatpush2.msra.mxu0 0.0
      %2448 = vmatprep.subr.mxu0 0.0
      %2449 = vmatpush2.msra.mxu0 0.0
      %2450 = vmatprep.subr.mxu0 0.0
      %2451 = vmatpush2.msra.mxu0 0.0
      %2452 = vmatprep.subr.mxu0 0.0
      %2453 = vmatpush2.msra.mxu0 0.0
      %2454 = vmatprep.subr.mxu0 0.0
      %2455 = vmatpush2.msra.mxu0 0.0
      %2456 = vmatprep.mubr.f32.mxu0 0.0
      %2457 = vmatmul.mubr.f32.gmra.mxu0 %v237
      %v2458 = vpop.f32.mrf.mxu0
      %v2459 = vadd.f32 0.0, %v2458
      %v2460 = vpop.f32.mrf.mxu0
      %2461 = vdwg.mxu0
      %2462 = vmatprep.subr.mxu0 0.0
      %2463 = vmatpush1.msra.mxu0 0.0
      %2464 = vmatprep.subr.mxu0 0.0
      %2465 = vmatpush1.msra.mxu0 0.0
      %2466 = vmatprep.subr.mxu0 0.0
      %2467 = vmatpush1.msra.mxu0 %v2390
      %2468 = vmatprep.subr.mxu0 0.0
      %2469 = vmatpush1.msra.mxu0 %v2387
      %2470 = vmatprep.subr.mxu0 0.0
      %2471 = vmatpush1.msra.mxu0 %v2386
      %2472 = vmatprep.subr.mxu0 0.0
      %2473 = vmatpush1.msra.mxu0 %v2385
      %2474 = vmatprep.subr.mxu0 0.0
      %2475 = vmatpush1.msra.mxu0 %v2384
      %2476 = vmatprep.subr.mxu0 0.0
      %2477 = vmatpush1.msra.mxu0 %v2383
      %2478 = vmatprep.subr.mxu0 0.0
      %2479 = vmatpush1.msra.mxu0 %v2382
      %2480 = vmatprep.subr.mxu0 0.0
      %2481 = vmatpush1.msra.mxu0 %v2381
      %2482 = vmatprep.subr.mxu0 0.0
      %2483 = vmatpush1.msra.mxu0 %v2380
      %2484 = vmatprep.subr.mxu0 0.0
      %2485 = vmatpush1.msra.mxu0 %v2379
      %2486 = vmatprep.subr.mxu0 0.0
      %2487 = vmatpush1.msra.mxu0 %v2378
      %2488 = vmatprep.subr.mxu0 0.0
      %2489 = vmatpush1.msra.mxu0 %v2377
      %2490 = vmatprep.subr.mxu0 0.0
      %2491 = vmatpush1.msra.mxu0 %v2376
      %2492 = vmatprep.subr.mxu0 0.0
      %2493 = vmatpush1.msra.mxu0 %v2375
      %2494 = vmatprep.subr.mxu0 0.0
      %2495 = vmatpush2.msra.mxu0 0.0
      %2496 = vmatprep.subr.mxu0 0.0
      %2497 = vmatpush2.msra.mxu0 0.0
      %2498 = vmatprep.subr.mxu0 0.0
      %2499 = vmatpush2.msra.mxu0 0.0
      %2500 = vmatprep.subr.mxu0 0.0
      %2501 = vmatpush2.msra.mxu0 0.0
      %2502 = vmatprep.subr.mxu0 0.0
      %2503 = vmatpush2.msra.mxu0 0.0
      %2504 = vmatprep.subr.mxu0 0.0
      %2505 = vmatpush2.msra.mxu0 0.0
      %2506 = vmatprep.subr.mxu0 0.0
      %2507 = vmatpush2.msra.mxu0 0.0
      %2508 = vmatprep.subr.mxu0 0.0
      %2509 = vmatpush2.msra.mxu0 0.0
      %2510 = vmatprep.subr.mxu0 0.0
      %2511 = vmatpush2.msra.mxu0 0.0
      %2512 = vmatprep.subr.mxu0 0.0
      %2513 = vmatpush2.msra.mxu0 0.0
      %2514 = vmatprep.subr.mxu0 0.0
      %2515 = vmatpush2.msra.mxu0 0.0
      %2516 = vmatprep.subr.mxu0 0.0
      %2517 = vmatpush2.msra.mxu0 0.0
      %2518 = vmatprep.subr.mxu0 0.0
      %2519 = vmatpush2.msra.mxu0 0.0
      %2520 = vmatprep.subr.mxu0 0.0
      %2521 = vmatpush2.msra.mxu0 0.0
      %2522 = vmatprep.subr.mxu0 0.0
      %2523 = vmatpush2.msra.mxu0 0.0
      %2524 = vmatprep.subr.mxu0 0.0
      %2525 = vmatpush2.msra.mxu0 0.0
      %2526 = vmatprep.mubr.f32.mxu0 0.0
      %2527 = vmatmul.mubr.f32.gmra.mxu0 %v314
      %v2528 = vpop.f32.mrf.mxu0
      %v2529 = vadd.f32 0.0, %v2528
      %v2530 = vpop.f32.mrf.mxu0
      %2531 = vdwg.mxu0
      %v2532 = vmax.f32 %v2459, %v2529
      %2533 = vmatprep.subr.mxu0 0.0
      %2534 = vmatpush1.msra.mxu0 0.0
      %2535 = vmatprep.subr.mxu0 0.0
      %2536 = vmatpush1.msra.mxu0 0.0
      %2537 = vmatprep.subr.mxu0 0.0
      %2538 = vmatpush1.msra.mxu0 %v2390
      %2539 = vmatprep.subr.mxu0 0.0
      %2540 = vmatpush1.msra.mxu0 %v2387
      %2541 = vmatprep.subr.mxu0 0.0
      %2542 = vmatpush1.msra.mxu0 %v2386
      %2543 = vmatprep.subr.mxu0 0.0
      %2544 = vmatpush1.msra.mxu0 %v2385
      %2545 = vmatprep.subr.mxu0 0.0
      %2546 = vmatpush1.msra.mxu0 %v2384
      %2547 = vmatprep.subr.mxu0 0.0
      %2548 = vmatpush1.msra.mxu0 %v2383
      %2549 = vmatprep.subr.mxu0 0.0
      %2550 = vmatpush1.msra.mxu0 %v2382
      %2551 = vmatprep.subr.mxu0 0.0
      %2552 = vmatpush1.msra.mxu0 %v2381
      %2553 = vmatprep.subr.mxu0 0.0
      %2554 = vmatpush1.msra.mxu0 %v2380
      %2555 = vmatprep.subr.mxu0 0.0
      %2556 = vmatpush1.msra.mxu0 %v2379
      %2557 = vmatprep.subr.mxu0 0.0
      %2558 = vmatpush1.msra.mxu0 %v2378
      %2559 = vmatprep.subr.mxu0 0.0
      %2560 = vmatpush1.msra.mxu0 %v2377
      %2561 = vmatprep.subr.mxu0 0.0
      %2562 = vmatpush1.msra.mxu0 %v2376
      %2563 = vmatprep.subr.mxu0 0.0
      %2564 = vmatpush1.msra.mxu0 %v2375
      %2565 = vmatprep.subr.mxu0 0.0
      %2566 = vmatpush2.msra.mxu0 0.0
      %2567 = vmatprep.subr.mxu0 0.0
      %2568 = vmatpush2.msra.mxu0 0.0
      %2569 = vmatprep.subr.mxu0 0.0
      %2570 = vmatpush2.msra.mxu0 0.0
      %2571 = vmatprep.subr.mxu0 0.0
      %2572 = vmatpush2.msra.mxu0 0.0
      %2573 = vmatprep.subr.mxu0 0.0
      %2574 = vmatpush2.msra.mxu0 0.0
      %2575 = vmatprep.subr.mxu0 0.0
      %2576 = vmatpush2.msra.mxu0 0.0
      %2577 = vmatprep.subr.mxu0 0.0
      %2578 = vmatpush2.msra.mxu0 0.0
      %2579 = vmatprep.subr.mxu0 0.0
      %2580 = vmatpush2.msra.mxu0 0.0
      %2581 = vmatprep.subr.mxu0 0.0
      %2582 = vmatpush2.msra.mxu0 0.0
      %2583 = vmatprep.subr.mxu0 0.0
      %2584 = vmatpush2.msra.mxu0 0.0
      %2585 = vmatprep.subr.mxu0 0.0
      %2586 = vmatpush2.msra.mxu0 0.0
      %2587 = vmatprep.subr.mxu0 0.0
      %2588 = vmatpush2.msra.mxu0 0.0
      %2589 = vmatprep.subr.mxu0 0.0
      %2590 = vmatpush2.msra.mxu0 0.0
      %2591 = vmatprep.subr.mxu0 0.0
      %2592 = vmatpush2.msra.mxu0 0.0
      %2593 = vmatprep.subr.mxu0 0.0
      %2594 = vmatpush2.msra.mxu0 0.0
      %2595 = vmatprep.subr.mxu0 0.0
      %2596 = vmatpush2.msra.mxu0 0.0
      %2597 = vmatprep.mubr.f32.mxu0 0.0
      %2598 = vmatmul.mubr.f32.gmra.mxu0 %v388
      %v2599 = vpop.f32.mrf.mxu0
      %v2600 = vadd.f32 0.0, %v2599
      %v2601 = vpop.f32.mrf.mxu0
      %2602 = vdwg.mxu0
      %v2603 = vmax.f32 %v2532, %v2600
      %2604 = vmatprep.subr.mxu0 0.0
      %2605 = vmatpush1.msra.mxu0 0.0
      %2606 = vmatprep.subr.mxu0 0.0
      %2607 = vmatpush1.msra.mxu0 0.0
      %2608 = vmatprep.subr.mxu0 0.0
      %2609 = vmatpush1.msra.mxu0 %v2390
      %2610 = vmatprep.subr.mxu0 0.0
      %2611 = vmatpush1.msra.mxu0 %v2387
      %2612 = vmatprep.subr.mxu0 0.0
      %2613 = vmatpush1.msra.mxu0 %v2386
      %2614 = vmatprep.subr.mxu0 0.0
      %2615 = vmatpush1.msra.mxu0 %v2385
      %2616 = vmatprep.subr.mxu0 0.0
      %2617 = vmatpush1.msra.mxu0 %v2384
      %2618 = vmatprep.subr.mxu0 0.0
      %2619 = vmatpush1.msra.mxu0 %v2383
      %2620 = vmatprep.subr.mxu0 0.0
      %2621 = vmatpush1.msra.mxu0 %v2382
      %2622 = vmatprep.subr.mxu0 0.0
      %2623 = vmatpush1.msra.mxu0 %v2381
      %2624 = vmatprep.subr.mxu0 0.0
      %2625 = vmatpush1.msra.mxu0 %v2380
      %2626 = vmatprep.subr.mxu0 0.0
      %2627 = vmatpush1.msra.mxu0 %v2379
      %2628 = vmatprep.subr.mxu0 0.0
      %2629 = vmatpush1.msra.mxu0 %v2378
      %2630 = vmatprep.subr.mxu0 0.0
      %2631 = vmatpush1.msra.mxu0 %v2377
      %2632 = vmatprep.subr.mxu0 0.0
      %2633 = vmatpush1.msra.mxu0 %v2376
      %2634 = vmatprep.subr.mxu0 0.0
      %2635 = vmatpush1.msra.mxu0 %v2375
      %2636 = vmatprep.subr.mxu0 0.0
      %2637 = vmatpush2.msra.mxu0 0.0
      %2638 = vmatprep.subr.mxu0 0.0
      %2639 = vmatpush2.msra.mxu0 0.0
      %2640 = vmatprep.subr.mxu0 0.0
      %2641 = vmatpush2.msra.mxu0 0.0
      %2642 = vmatprep.subr.mxu0 0.0
      %2643 = vmatpush2.msra.mxu0 0.0
      %2644 = vmatprep.subr.mxu0 0.0
      %2645 = vmatpush2.msra.mxu0 0.0
      %2646 = vmatprep.subr.mxu0 0.0
      %2647 = vmatpush2.msra.mxu0 0.0
      %2648 = vmatprep.subr.mxu0 0.0
      %2649 = vmatpush2.msra.mxu0 0.0
      %2650 = vmatprep.subr.mxu0 0.0
      %2651 = vmatpush2.msra.mxu0 0.0
      %2652 = vmatprep.subr.mxu0 0.0
      %2653 = vmatpush2.msra.mxu0 0.0
      %2654 = vmatprep.subr.mxu0 0.0
      %2655 = vmatpush2.msra.mxu0 0.0
      %2656 = vmatprep.subr.mxu0 0.0
      %2657 = vmatpush2.msra.mxu0 0.0
      %2658 = vmatprep.subr.mxu0 0.0
      %2659 = vmatpush2.msra.mxu0 0.0
      %2660 = vmatprep.subr.mxu0 0.0
      %2661 = vmatpush2.msra.mxu0 0.0
      %2662 = vmatprep.subr.mxu0 0.0
      %2663 = vmatpush2.msra.mxu0 0.0
      %2664 = vmatprep.subr.mxu0 0.0
      %2665 = vmatpush2.msra.mxu0 0.0
      %2666 = vmatprep.subr.mxu0 0.0
      %2667 = vmatpush2.msra.mxu0 0.0
      %2668 = vmatprep.mubr.f32.mxu0 0.0
      %2669 = vmatmul.mubr.f32.gmra.mxu0 %v462
      %v2670 = vpop.f32.mrf.mxu0
      %v2671 = vadd.f32 0.0, %v2670
      %v2672 = vpop.f32.mrf.mxu0
      %2673 = vdwg.mxu0
      %v2674 = vmax.f32 %v2603, %v2671
      %v2675 = vadd.f32 %v2674, %v538
      %v2676 = vmax.f32 %v2675, 0.0
      %s2677 = scalar_lea.vmem %s211, 56
      %2678 = vst.msk [vmem:[%s2677] sm:$0x3f] %vm542, %v2676
      %s2679 = smul.u32 8, %s19
      %p2680 = scmp.lt.s32.totalorder %s18, 1
      %s2681 = scalar_select %p2680, %s18, 1
      %p2682 = scmp.lt.s32.totalorder %s2679, 15
      %s2683 = scalar_select %p2682, %s2679, 15
      %s2684 = smul.addr %s2681, 16
      %s2685 = sadd.s32 %s2683, %s2684
      %s2686 = smul.addr %s2685, 8
      %s2687 = scalar_lea.vmem %s3, %s2686
      // Predicated region
      $region33: #{forward.3} parent=31 // pred_check
        %p2688 = pneg %p116
      $region34: #{forward.3} parent=31 // pred_check_branch
        %2690 = sbr.rel (%p2688) target = $region36
      $region35: #{forward.3} parent=31 // pred_region
        %s2691 = smul.u32 8, %s19
      $region36: #{forward.3} parent=31 // pred_fallthru
        _
    $region32: #{forward.3} parent=5 // pred_fallthru
      _
    %p2692 = scmp.le.s32.totalorder 2, %s9
    // Predicated region
    $region37: #{forward.3} parent=5 // pred_check
      %p2693 = pneg %p2692
    $region38: #{forward.3} parent=5 // pred_check_branch
      %2695 = sbr.rel (%p2693) target = $region40
    $region39: #{forward.3} parent=5 // pred_region
      %s2696 = ssub.s32 %s9, 2
      // Predicated region
      $region41: #{forward.3} parent=39 // pred_check
        %p2697 = pneg %p122
      $region42: #{forward.3} parent=39 // pred_check_branch
        %2699 = sbr.rel (%p2697) target = $region44
      $region43: #{forward.3} parent=39 // pred_region
        %s2700 = smul.u32 8, %s21
        %p2701 = scmp.lt.s32.totalorder %s20, 1
        %s2702 = scalar_select %p2701, %s20, 1
        %p2703 = scmp.lt.s32.totalorder %s2700, 15
        %s2704 = scalar_select %p2703, %s2700, 15
        %s2705 = smul.addr %s2702, 16
        %s2706 = sadd.s32 %s2704, %s2705
        %s2707 = smul.addr %s2706, 8
        %s2708 = scalar_lea.vmem %s3, %s2707
      $region44: #{forward.3} parent=39 // pred_fallthru
        _
    $region40: #{forward.3} parent=5 // pred_fallthru
      _
  $region6: #{forward.3} parent=0 // loop_footer
    %s13 = sadd.s32 1, %s9
  $region7: #{forward.3} parent=0 // loop_footer_branch
    %8 = sbr.rel target = $region3
  $region8: #{forward.3} parent=0 // loop_exit
    _

// kernel: forward.4
$region0: #{forward.4}
  #allocation0 [shape = 'u32[]', space=smem, size = 0x4, offset = 0x4, fixed_abs, tag = 'smem constant byte address 0x4 - core index']
  #allocation1 [shape = 'u32[144,128]{1,0:T(1,128)}', space=vmem, size = 0x12000, scoped, tag = 'internal scratch']
  %s0 = inlined_call_operand.vmem [shape: f32[2,2,216,2], index: 0, kind: input, shape index: {}]
  %s1 = inlined_call_operand.vmem [shape: f32[4,12,216], index: 1, kind: input, shape index: {}]
  %s2 = inlined_call_operand.vmem [shape: f32[12,1], index: 2, kind: input, shape index: {}]
  %s3 = inlined_call_operand.vmem [shape: f32[2,2,12,2], index: 3, kind: output, shape index: {}]
  %s4 = sld [smem:[#allocation0]]
  $region45: #{forward.4} parent=0
    _
  %s6 = ssub.s32 1, %s4
  %s7 = scalar_select 0, %s6, %s4
  loop: start=0, step=1, limit=4
  $region2: #{forward.4} parent=0 // loop_pre_header
    _
  $region3: #{forward.4} parent=0 // loop_header
    %s9 = sphi 0, %s13
    %p10 = scmp.ge.s32.totalorder %s9, 4
    %s16 = sphi 0, %s28
    %s17 = sphi 0, %s24
    %s18 = sphi 0, %s16
    %s19 = sphi 0, %s17
    %s20 = sphi 0, %s18
    %s21 = sphi 0, %s19
    %s33 = sphi 0, %s35
    %s36 = sphi 0, %s33
    %s37 = sphi 0, %s36
    %s53 = sphi 0, %s37
    %s57 = sphi 0, %s57
    %s59 = sphi 0, %s57
    %s60 = sphi 0, %s59
    %s74 = sphi 0, %s60
    %s78 = sphi 0, %s78
    %s80 = sphi 0, %s78
    %s81 = sphi 0, %s80
    %s95 = sphi 0, %s81
    %s103 = sphi 0, %s105
    %s106 = sphi 0, %s103
    %s107 = sphi 0, %s106
    %s123 = sphi 0, %s107
  $region4: #{forward.4} parent=0 // loop_header_branch
    %12 = sbr.rel (%p10) target = $region8
  $region5: #{forward.4} parent=0 // loop_body
    %s14 = ssub.s32 %s9, 1
    %s15 = ssub.s32 %s9, 2
    %s22 = sadd.s32 1, %s17
    %p23 = scmp.ge.s32.totalorder %s22, 1
    %s24 = scalar_select %p23, 0, %s22
    %s25 = sadd.s32 1, %s16
    %s26 = scalar_select %p23, %s25, %s16
    %p27 = scmp.ge.s32.totalorder %s26, 2
    %s28 = scalar_select %p27, 0, %s26
    %s29 = ssub.s32 %s16, %s28
    %s30 = ssub.s32 %s17, %s24
    %s31 = sor.u32 %s29, %s30
    %p32 = scmp.eq.s32.totalorder %s31, 0
    %s34 = sadd.s32 %s33, 1
    %s35 = scalar_select %p32, %s33, %s34
    %p38 = pneg %p32
    %p39 = scmp.eq.s32.totalorder %s9, 1
    %p40 = por %p38, %p39
    %p41 = scmp.ne.s32.totalorder %s33, %s36
    %p42 = scmp.eq.s32.totalorder %s9, 0
    %p43 = por %p41, %p42
    %p44 = scmp.ne.s32.totalorder %s33, %s36
    %p45 = scmp.eq.s32.totalorder %s14, 1
    %p46 = por %p44, %p45
    %p47 = scmp.ne.s32.totalorder %s36, %s37
    %p48 = scmp.eq.s32.totalorder %s14, 0
    %p49 = por %p47, %p48
    %p50 = scmp.ne.s32.totalorder %s36, %s37
    %p51 = scmp.eq.s32.totalorder %s15, 1
    %p52 = por %p50, %p51
    %p54 = scmp.ne.s32.totalorder %s37, %s53
    %p55 = scmp.eq.s32.totalorder %s15, 0
    %p56 = por %p54, %p55
    %s58 = sadd.s32 %s57, 1
    %p61 = scmp.eq.s32.totalorder %s9, 1
    %p62 = scmp.ne.s32.totalorder %s57, %s59
    %p63 = scmp.eq.s32.totalorder %s9, 0
    %p64 = por %p62, %p63
    %p65 = scmp.ne.s32.totalorder %s57, %s59
    %p66 = scmp.eq.s32.totalorder %s14, 1
    %p67 = por %p65, %p66
    %p68 = scmp.ne.s32.totalorder %s59, %s60
    %p69 = scmp.eq.s32.totalorder %s14, 0
    %p70 = por %p68, %p69
    %p71 = scmp.ne.s32.totalorder %s59, %s60
    %p72 = scmp.eq.s32.totalorder %s15, 1
    %p73 = por %p71, %p72
    %p75 = scmp.ne.s32.totalorder %s60, %s74
    %p76 = scmp.eq.s32.totalorder %s15, 0
    %p77 = por %p75, %p76
    %s79 = sadd.s32 %s78, 1
    %p82 = scmp.eq.s32.totalorder %s9, 1
    %p83 = scmp.ne.s32.totalorder %s78, %s80
    %p84 = scmp.eq.s32.totalorder %s9, 0
    %p85 = por %p83, %p84
    %p86 = scmp.ne.s32.totalorder %s78, %s80
    %p87 = scmp.eq.s32.totalorder %s14, 1
    %p88 = por %p86, %p87
    %p89 = scmp.ne.s32.totalorder %s80, %s81
    %p90 = scmp.eq.s32.totalorder %s14, 0
    %p91 = por %p89, %p90
    %p92 = scmp.ne.s32.totalorder %s80, %s81
    %p93 = scmp.eq.s32.totalorder %s15, 1
    %p94 = por %p92, %p93
    %p96 = scmp.ne.s32.totalorder %s81, %s95
    %p97 = scmp.eq.s32.totalorder %s15, 0
    %p98 = por %p96, %p97
    %s99 = ssub.s32 %s16, %s28
    %s100 = ssub.s32 %s17, %s24
    %s101 = sor.u32 %s99, %s100
    %p102 = scmp.eq.s32.totalorder %s101, 0
    %s104 = sadd.s32 %s103, 1
    %s105 = scalar_select %p102, %s103, %s104
    %p108 = pneg %p102
    %p109 = scmp.eq.s32.totalorder %s9, 1
    %p110 = por %p108, %p109
    %p111 = scmp.ne.s32.totalorder %s103, %s106
    %p112 = scmp.eq.s32.totalorder %s9, 0
    %p113 = por %p111, %p112
    %p114 = scmp.ne.s32.totalorder %s103, %s106
    %p115 = scmp.eq.s32.totalorder %s14, 1
    %p116 = por %p114, %p115
    %p117 = scmp.ne.s32.totalorder %s106, %s107
    %p118 = scmp.eq.s32.totalorder %s14, 0
    %p119 = por %p117, %p118
    %p120 = scmp.ne.s32.totalorder %s106, %s107
    %p121 = scmp.eq.s32.totalorder %s15, 1
    %p122 = por %p120, %p121
    %p124 = scmp.ne.s32.totalorder %s107, %s123
    %p125 = scmp.eq.s32.totalorder %s15, 0
    %p126 = por %p124, %p125
    %p127 = scmp.le.s32.totalorder 1, %s9
    %p128 = scmp.lt.s32.totalorder %s9, 3
    %p129 = pnand %p127, %p128
    %p130 = pneg %p129
    // Predicated region
    $region9: #{forward.4} parent=5 // pred_check
      _
    $region10: #{forward.4} parent=5 // pred_check_branch
      %132 = sbr.rel (%p129) target = $region12
    $region11: #{forward.4} parent=5 // pred_region
      %s133 = ssub.s32 %s9, 1
      // Predicated region
      $region13: #{forward.4} parent=11 // pred_check
        %p134 = pneg %p70
      $region14: #{forward.4} parent=11 // pred_check_branch
        %136 = sbr.rel (%p134) target = $region16
      $region15: #{forward.4} parent=11 // pred_region
        _
      $region16: #{forward.4} parent=11 // pred_fallthru
        _
      // Predicated region
      $region17: #{forward.4} parent=11 // pred_check
        %p137 = pneg %p91
      $region18: #{forward.4} parent=11 // pred_check_branch
        %139 = sbr.rel (%p137) target = $region20
      $region19: #{forward.4} parent=11 // pred_region
        _
      $region20: #{forward.4} parent=11 // pred_fallthru
        _
    $region12: #{forward.4} parent=5 // pred_fallthru
      _
    %p140 = scmp.lt.s32.totalorder %s9, 2
    // Predicated region
    $region21: #{forward.4} parent=5 // pred_check
      %p141 = pneg %p140
    $region22: #{forward.4} parent=5 // pred_check_branch
      %143 = sbr.rel (%p141) target = $region24
    $region23: #{forward.4} parent=5 // pred_region
      // Predicated region
      $region25: #{forward.4} parent=23 // pred_check
        %p144 = pneg %p43
      $region26: #{forward.4} parent=23 // pred_check_branch
        %146 = sbr.rel (%p144) target = $region28
      $region27: #{forward.4} parent=23 // pred_region
        %s147 = smul.u32 2, %s17
        %p148 = scmp.lt.s32.totalorder %s16, 1
        %s149 = scalar_select %p148, %s16, 1
        %p150 = scmp.lt.s32.totalorder %s147, 1
        %s151 = scalar_select %p150, %s147, 1
        %s152 = smul.addr %s151, 27
        %s153 = smul.addr %s149, 54
        %s154 = sadd.s32 %s152, %s153
        %s155 = smul.addr %s154, 8
        %s156 = scalar_lea.vmem %s0, %s155
        %s157 = smul.u32 2, %s17
      $region28: #{forward.4} parent=23 // pred_fallthru
        _
    $region24: #{forward.4} parent=5 // pred_fallthru
      _
    %p158 = scmp.le.s32.totalorder 1, %s9
    %p159 = scmp.lt.s32.totalorder %s9, 3
    %p160 = pnand %p158, %p159
    %p161 = pneg %p160
    // Predicated region
    $region29: #{forward.4} parent=5 // pred_check
      _
    $region30: #{forward.4} parent=5 // pred_check_branch
      %163 = sbr.rel (%p160) target = $region32
    $region31: #{forward.4} parent=5 // pred_region
      %s164 = ssub.s32 %s9, 1
      %s165 = smul.u32 2, %s19
      %p166 = scmp.lt.s32.totalorder %s18, 1
      %s167 = scalar_select %p166, %s18, 1
      %p168 = scmp.lt.s32.totalorder %s165, 1
      %s169 = scalar_select %p168, %s165, 1
      %s170 = smul.addr %s169, 27
      %s171 = smul.addr %s167, 54
      %s172 = sadd.s32 %s170, %s171
      %s173 = smul.addr %s172, 8
      %s174 = scalar_lea.vmem %s0, %s173
      %p175 = pneg %p49
      %p176 = pneg %p46
      %p177 = pneg %p70
      %p178 = pneg %p67
      %p179 = pneg %p91
      %p180 = pneg %p88
      %p181 = pneg %p119
      %p182 = pneg %p116
      %s183 = smul.u32 2, %s19
      %p184 = scmp.lt.s32.totalorder %s18, 1
      %s185 = scalar_select %p184, %s18, 1
      %p186 = scmp.lt.s32.totalorder %s183, 1
      %s187 = scalar_select %p186, %s183, 1
      %s188 = smul.addr %s187, 2
      %s189 = smul.addr %s185, 4
      %s190 = sadd.s32 %s188, %s189
      %s191 = smul.addr %s190, 8
      %s192 = scalar_lea.vmem %s3, %s191
      %s193 = smul.u32 2, %s19
      %p194 = scmp.lt.s32.totalorder %s18, 1
      %s195 = scalar_select %p194, %s18, 1
      %p196 = scmp.lt.s32.totalorder %s193, 1
      %s197 = scalar_select %p196, %s193, 1
      %s198 = smul.addr %s197, 27
      %s199 = smul.addr %s195, 54
      %s200 = sadd.s32 %s198, %s199
      %s201 = smul.addr %s200, 8
      %s202 = scalar_lea.vmem %s0, %s201
      %s203 = smul.u32 2, %s19
      %s204 = smul.u32 2, %s19
      %p205 = scmp.lt.s32.totalorder %s18, 1
      %s206 = scalar_select %p205, %s18, 1
      %p207 = scmp.lt.s32.totalorder %s204, 1
      %s208 = scalar_select %p207, %s204, 1
      %s209 = smul.addr %s208, 2
      %s210 = smul.addr %s206, 4
      %s211 = sadd.s32 %s209, %s210
      %s212 = smul.addr %s211, 8
      %s213 = scalar_lea.vmem %s3, %s212
      %s214 = smul.u32 2, %s19
      %v215 = vld [vmem:[%s1] sm:$0xff]
      %v216 = vld [vmem:[%s1 + $0x8] sm:$0xff]
      %v217 = vld [vmem:[%s1 + $0x10] sm:$0xf]
      %v218 = vld [vmem:[%s1 + $0x18] sm:$0xf]
      %s219 = scalar_lea.vmem %s1, 32
      %v220 = vld [vmem:[%s219] sm:$0xff]
      %v221 = vld [vmem:[%s219 + $0x8] sm:$0xff]
      %v222 = vld [vmem:[%s219 + $0x10] sm:$0xf]
      %v223 = vld [vmem:[%s219 + $0x18] sm:$0xf]
      %s224 = scalar_lea.vmem %s1, 64
      %v225 = vld [vmem:[%s224] sm:$0xff]
      %v226 = vld [vmem:[%s224 + $0x8] sm:$0xff]
      %v227 = vld [vmem:[%s224 + $0x10] sm:$0xf]
      %v228 = vld [vmem:[%s224 + $0x18] sm:$0xf]
      %s229 = scalar_lea.vmem %s1, 96
      %v230 = vld [vmem:[%s229] sm:$0xff]
      %v231 = vld [vmem:[%s229 + $0x8] sm:$0xff]
      %v232 = vld [vmem:[%s229 + $0x10] sm:$0xf]
      %v233 = vld [vmem:[%s229 + $0x18] sm:$0xf]
      %v234 = vld [vmem:[%s2] sm:$0xff]
      %v235 = vld [vmem:[%s2 + $0x8] sm:$0xf]
      %v236 = vld [vmem:[%s202] sm:$0xff]
      %v237 = vld [vmem:[%s202 + $0x8] sm:$0xff]
      %v238 = vld [vmem:[%s202 + $0x10] sm:$0xff]
      %v239 = vld [vmem:[%s202 + $0x18] sm:$0xff]
      %v240 = vld [vmem:[%s202 + $0x20] sm:$0xff]
      %v241 = vld [vmem:[%s202 + $0x28] sm:$0xff]
      %v242 = vld [vmem:[%s202 + $0x30] sm:$0xff]
      %v243 = vld [vmem:[%s202 + $0x38] sm:$0xff]
      %v244 = vld [vmem:[%s202 + $0x40] sm:$0xff]
      %v245 = vld [vmem:[%s202 + $0x48] sm:$0xff]
      %v246 = vld [vmem:[%s202 + $0x50] sm:$0xff]
      %v247 = vld [vmem:[%s202 + $0x58] sm:$0xff]
      %v248 = vld [vmem:[%s202 + $0x60] sm:$0xff]
      %v249 = vld [vmem:[%s202 + $0x68] sm:$0xff]
      %v250 = vld [vmem:[%s202 + $0x70] sm:$0xff]
      %v251 = vld [vmem:[%s202 + $0x78] sm:$0xff]
      %v252 = vld [vmem:[%s202 + $0x80] sm:$0xff]
      %v253 = vld [vmem:[%s202 + $0x88] sm:$0xff]
      %v254 = vld [vmem:[%s202 + $0x90] sm:$0xff]
      %v255 = vld [vmem:[%s202 + $0x98] sm:$0xff]
      %v256 = vld [vmem:[%s202 + $0xa0] sm:$0xff]
      %v257 = vld [vmem:[%s202 + $0xa8] sm:$0xff]
      %v258 = vld [vmem:[%s202 + $0xb0] sm:$0xff]
      %v259 = vld [vmem:[%s202 + $0xb8] sm:$0xff]
      %v260 = vld [vmem:[%s202 + $0xc0] sm:$0xff]
      %v261 = vld [vmem:[%s202 + $0xc8] sm:$0xff]
      %v262 = vld [vmem:[%s202 + $0xd0] sm:$0xff]
      %vm263 = vcmask 719872
      %v265 = vsel %vm263, %v216, 0
      %v268 = vsel %vm263, %v218, 0
      %270 = vmatprep.subr.mxu0 0.0
      %271 = vmatpush1.msra.mxu0 %v251
      %272 = vmatprep.subr.mxu0 0.0
      %273 = vmatpush1.msra.mxu0 %v250
      %274 = vmatprep.subr.mxu0 0.0
      %275 = vmatpush1.msra.mxu0 %v249
      %276 = vmatprep.subr.mxu0 0.0
      %277 = vmatpush1.msra.mxu0 %v248
      %278 = vmatprep.subr.mxu0 0.0
      %279 = vmatpush1.msra.mxu0 %v247
      %280 = vmatprep.subr.mxu0 0.0
      %281 = vmatpush1.msra.mxu0 %v246
      %282 = vmatprep.subr.mxu0 0.0
      %283 = vmatpush1.msra.mxu0 %v245
      %284 = vmatprep.subr.mxu0 0.0
      %285 = vmatpush1.msra.mxu0 %v244
      %286 = vmatprep.subr.mxu0 0.0
      %287 = vmatpush1.msra.mxu0 %v243
      %288 = vmatprep.subr.mxu0 0.0
      %289 = vmatpush1.msra.mxu0 %v242
      %290 = vmatprep.subr.mxu0 0.0
      %291 = vmatpush1.msra.mxu0 %v241
      %292 = vmatprep.subr.mxu0 0.0
      %293 = vmatpush1.msra.mxu0 %v240
      %294 = vmatprep.subr.mxu0 0.0
      %295 = vmatpush1.msra.mxu0 %v239
      %296 = vmatprep.subr.mxu0 0.0
      %297 = vmatpush1.msra.mxu0 %v238
      %298 = vmatprep.subr.mxu0 0.0
      %299 = vmatpush1.msra.mxu0 %v237
      %300 = vmatprep.subr.mxu0 0.0
      %301 = vmatpush1.msra.mxu0 %v236
      %302 = vmatprep.subr.mxu0 0.0
      %303 = vmatpush2.msra.mxu0 0.0
      %304 = vmatprep.subr.mxu0 0.0
      %305 = vmatpush2.msra.mxu0 0.0
      %306 = vmatprep.subr.mxu0 0.0
      %307 = vmatpush2.msra.mxu0 0.0
      %308 = vmatprep.subr.mxu0 0.0
      %309 = vmatpush2.msra.mxu0 0.0
      %310 = vmatprep.subr.mxu0 0.0
      %311 = vmatpush2.msra.mxu0 0.0
      %312 = vmatprep.subr.mxu0 0.0
      %313 = vmatpush2.msra.mxu0 %v262
      %314 = vmatprep.subr.mxu0 0.0
      %315 = vmatpush2.msra.mxu0 %v261
      %316 = vmatprep.subr.mxu0 0.0
      %317 = vmatpush2.msra.mxu0 %v260
      %318 = vmatprep.subr.mxu0 0.0
      %319 = vmatpush2.msra.mxu0 %v259
      %320 = vmatprep.subr.mxu0 0.0
      %321 = vmatpush2.msra.mxu0 %v258
      %322 = vmatprep.subr.mxu0 0.0
      %323 = vmatpush2.msra.mxu0 %v257
      %324 = vmatprep.subr.mxu0 0.0
      %325 = vmatpush2.msra.mxu0 %v256
      %326 = vmatprep.subr.mxu0 0.0
      %327 = vmatpush2.msra.mxu0 %v255
      %328 = vmatprep.subr.mxu0 0.0
      %329 = vmatpush2.msra.mxu0 %v254
      %330 = vmatprep.subr.mxu0 0.0
      %331 = vmatpush2.msra.mxu0 %v253
      %332 = vmatprep.subr.mxu0 0.0
      %333 = vmatpush2.msra.mxu0 %v252
      %334 = vmatprep.mubr.f32.mxu0 %v265
      %335 = vmatmul.mubr.f32.gmra.mxu0 %v215
      %v336 = vpop.f32.mrf.mxu0
      %v337 = vadd.f32 0.0, %v336
      %v338 = vpop.f32.mrf.mxu0
      %339 = vmatprep.mubr.f32.mxu0 %v268
      %340 = vmatmul.mubr.f32.gmra.mxu0 %v217
      %v341 = vpop.f32.mrf.mxu0
      %v342 = vadd.f32 0.0, %v341
      %v343 = vpop.f32.mrf.mxu0
      %344 = vdwg.mxu0
      %v346 = vsel %vm263, %v221, 0
      %v349 = vsel %vm263, %v223, 0
      %351 = vmatprep.subr.mxu0 0.0
      %352 = vmatpush1.msra.mxu0 %v251
      %353 = vmatprep.subr.mxu0 0.0
      %354 = vmatpush1.msra.mxu0 %v250
      %355 = vmatprep.subr.mxu0 0.0
      %356 = vmatpush1.msra.mxu0 %v249
      %357 = vmatprep.subr.mxu0 0.0
      %358 = vmatpush1.msra.mxu0 %v248
      %359 = vmatprep.subr.mxu0 0.0
      %360 = vmatpush1.msra.mxu0 %v247
      %361 = vmatprep.subr.mxu0 0.0
      %362 = vmatpush1.msra.mxu0 %v246
      %363 = vmatprep.subr.mxu0 0.0
      %364 = vmatpush1.msra.mxu0 %v245
      %365 = vmatprep.subr.mxu0 0.0
      %366 = vmatpush1.msra.mxu0 %v244
      %367 = vmatprep.subr.mxu0 0.0
      %368 = vmatpush1.msra.mxu0 %v243
      %369 = vmatprep.subr.mxu0 0.0
      %370 = vmatpush1.msra.mxu0 %v242
      %371 = vmatprep.subr.mxu0 0.0
      %372 = vmatpush1.msra.mxu0 %v241
      %373 = vmatprep.subr.mxu0 0.0
      %374 = vmatpush1.msra.mxu0 %v240
      %375 = vmatprep.subr.mxu0 0.0
      %376 = vmatpush1.msra.mxu0 %v239
      %377 = vmatprep.subr.mxu0 0.0
      %378 = vmatpush1.msra.mxu0 %v238
      %379 = vmatprep.subr.mxu0 0.0
      %380 = vmatpush1.msra.mxu0 %v237
      %381 = vmatprep.subr.mxu0 0.0
      %382 = vmatpush1.msra.mxu0 %v236
      %383 = vmatprep.subr.mxu0 0.0
      %384 = vmatpush2.msra.mxu0 0.0
      %385 = vmatprep.subr.mxu0 0.0
      %386 = vmatpush2.msra.mxu0 0.0
      %387 = vmatprep.subr.mxu0 0.0
      %388 = vmatpush2.msra.mxu0 0.0
      %389 = vmatprep.subr.mxu0 0.0
      %390 = vmatpush2.msra.mxu0 0.0
      %391 = vmatprep.subr.mxu0 0.0
      %392 = vmatpush2.msra.mxu0 0.0
      %393 = vmatprep.subr.mxu0 0.0
      %394 = vmatpush2.msra.mxu0 %v262
      %395 = vmatprep.subr.mxu0 0.0
      %396 = vmatpush2.msra.mxu0 %v261
      %397 = vmatprep.subr.mxu0 0.0
      %398 = vmatpush2.msra.mxu0 %v260
      %399 = vmatprep.subr.mxu0 0.0
      %400 = vmatpush2.msra.mxu0 %v259
      %401 = vmatprep.subr.mxu0 0.0
      %402 = vmatpush2.msra.mxu0 %v258
      %403 = vmatprep.subr.mxu0 0.0
      %404 = vmatpush2.msra.mxu0 %v257
      %405 = vmatprep.subr.mxu0 0.0
      %406 = vmatpush2.msra.mxu0 %v256
      %407 = vmatprep.subr.mxu0 0.0
      %408 = vmatpush2.msra.mxu0 %v255
      %409 = vmatprep.subr.mxu0 0.0
      %410 = vmatpush2.msra.mxu0 %v254
      %411 = vmatprep.subr.mxu0 0.0
      %412 = vmatpush2.msra.mxu0 %v253
      %413 = vmatprep.subr.mxu0 0.0
      %414 = vmatpush2.msra.mxu0 %v252
      %415 = vmatprep.mubr.f32.mxu0 %v346
      %416 = vmatmul.mubr.f32.gmra.mxu0 %v220
      %v417 = vpop.f32.mrf.mxu0
      %v418 = vadd.f32 0.0, %v417
      %v419 = vpop.f32.mrf.mxu0
      %420 = vmatprep.mubr.f32.mxu0 %v349
      %421 = vmatmul.mubr.f32.gmra.mxu0 %v222
      %v422 = vpop.f32.mrf.mxu0
      %v423 = vadd.f32 0.0, %v422
      %v424 = vpop.f32.mrf.mxu0
      %425 = vdwg.mxu0
      %v426 = vmax.f32 %v337, %v418
      %v427 = vmax.f32 %v342, %v423
      %v429 = vsel %vm263, %v226, 0
      %v432 = vsel %vm263, %v228, 0
      %434 = vmatprep.subr.mxu0 0.0
      %435 = vmatpush1.msra.mxu0 %v251
      %436 = vmatprep.subr.mxu0 0.0
      %437 = vmatpush1.msra.mxu0 %v250
      %438 = vmatprep.subr.mxu0 0.0
      %439 = vmatpush1.msra.mxu0 %v249
      %440 = vmatprep.subr.mxu0 0.0
      %441 = vmatpush1.msra.mxu0 %v248
      %442 = vmatprep.subr.mxu0 0.0
      %443 = vmatpush1.msra.mxu0 %v247
      %444 = vmatprep.subr.mxu0 0.0
      %445 = vmatpush1.msra.mxu0 %v246
      %446 = vmatprep.subr.mxu0 0.0
      %447 = vmatpush1.msra.mxu0 %v245
      %448 = vmatprep.subr.mxu0 0.0
      %449 = vmatpush1.msra.mxu0 %v244
      %450 = vmatprep.subr.mxu0 0.0
      %451 = vmatpush1.msra.mxu0 %v243
      %452 = vmatprep.subr.mxu0 0.0
      %453 = vmatpush1.msra.mxu0 %v242
      %454 = vmatprep.subr.mxu0 0.0
      %455 = vmatpush1.msra.mxu0 %v241
      %456 = vmatprep.subr.mxu0 0.0
      %457 = vmatpush1.msra.mxu0 %v240
      %458 = vmatprep.subr.mxu0 0.0
      %459 = vmatpush1.msra.mxu0 %v239
      %460 = vmatprep.subr.mxu0 0.0
      %461 = vmatpush1.msra.mxu0 %v238
      %462 = vmatprep.subr.mxu0 0.0
      %463 = vmatpush1.msra.mxu0 %v237
      %464 = vmatprep.subr.mxu0 0.0
      %465 = vmatpush1.msra.mxu0 %v236
      %466 = vmatprep.subr.mxu0 0.0
      %467 = vmatpush2.msra.mxu0 0.0
      %468 = vmatprep.subr.mxu0 0.0
      %469 = vmatpush2.msra.mxu0 0.0
      %470 = vmatprep.subr.mxu0 0.0
      %471 = vmatpush2.msra.mxu0 0.0
      %472 = vmatprep.subr.mxu0 0.0
      %473 = vmatpush2.msra.mxu0 0.0
      %474 = vmatprep.subr.mxu0 0.0
      %475 = vmatpush2.msra.mxu0 0.0
      %476 = vmatprep.subr.mxu0 0.0
      %477 = vmatpush2.msra.mxu0 %v262
      %478 = vmatprep.subr.mxu0 0.0
      %479 = vmatpush2.msra.mxu0 %v261
      %480 = vmatprep.subr.mxu0 0.0
      %481 = vmatpush2.msra.mxu0 %v260
      %482 = vmatprep.subr.mxu0 0.0
      %483 = vmatpush2.msra.mxu0 %v259
      %484 = vmatprep.subr.mxu0 0.0
      %485 = vmatpush2.msra.mxu0 %v258
      %486 = vmatprep.subr.mxu0 0.0
      %487 = vmatpush2.msra.mxu0 %v257
      %488 = vmatprep.subr.mxu0 0.0
      %489 = vmatpush2.msra.mxu0 %v256
      %490 = vmatprep.subr.mxu0 0.0
      %491 = vmatpush2.msra.mxu0 %v255
      %492 = vmatprep.subr.mxu0 0.0
      %493 = vmatpush2.msra.mxu0 %v254
      %494 = vmatprep.subr.mxu0 0.0
      %495 = vmatpush2.msra.mxu0 %v253
      %496 = vmatprep.subr.mxu0 0.0
      %497 = vmatpush2.msra.mxu0 %v252
      %498 = vmatprep.mubr.f32.mxu0 %v429
      %499 = vmatmul.mubr.f32.gmra.mxu0 %v225
      %v500 = vpop.f32.mrf.mxu0
      %v501 = vadd.f32 0.0, %v500
      %v502 = vpop.f32.mrf.mxu0
      %503 = vmatprep.mubr.f32.mxu0 %v432
      %504 = vmatmul.mubr.f32.gmra.mxu0 %v227
      %v505 = vpop.f32.mrf.mxu0
      %v506 = vadd.f32 0.0, %v505
      %v507 = vpop.f32.mrf.mxu0
      %508 = vdwg.mxu0
      %v509 = vmax.f32 %v426, %v501
      %v510 = vmax.f32 %v427, %v506
      %v512 = vsel %vm263, %v231, 0
      %v515 = vsel %vm263, %v233, 0
      %517 = vmatprep.subr.mxu0 0.0
      %518 = vmatpush1.msra.mxu0 %v251
      %519 = vmatprep.subr.mxu0 0.0
      %520 = vmatpush1.msra.mxu0 %v250
      %521 = vmatprep.subr.mxu0 0.0
      %522 = vmatpush1.msra.mxu0 %v249
      %523 = vmatprep.subr.mxu0 0.0
      %524 = vmatpush1.msra.mxu0 %v248
      %525 = vmatprep.subr.mxu0 0.0
      %526 = vmatpush1.msra.mxu0 %v247
      %527 = vmatprep.subr.mxu0 0.0
      %528 = vmatpush1.msra.mxu0 %v246
      %529 = vmatprep.subr.mxu0 0.0
      %530 = vmatpush1.msra.mxu0 %v245
      %531 = vmatprep.subr.mxu0 0.0
      %532 = vmatpush1.msra.mxu0 %v244
      %533 = vmatprep.subr.mxu0 0.0
      %534 = vmatpush1.msra.mxu0 %v243
      %535 = vmatprep.subr.mxu0 0.0
      %536 = vmatpush1.msra.mxu0 %v242
      %537 = vmatprep.subr.mxu0 0.0
      %538 = vmatpush1.msra.mxu0 %v241
      %539 = vmatprep.subr.mxu0 0.0
      %540 = vmatpush1.msra.mxu0 %v240
      %541 = vmatprep.subr.mxu0 0.0
      %542 = vmatpush1.msra.mxu0 %v239
      %543 = vmatprep.subr.mxu0 0.0
      %544 = vmatpush1.msra.mxu0 %v238
      %545 = vmatprep.subr.mxu0 0.0
      %546 = vmatpush1.msra.mxu0 %v237
      %547 = vmatprep.subr.mxu0 0.0
      %548 = vmatpush1.msra.mxu0 %v236
      %549 = vmatprep.subr.mxu0 0.0
      %550 = vmatpush2.msra.mxu0 0.0
      %551 = vmatprep.subr.mxu0 0.0
      %552 = vmatpush2.msra.mxu0 0.0
      %553 = vmatprep.subr.mxu0 0.0
      %554 = vmatpush2.msra.mxu0 0.0
      %555 = vmatprep.subr.mxu0 0.0
      %556 = vmatpush2.msra.mxu0 0.0
      %557 = vmatprep.subr.mxu0 0.0
      %558 = vmatpush2.msra.mxu0 0.0
      %559 = vmatprep.subr.mxu0 0.0
      %560 = vmatpush2.msra.mxu0 %v262
      %561 = vmatprep.subr.mxu0 0.0
      %562 = vmatpush2.msra.mxu0 %v261
      %563 = vmatprep.subr.mxu0 0.0
      %564 = vmatpush2.msra.mxu0 %v260
      %565 = vmatprep.subr.mxu0 0.0
      %566 = vmatpush2.msra.mxu0 %v259
      %567 = vmatprep.subr.mxu0 0.0
      %568 = vmatpush2.msra.mxu0 %v258
      %569 = vmatprep.subr.mxu0 0.0
      %570 = vmatpush2.msra.mxu0 %v257
      %571 = vmatprep.subr.mxu0 0.0
      %572 = vmatpush2.msra.mxu0 %v256
      %573 = vmatprep.subr.mxu0 0.0
      %574 = vmatpush2.msra.mxu0 %v255
      %575 = vmatprep.subr.mxu0 0.0
      %576 = vmatpush2.msra.mxu0 %v254
      %577 = vmatprep.subr.mxu0 0.0
      %578 = vmatpush2.msra.mxu0 %v253
      %579 = vmatprep.subr.mxu0 0.0
      %580 = vmatpush2.msra.mxu0 %v252
      %581 = vmatprep.mubr.f32.mxu0 %v512
      %582 = vmatmul.mubr.f32.gmra.mxu0 %v230
      %v583 = vpop.f32.mrf.mxu0
      %v584 = vadd.f32 0.0, %v583
      %v585 = vpop.f32.mrf.mxu0
      %586 = vmatprep.mubr.f32.mxu0 %v515
      %587 = vmatmul.mubr.f32.gmra.mxu0 %v232
      %v588 = vpop.f32.mrf.mxu0
      %v589 = vadd.f32 0.0, %v588
      %v590 = vpop.f32.mrf.mxu0
      %591 = vdwg.mxu0
      %v592 = vmax.f32 %v509, %v584
      %v593 = vmax.f32 %v510, %v589
      %595 = vset.pattern.permute.xlu0 0
      %596 = vperm.xlu0 %595, %v234
      %v597 = vpop.permute.xlu0 %596
      %600 = vset.pattern.permute.xlu0 0
      %601 = vperm.xlu0 %600, %v235
      %v602 = vpop.permute.xlu0 %601
      %v604 = vadd.f32 %v592, %v597
      %v605 = vadd.f32 %v593, %v602
      %v606 = vmax.f32 %v604, 0.0
      %v607 = vmax.f32 %v605, 0.0
      %vm608 = vcmask 15360
      %609 = vst.msk [vmem:[%s213] sm:$0xff] %vm608, %v606
      %vm610 = vcmask 11264
      %611 = vst.msk [vmem:[%s213 + $0x8] sm:$0xf] %vm610, %v607
      %s612 = scalar_lea.vmem %s202, 216
      %v613 = vld [vmem:[%s612] sm:$0xff]
      %v614 = vld [vmem:[%s612 + $0x8] sm:$0xff]
      %v615 = vld [vmem:[%s612 + $0x10] sm:$0xff]
      %v616 = vld [vmem:[%s612 + $0x18] sm:$0xff]
      %v617 = vld [vmem:[%s612 + $0x20] sm:$0xff]
      %v618 = vld [vmem:[%s612 + $0x28] sm:$0xff]
      %v619 = vld [vmem:[%s612 + $0x30] sm:$0xff]
      %v620 = vld [vmem:[%s612 + $0x38] sm:$0xff]
      %v621 = vld [vmem:[%s612 + $0x40] sm:$0xff]
      %v622 = vld [vmem:[%s612 + $0x48] sm:$0xff]
      %v623 = vld [vmem:[%s612 + $0x50] sm:$0xff]
      %v624 = vld [vmem:[%s612 + $0x58] sm:$0xff]
      %v625 = vld [vmem:[%s612 + $0x60] sm:$0xff]
      %v626 = vld [vmem:[%s612 + $0x68] sm:$0xff]
      %v627 = vld [vmem:[%s612 + $0x70] sm:$0xff]
      %v628 = vld [vmem:[%s612 + $0x78] sm:$0xff]
      %v629 = vld [vmem:[%s612 + $0x80] sm:$0xff]
      %v630 = vld [vmem:[%s612 + $0x88] sm:$0xff]
      %v631 = vld [vmem:[%s612 + $0x90] sm:$0xff]
      %v632 = vld [vmem:[%s612 + $0x98] sm:$0xff]
      %v633 = vld [vmem:[%s612 + $0xa0] sm:$0xff]
      %v634 = vld [vmem:[%s612 + $0xa8] sm:$0xff]
      %v635 = vld [vmem:[%s612 + $0xb0] sm:$0xff]
      %v636 = vld [vmem:[%s612 + $0xb8] sm:$0xff]
      %v637 = vld [vmem:[%s612 + $0xc0] sm:$0xff]
      %v638 = vld [vmem:[%s612 + $0xc8] sm:$0xff]
      %v639 = vld [vmem:[%s612 + $0xd0] sm:$0xff]
      %640 = vmatprep.subr.mxu0 0.0
      %641 = vmatpush1.msra.mxu0 %v628
      %642 = vmatprep.subr.mxu0 0.0
      %643 = vmatpush1.msra.mxu0 %v627
      %644 = vmatprep.subr.mxu0 0.0
      %645 = vmatpush1.msra.mxu0 %v626
      %646 = vmatprep.subr.mxu0 0.0
      %647 = vmatpush1.msra.mxu0 %v625
      %648 = vmatprep.subr.mxu0 0.0
      %649 = vmatpush1.msra.mxu0 %v624
      %650 = vmatprep.subr.mxu0 0.0
      %651 = vmatpush1.msra.mxu0 %v623
      %652 = vmatprep.subr.mxu0 0.0
      %653 = vmatpush1.msra.mxu0 %v622
      %654 = vmatprep.subr.mxu0 0.0
      %655 = vmatpush1.msra.mxu0 %v621
      %656 = vmatprep.subr.mxu0 0.0
      %657 = vmatpush1.msra.mxu0 %v620
      %658 = vmatprep.subr.mxu0 0.0
      %659 = vmatpush1.msra.mxu0 %v619
      %660 = vmatprep.subr.mxu0 0.0
      %661 = vmatpush1.msra.mxu0 %v618
      %662 = vmatprep.subr.mxu0 0.0
      %663 = vmatpush1.msra.mxu0 %v617
      %664 = vmatprep.subr.mxu0 0.0
      %665 = vmatpush1.msra.mxu0 %v616
      %666 = vmatprep.subr.mxu0 0.0
      %667 = vmatpush1.msra.mxu0 %v615
      %668 = vmatprep.subr.mxu0 0.0
      %669 = vmatpush1.msra.mxu0 %v614
      %670 = vmatprep.subr.mxu0 0.0
      %671 = vmatpush1.msra.mxu0 %v613
      %672 = vmatprep.subr.mxu0 0.0
      %673 = vmatpush2.msra.mxu0 0.0
      %674 = vmatprep.subr.mxu0 0.0
      %675 = vmatpush2.msra.mxu0 0.0
      %676 = vmatprep.subr.mxu0 0.0
      %677 = vmatpush2.msra.mxu0 0.0
      %678 = vmatprep.subr.mxu0 0.0
      %679 = vmatpush2.msra.mxu0 0.0
      %680 = vmatprep.subr.mxu0 0.0
      %681 = vmatpush2.msra.mxu0 0.0
      %682 = vmatprep.subr.mxu0 0.0
      %683 = vmatpush2.msra.mxu0 %v639
      %684 = vmatprep.subr.mxu0 0.0
      %685 = vmatpush2.msra.mxu0 %v638
      %686 = vmatprep.subr.mxu0 0.0
      %687 = vmatpush2.msra.mxu0 %v637
      %688 = vmatprep.subr.mxu0 0.0
      %689 = vmatpush2.msra.mxu0 %v636
      %690 = vmatprep.subr.mxu0 0.0
      %691 = vmatpush2.msra.mxu0 %v635
      %692 = vmatprep.subr.mxu0 0.0
      %693 = vmatpush2.msra.mxu0 %v634
      %694 = vmatprep.subr.mxu0 0.0
      %695 = vmatpush2.msra.mxu0 %v633
      %696 = vmatprep.subr.mxu0 0.0
      %697 = vmatpush2.msra.mxu0 %v632
      %698 = vmatprep.subr.mxu0 0.0
      %699 = vmatpush2.msra.mxu0 %v631
      %700 = vmatprep.subr.mxu0 0.0
      %701 = vmatpush2.msra.mxu0 %v630
      %702 = vmatprep.subr.mxu0 0.0
      %703 = vmatpush2.msra.mxu0 %v629
      %704 = vmatprep.mubr.f32.mxu0 %v265
      %705 = vmatmul.mubr.f32.gmra.mxu0 %v215
      %v706 = vpop.f32.mrf.mxu0
      %v707 = vadd.f32 0.0, %v706
      %v708 = vpop.f32.mrf.mxu0
      %709 = vmatprep.mubr.f32.mxu0 %v268
      %710 = vmatmul.mubr.f32.gmra.mxu0 %v217
      %v711 = vpop.f32.mrf.mxu0
      %v712 = vadd.f32 0.0, %v711
      %v713 = vpop.f32.mrf.mxu0
      %714 = vdwg.mxu0
      %715 = vmatprep.subr.mxu0 0.0
      %716 = vmatpush1.msra.mxu0 %v628
      %717 = vmatprep.subr.mxu0 0.0
      %718 = vmatpush1.msra.mxu0 %v627
      %719 = vmatprep.subr.mxu0 0.0
      %720 = vmatpush1.msra.mxu0 %v626
      %721 = vmatprep.subr.mxu0 0.0
      %722 = vmatpush1.msra.mxu0 %v625
      %723 = vmatprep.subr.mxu0 0.0
      %724 = vmatpush1.msra.mxu0 %v624
      %725 = vmatprep.subr.mxu0 0.0
      %726 = vmatpush1.msra.mxu0 %v623
      %727 = vmatprep.subr.mxu0 0.0
      %728 = vmatpush1.msra.mxu0 %v622
      %729 = vmatprep.subr.mxu0 0.0
      %730 = vmatpush1.msra.mxu0 %v621
      %731 = vmatprep.subr.mxu0 0.0
      %732 = vmatpush1.msra.mxu0 %v620
      %733 = vmatprep.subr.mxu0 0.0
      %734 = vmatpush1.msra.mxu0 %v619
      %735 = vmatprep.subr.mxu0 0.0
      %736 = vmatpush1.msra.mxu0 %v618
      %737 = vmatprep.subr.mxu0 0.0
      %738 = vmatpush1.msra.mxu0 %v617
      %739 = vmatprep.subr.mxu0 0.0
      %740 = vmatpush1.msra.mxu0 %v616
      %741 = vmatprep.subr.mxu0 0.0
      %742 = vmatpush1.msra.mxu0 %v615
      %743 = vmatprep.subr.mxu0 0.0
      %744 = vmatpush1.msra.mxu0 %v614
      %745 = vmatprep.subr.mxu0 0.0
      %746 = vmatpush1.msra.mxu0 %v613
      %747 = vmatprep.subr.mxu0 0.0
      %748 = vmatpush2.msra.mxu0 0.0
      %749 = vmatprep.subr.mxu0 0.0
      %750 = vmatpush2.msra.mxu0 0.0
      %751 = vmatprep.subr.mxu0 0.0
      %752 = vmatpush2.msra.mxu0 0.0
      %753 = vmatprep.subr.mxu0 0.0
      %754 = vmatpush2.msra.mxu0 0.0
      %755 = vmatprep.subr.mxu0 0.0
      %756 = vmatpush2.msra.mxu0 0.0
      %757 = vmatprep.subr.mxu0 0.0
      %758 = vmatpush2.msra.mxu0 %v639
      %759 = vmatprep.subr.mxu0 0.0
      %760 = vmatpush2.msra.mxu0 %v638
      %761 = vmatprep.subr.mxu0 0.0
      %762 = vmatpush2.msra.mxu0 %v637
      %763 = vmatprep.subr.mxu0 0.0
      %764 = vmatpush2.msra.mxu0 %v636
      %765 = vmatprep.subr.mxu0 0.0
      %766 = vmatpush2.msra.mxu0 %v635
      %767 = vmatprep.subr.mxu0 0.0
      %768 = vmatpush2.msra.mxu0 %v634
      %769 = vmatprep.subr.mxu0 0.0
      %770 = vmatpush2.msra.mxu0 %v633
      %771 = vmatprep.subr.mxu0 0.0
      %772 = vmatpush2.msra.mxu0 %v632
      %773 = vmatprep.subr.mxu0 0.0
      %774 = vmatpush2.msra.mxu0 %v631
      %775 = vmatprep.subr.mxu0 0.0
      %776 = vmatpush2.msra.mxu0 %v630
      %777 = vmatprep.subr.mxu0 0.0
      %778 = vmatpush2.msra.mxu0 %v629
      %779 = vmatprep.mubr.f32.mxu0 %v346
      %780 = vmatmul.mubr.f32.gmra.mxu0 %v220
      %v781 = vpop.f32.mrf.mxu0
      %v782 = vadd.f32 0.0, %v781
      %v783 = vpop.f32.mrf.mxu0
      %784 = vmatprep.mubr.f32.mxu0 %v349
      %785 = vmatmul.mubr.f32.gmra.mxu0 %v222
      %v786 = vpop.f32.mrf.mxu0
      %v787 = vadd.f32 0.0, %v786
      %v788 = vpop.f32.mrf.mxu0
      %789 = vdwg.mxu0
      %v790 = vmax.f32 %v707, %v782
      %v791 = vmax.f32 %v712, %v787
      %792 = vmatprep.subr.mxu0 0.0
      %793 = vmatpush1.msra.mxu0 %v628
      %794 = vmatprep.subr.mxu0 0.0
      %795 = vmatpush1.msra.mxu0 %v627
      %796 = vmatprep.subr.mxu0 0.0
      %797 = vmatpush1.msra.mxu0 %v626
      %798 = vmatprep.subr.mxu0 0.0
      %799 = vmatpush1.msra.mxu0 %v625
      %800 = vmatprep.subr.mxu0 0.0
      %801 = vmatpush1.msra.mxu0 %v624
      %802 = vmatprep.subr.mxu0 0.0
      %803 = vmatpush1.msra.mxu0 %v623
      %804 = vmatprep.subr.mxu0 0.0
      %805 = vmatpush1.msra.mxu0 %v622
      %806 = vmatprep.subr.mxu0 0.0
      %807 = vmatpush1.msra.mxu0 %v621
      %808 = vmatprep.subr.mxu0 0.0
      %809 = vmatpush1.msra.mxu0 %v620
      %810 = vmatprep.subr.mxu0 0.0
      %811 = vmatpush1.msra.mxu0 %v619
      %812 = vmatprep.subr.mxu0 0.0
      %813 = vmatpush1.msra.mxu0 %v618
      %814 = vmatprep.subr.mxu0 0.0
      %815 = vmatpush1.msra.mxu0 %v617
      %816 = vmatprep.subr.mxu0 0.0
      %817 = vmatpush1.msra.mxu0 %v616
      %818 = vmatprep.subr.mxu0 0.0
      %819 = vmatpush1.msra.mxu0 %v615
      %820 = vmatprep.subr.mxu0 0.0
      %821 = vmatpush1.msra.mxu0 %v614
      %822 = vmatprep.subr.mxu0 0.0
      %823 = vmatpush1.msra.mxu0 %v613
      %824 = vmatprep.subr.mxu0 0.0
      %825 = vmatpush2.msra.mxu0 0.0
      %826 = vmatprep.subr.mxu0 0.0
      %827 = vmatpush2.msra.mxu0 0.0
      %828 = vmatprep.subr.mxu0 0.0
      %829 = vmatpush2.msra.mxu0 0.0
      %830 = vmatprep.subr.mxu0 0.0
      %831 = vmatpush2.msra.mxu0 0.0
      %832 = vmatprep.subr.mxu0 0.0
      %833 = vmatpush2.msra.mxu0 0.0
      %834 = vmatprep.subr.mxu0 0.0
      %835 = vmatpush2.msra.mxu0 %v639
      %836 = vmatprep.subr.mxu0 0.0
      %837 = vmatpush2.msra.mxu0 %v638
      %838 = vmatprep.subr.mxu0 0.0
      %839 = vmatpush2.msra.mxu0 %v637
      %840 = vmatprep.subr.mxu0 0.0
      %841 = vmatpush2.msra.mxu0 %v636
      %842 = vmatprep.subr.mxu0 0.0
      %843 = vmatpush2.msra.mxu0 %v635
      %844 = vmatprep.subr.mxu0 0.0
      %845 = vmatpush2.msra.mxu0 %v634
      %846 = vmatprep.subr.mxu0 0.0
      %847 = vmatpush2.msra.mxu0 %v633
      %848 = vmatprep.subr.mxu0 0.0
      %849 = vmatpush2.msra.mxu0 %v632
      %850 = vmatprep.subr.mxu0 0.0
      %851 = vmatpush2.msra.mxu0 %v631
      %852 = vmatprep.subr.mxu0 0.0
      %853 = vmatpush2.msra.mxu0 %v630
      %854 = vmatprep.subr.mxu0 0.0
      %855 = vmatpush2.msra.mxu0 %v629
      %856 = vmatprep.mubr.f32.mxu0 %v429
      %857 = vmatmul.mubr.f32.gmra.mxu0 %v225
      %v858 = vpop.f32.mrf.mxu0
      %v859 = vadd.f32 0.0, %v858
      %v860 = vpop.f32.mrf.mxu0
      %861 = vmatprep.mubr.f32.mxu0 %v432
      %862 = vmatmul.mubr.f32.gmra.mxu0 %v227
      %v863 = vpop.f32.mrf.mxu0
      %v864 = vadd.f32 0.0, %v863
      %v865 = vpop.f32.mrf.mxu0
      %866 = vdwg.mxu0
      %v867 = vmax.f32 %v790, %v859
      %v868 = vmax.f32 %v791, %v864
      %869 = vmatprep.subr.mxu0 0.0
      %870 = vmatpush1.msra.mxu0 %v628
      %871 = vmatprep.subr.mxu0 0.0
      %872 = vmatpush1.msra.mxu0 %v627
      %873 = vmatprep.subr.mxu0 0.0
      %874 = vmatpush1.msra.mxu0 %v626
      %875 = vmatprep.subr.mxu0 0.0
      %876 = vmatpush1.msra.mxu0 %v625
      %877 = vmatprep.subr.mxu0 0.0
      %878 = vmatpush1.msra.mxu0 %v624
      %879 = vmatprep.subr.mxu0 0.0
      %880 = vmatpush1.msra.mxu0 %v623
      %881 = vmatprep.subr.mxu0 0.0
      %882 = vmatpush1.msra.mxu0 %v622
      %883 = vmatprep.subr.mxu0 0.0
      %884 = vmatpush1.msra.mxu0 %v621
      %885 = vmatprep.subr.mxu0 0.0
      %886 = vmatpush1.msra.mxu0 %v620
      %887 = vmatprep.subr.mxu0 0.0
      %888 = vmatpush1.msra.mxu0 %v619
      %889 = vmatprep.subr.mxu0 0.0
      %890 = vmatpush1.msra.mxu0 %v618
      %891 = vmatprep.subr.mxu0 0.0
      %892 = vmatpush1.msra.mxu0 %v617
      %893 = vmatprep.subr.mxu0 0.0
      %894 = vmatpush1.msra.mxu0 %v616
      %895 = vmatprep.subr.mxu0 0.0
      %896 = vmatpush1.msra.mxu0 %v615
      %897 = vmatprep.subr.mxu0 0.0
      %898 = vmatpush1.msra.mxu0 %v614
      %899 = vmatprep.subr.mxu0 0.0
      %900 = vmatpush1.msra.mxu0 %v613
      %901 = vmatprep.subr.mxu0 0.0
      %902 = vmatpush2.msra.mxu0 0.0
      %903 = vmatprep.subr.mxu0 0.0
      %904 = vmatpush2.msra.mxu0 0.0
      %905 = vmatprep.subr.mxu0 0.0
      %906 = vmatpush2.msra.mxu0 0.0
      %907 = vmatprep.subr.mxu0 0.0
      %908 = vmatpush2.msra.mxu0 0.0
      %909 = vmatprep.subr.mxu0 0.0
      %910 = vmatpush2.msra.mxu0 0.0
      %911 = vmatprep.subr.mxu0 0.0
      %912 = vmatpush2.msra.mxu0 %v639
      %913 = vmatprep.subr.mxu0 0.0
      %914 = vmatpush2.msra.mxu0 %v638
      %915 = vmatprep.subr.mxu0 0.0
      %916 = vmatpush2.msra.mxu0 %v637
      %917 = vmatprep.subr.mxu0 0.0
      %918 = vmatpush2.msra.mxu0 %v636
      %919 = vmatprep.subr.mxu0 0.0
      %920 = vmatpush2.msra.mxu0 %v635
      %921 = vmatprep.subr.mxu0 0.0
      %922 = vmatpush2.msra.mxu0 %v634
      %923 = vmatprep.subr.mxu0 0.0
      %924 = vmatpush2.msra.mxu0 %v633
      %925 = vmatprep.subr.mxu0 0.0
      %926 = vmatpush2.msra.mxu0 %v632
      %927 = vmatprep.subr.mxu0 0.0
      %928 = vmatpush2.msra.mxu0 %v631
      %929 = vmatprep.subr.mxu0 0.0
      %930 = vmatpush2.msra.mxu0 %v630
      %931 = vmatprep.subr.mxu0 0.0
      %932 = vmatpush2.msra.mxu0 %v629
      %933 = vmatprep.mubr.f32.mxu0 %v512
      %934 = vmatmul.mubr.f32.gmra.mxu0 %v230
      %v935 = vpop.f32.mrf.mxu0
      %v936 = vadd.f32 0.0, %v935
      %v937 = vpop.f32.mrf.mxu0
      %938 = vmatprep.mubr.f32.mxu0 %v515
      %939 = vmatmul.mubr.f32.gmra.mxu0 %v232
      %v940 = vpop.f32.mrf.mxu0
      %v941 = vadd.f32 0.0, %v940
      %v942 = vpop.f32.mrf.mxu0
      %943 = vdwg.mxu0
      %v944 = vmax.f32 %v867, %v936
      %v945 = vmax.f32 %v868, %v941
      %v946 = vadd.f32 %v944, %v597
      %v947 = vadd.f32 %v945, %v602
      %v948 = vmax.f32 %v946, 0.0
      %v949 = vmax.f32 %v947, 0.0
      %s950 = scalar_lea.vmem %s213, 16
      %951 = vst.msk [vmem:[%s950] sm:$0xff] %vm608, %v948
      %952 = vst.msk [vmem:[%s950 + $0x8] sm:$0xf] %vm610, %v949
      %s953 = smul.u32 2, %s19
      %p954 = scmp.lt.s32.totalorder %s18, 1
      %s955 = scalar_select %p954, %s18, 1
      %p956 = scmp.lt.s32.totalorder %s953, 1
      %s957 = scalar_select %p956, %s953, 1
      %s958 = smul.addr %s957, 2
      %s959 = smul.addr %s955, 4
      %s960 = sadd.s32 %s958, %s959
      %s961 = smul.addr %s960, 8
      %s962 = scalar_lea.vmem %s3, %s961
      // Predicated region
      $region33: #{forward.4} parent=31 // pred_check
        %p963 = pneg %p116
      $region34: #{forward.4} parent=31 // pred_check_branch
        %965 = sbr.rel (%p963) target = $region36
      $region35: #{forward.4} parent=31 // pred_region
        %s966 = smul.u32 2, %s19
      $region36: #{forward.4} parent=31 // pred_fallthru
        _
    $region32: #{forward.4} parent=5 // pred_fallthru
      _
    %p967 = scmp.le.s32.totalorder 2, %s9
    // Predicated region
    $region37: #{forward.4} parent=5 // pred_check
      %p968 = pneg %p967
    $region38: #{forward.4} parent=5 // pred_check_branch
      %970 = sbr.rel (%p968) target = $region40
    $region39: #{forward.4} parent=5 // pred_region
      %s971 = ssub.s32 %s9, 2
      // Predicated region
      $region41: #{forward.4} parent=39 // pred_check
        %p972 = pneg %p122
      $region42: #{forward.4} parent=39 // pred_check_branch
        %974 = sbr.rel (%p972) target = $region44
      $region43: #{forward.4} parent=39 // pred_region
        %s975 = smul.u32 2, %s21
        %p976 = scmp.lt.s32.totalorder %s20, 1
        %s977 = scalar_select %p976, %s20, 1
        %p978 = scmp.lt.s32.totalorder %s975, 1
        %s979 = scalar_select %p978, %s975, 1
        %s980 = smul.addr %s979, 2
        %s981 = smul.addr %s977, 4
        %s982 = sadd.s32 %s980, %s981
        %s983 = smul.addr %s982, 8
        %s984 = scalar_lea.vmem %s3, %s983
      $region44: #{forward.4} parent=39 // pred_fallthru
        _
    $region40: #{forward.4} parent=5 // pred_fallthru
      _
  $region6: #{forward.4} parent=0 // loop_footer
    %s13 = sadd.s32 1, %s9
  $region7: #{forward.4} parent=0 // loop_footer_branch
    %8 = sbr.rel target = $region3
  $region8: #{forward.4} parent=0 // loop_exit
    _

// kernel: forward.5
$region0: #{forward.5}
  #allocation0 [shape = 'u32[]', space=smem, size = 0x4, offset = 0x4, fixed_abs, tag = 'smem constant byte address 0x4 - core index']
  #allocation1 [shape = 'u32[144,128]{1,0:T(1,128)}', space=vmem, size = 0x12000, scoped, tag = 'internal scratch']
  #allocation2 [shape = 'f32[1,1]{1,0:T(1,128)S(1)}', space=vmem, size = 0x200, scoped, tag = 'scoped memory for forward.5']
  %s0 = inlined_call_operand.vmem [shape: f32[2,48], index: 0, kind: input, shape index: {}]
  %s1 = inlined_call_operand.vmem [shape: f32[48,120], index: 1, kind: input, shape index: {}]
  %s2 = inlined_call_operand.vmem [shape: f32[1,120], index: 2, kind: input, shape index: {}]
  %s3 = inlined_call_operand.vmem [shape: f32[120,1], index: 3, kind: input, shape index: {}]
  %s4 = inlined_call_operand.<no memory space> [shape: f32[1,1], index: 4, kind: input, shape index: {}]
  %s5 = inlined_call_operand.vmem [shape: f32[2,1], index: 5, kind: output, shape index: {}]
  %s6 = sld [smem:[#allocation0]]
  $region30: #{forward.5} parent=0
    _
  %s8 = ssub.s32 1, %s6
  %s9 = scalar_select 0, %s8, %s6
  %v10 = vstv %s4
  %11 = vst [vmem:[#allocation2] sm:$0x1] %v10
  // Predicated region
  $region2: #{forward.5} parent=0 // pred_check
    _
  $region3: #{forward.5} parent=0 // pred_check_branch
    %13 = sbr.rel (0) target = $region5
  $region4: #{forward.5} parent=0 // pred_region
    _
  $region5: #{forward.5} parent=0 // pred_fallthru
    _
  // Predicated region
  $region6: #{forward.5} parent=0 // pred_check
    _
  $region7: #{forward.5} parent=0 // pred_check_branch
    %15 = sbr.rel (0) target = $region9
  $region8: #{forward.5} parent=0 // pred_region
    _
  $region9: #{forward.5} parent=0 // pred_fallthru
    _
  // Predicated region
  $region10: #{forward.5} parent=0 // pred_check
    _
  $region11: #{forward.5} parent=0 // pred_check_branch
    %17 = sbr.rel (0) target = $region13
  $region12: #{forward.5} parent=0 // pred_region
    _
  $region13: #{forward.5} parent=0 // pred_fallthru
    _
  // Predicated region
  $region14: #{forward.5} parent=0 // pred_check
    _
  $region15: #{forward.5} parent=0 // pred_check_branch
    %19 = sbr.rel (0) target = $region17
  $region16: #{forward.5} parent=0 // pred_region
    _
  $region17: #{forward.5} parent=0 // pred_fallthru
    _
  // Predicated region
  $region18: #{forward.5} parent=0 // pred_check
    _
  $region19: #{forward.5} parent=0 // pred_check_branch
    %21 = sbr.rel (0) target = $region21
  $region20: #{forward.5} parent=0 // pred_region
    _
  $region21: #{forward.5} parent=0 // pred_fallthru
    _
  %v22 = vld [vmem:[%s0] sm:$0x3]
  %v23 = vld [vmem:[%s1] sm:$0xff]
  %v24 = vld [vmem:[%s1 + $0x8] sm:$0xff]
  %v25 = vld [vmem:[%s1 + $0x10] sm:$0xff]
  %v26 = vld [vmem:[%s1 + $0x18] sm:$0xff]
  %v27 = vld [vmem:[%s1 + $0x20] sm:$0xff]
  %v28 = vld [vmem:[%s1 + $0x28] sm:$0xff]
  %v29 = vld [vmem:[%s2] sm:$0x1]
  %v31 = vlaneseq
  %v32 = vshrl.u32 %v31, 7
  %v33 = vsub.s32 0, %v32
  %v34 = vrot.slane %v29, %v33
  %vm36 = vcmask 392192
  %v38 = vsel %vm36, %v22, 0
  %40 = vmatprep.subr.mxu0 0.0
  %41 = vmatpush1.msra.mxu0 0.0
  %42 = vmatprep.subr.mxu0 0.0
  %43 = vmatpush1.msra.mxu0 0.0
  %44 = vmatprep.subr.mxu0 0.0
  %45 = vmatpush1.msra.mxu0 0.0
  %46 = vmatprep.subr.mxu0 0.0
  %47 = vmatpush1.msra.mxu0 0.0
  %48 = vmatprep.subr.mxu0 0.0
  %49 = vmatpush1.msra.mxu0 0.0
  %50 = vmatprep.subr.mxu0 0.0
  %51 = vmatpush1.msra.mxu0 0.0
  %52 = vmatprep.subr.mxu0 0.0
  %53 = vmatpush1.msra.mxu0 0.0
  %54 = vmatprep.subr.mxu0 0.0
  %55 = vmatpush1.msra.mxu0 0.0
  %56 = vmatprep.subr.mxu0 0.0
  %57 = vmatpush1.msra.mxu0 0.0
  %58 = vmatprep.subr.mxu0 0.0
  %59 = vmatpush1.msra.mxu0 0.0
  %60 = vmatprep.subr.mxu0 0.0
  %61 = vmatpush1.msra.mxu0 %v28
  %62 = vmatprep.subr.mxu0 0.0
  %63 = vmatpush1.msra.mxu0 %v27
  %64 = vmatprep.subr.mxu0 0.0
  %65 = vmatpush1.msra.mxu0 %v26
  %66 = vmatprep.subr.mxu0 0.0
  %67 = vmatpush1.msra.mxu0 %v25
  %68 = vmatprep.subr.mxu0 0.0
  %69 = vmatpush1.msra.mxu0 %v24
  %70 = vmatprep.subr.mxu0 0.0
  %71 = vmatpush1.msra.mxu0 %v23
  %72 = vmatprep.subr.mxu0 0.0
  %73 = vmatpush2.msra.mxu0 0.0
  %74 = vmatprep.subr.mxu0 0.0
  %75 = vmatpush2.msra.mxu0 0.0
  %76 = vmatprep.subr.mxu0 0.0
  %77 = vmatpush2.msra.mxu0 0.0
  %78 = vmatprep.subr.mxu0 0.0
  %79 = vmatpush2.msra.mxu0 0.0
  %80 = vmatprep.subr.mxu0 0.0
  %81 = vmatpush2.msra.mxu0 0.0
  %82 = vmatprep.subr.mxu0 0.0
  %83 = vmatpush2.msra.mxu0 0.0
  %84 = vmatprep.subr.mxu0 0.0
  %85 = vmatpush2.msra.mxu0 0.0
  %86 = vmatprep.subr.mxu0 0.0
  %87 = vmatpush2.msra.mxu0 0.0
  %88 = vmatprep.subr.mxu0 0.0
  %89 = vmatpush2.msra.mxu0 0.0
  %90 = vmatprep.subr.mxu0 0.0
  %91 = vmatpush2.msra.mxu0 0.0
  %92 = vmatprep.subr.mxu0 0.0
  %93 = vmatpush2.msra.mxu0 0.0
  %94 = vmatprep.subr.mxu0 0.0
  %95 = vmatpush2.msra.mxu0 0.0
  %96 = vmatprep.subr.mxu0 0.0
  %97 = vmatpush2.msra.mxu0 0.0
  %98 = vmatprep.subr.mxu0 0.0
  %99 = vmatpush2.msra.mxu0 0.0
  %100 = vmatprep.subr.mxu0 0.0
  %101 = vmatpush2.msra.mxu0 0.0
  %102 = vmatprep.subr.mxu0 0.0
  %103 = vmatpush2.msra.mxu0 0.0
  %104 = vmatprep.mubr.f32.mxu0 0.0
  %105 = vmatmul.mubr.f32.gmra.mxu0 %v38
  %v106 = vpop.f32.mrf.mxu0
  %v107 = vadd.f32 %v34, %v106
  %v108 = vpop.f32.mrf.mxu0
  %109 = vdwg.mxu0
  %v110 = vmax.f32 %v107, 0.0
  %v111 = vld [vmem:[%s3] sm:$0xff]
  %v112 = vld [vmem:[%s3 + $0x8] sm:$0xff]
  %v113 = vld [vmem:[%s3 + $0x10] sm:$0xff]
  %v114 = vld [vmem:[%s3 + $0x18] sm:$0xff]
  %v115 = vld [vmem:[%s3 + $0x20] sm:$0xff]
  %v116 = vld [vmem:[%s3 + $0x28] sm:$0xff]
  %v117 = vld [vmem:[%s3 + $0x30] sm:$0xff]
  %v118 = vld [vmem:[%s3 + $0x38] sm:$0xff]
  %v119 = vld [vmem:[%s3 + $0x40] sm:$0xff]
  %v120 = vld [vmem:[%s3 + $0x48] sm:$0xff]
  %v121 = vld [vmem:[%s3 + $0x50] sm:$0xff]
  %v122 = vld [vmem:[%s3 + $0x58] sm:$0xff]
  %v123 = vld [vmem:[%s3 + $0x60] sm:$0xff]
  %v124 = vld [vmem:[%s3 + $0x68] sm:$0xff]
  %v125 = vld [vmem:[%s3 + $0x70] sm:$0xff]
  %v126 = vld [vmem:[#allocation2] sm:$0x1]
  %v128 = vlaneseq
  %v129 = vshrl.u32 %v128, 7
  %v130 = vsub.s32 0, %v129
  %v131 = vrot.slane %v126, %v130
  %vm133 = vcmask 982016
  %v135 = vsel %vm133, %v110, 0
  %137 = vmatprep.subr.mxu0 0.0
  %138 = vmatpush1.msra.mxu0 0.0
  %139 = vmatprep.subr.mxu0 0.0
  %140 = vmatpush1.msra.mxu0 %v125
  %141 = vmatprep.subr.mxu0 0.0
  %142 = vmatpush1.msra.mxu0 %v124
  %143 = vmatprep.subr.mxu0 0.0
  %144 = vmatpush1.msra.mxu0 %v123
  %145 = vmatprep.subr.mxu0 0.0
  %146 = vmatpush1.msra.mxu0 %v122
  %147 = vmatprep.subr.mxu0 0.0
  %148 = vmatpush1.msra.mxu0 %v121
  %149 = vmatprep.subr.mxu0 0.0
  %150 = vmatpush1.msra.mxu0 %v120
  %151 = vmatprep.subr.mxu0 0.0
  %152 = vmatpush1.msra.mxu0 %v119
  %153 = vmatprep.subr.mxu0 0.0
  %154 = vmatpush1.msra.mxu0 %v118
  %155 = vmatprep.subr.mxu0 0.0
  %156 = vmatpush1.msra.mxu0 %v117
  %157 = vmatprep.subr.mxu0 0.0
  %158 = vmatpush1.msra.mxu0 %v116
  %159 = vmatprep.subr.mxu0 0.0
  %160 = vmatpush1.msra.mxu0 %v115
  %161 = vmatprep.subr.mxu0 0.0
  %162 = vmatpush1.msra.mxu0 %v114
  %163 = vmatprep.subr.mxu0 0.0
  %164 = vmatpush1.msra.mxu0 %v113
  %165 = vmatprep.subr.mxu0 0.0
  %166 = vmatpush1.msra.mxu0 %v112
  %167 = vmatprep.subr.mxu0 0.0
  %168 = vmatpush1.msra.mxu0 %v111
  %169 = vmatprep.subr.mxu0 0.0
  %170 = vmatpush2.msra.mxu0 0.0
  %171 = vmatprep.subr.mxu0 0.0
  %172 = vmatpush2.msra.mxu0 0.0
  %173 = vmatprep.subr.mxu0 0.0
  %174 = vmatpush2.msra.mxu0 0.0
  %175 = vmatprep.subr.mxu0 0.0
  %176 = vmatpush2.msra.mxu0 0.0
  %177 = vmatprep.subr.mxu0 0.0
  %178 = vmatpush2.msra.mxu0 0.0
  %179 = vmatprep.subr.mxu0 0.0
  %180 = vmatpush2.msra.mxu0 0.0
  %181 = vmatprep.subr.mxu0 0.0
  %182 = vmatpush2.msra.mxu0 0.0
  %183 = vmatprep.subr.mxu0 0.0
  %184 = vmatpush2.msra.mxu0 0.0
  %185 = vmatprep.subr.mxu0 0.0
  %186 = vmatpush2.msra.mxu0 0.0
  %187 = vmatprep.subr.mxu0 0.0
  %188 = vmatpush2.msra.mxu0 0.0
  %189 = vmatprep.subr.mxu0 0.0
  %190 = vmatpush2.msra.mxu0 0.0
  %191 = vmatprep.subr.mxu0 0.0
  %192 = vmatpush2.msra.mxu0 0.0
  %193 = vmatprep.subr.mxu0 0.0
  %194 = vmatpush2.msra.mxu0 0.0
  %195 = vmatprep.subr.mxu0 0.0
  %196 = vmatpush2.msra.mxu0 0.0
  %197 = vmatprep.subr.mxu0 0.0
  %198 = vmatpush2.msra.mxu0 0.0
  %199 = vmatprep.subr.mxu0 0.0
  %200 = vmatpush2.msra.mxu0 0.0
  %201 = vmatprep.mubr.f32.mxu0 0.0
  %202 = vmatmul.mubr.f32.gmra.mxu0 %v135
  %v203 = vpop.f32.mrf.mxu0
  %v204 = vadd.f32 %v131, %v203
  %v205 = vpop.f32.mrf.mxu0
  %206 = vdwg.mxu0
  %vm207 = vcmask 1024
  %208 = vst.msk [vmem:[%s5] sm:$0x3] %vm207, %v204
  // Predicated region
  $region22: #{forward.5} parent=0 // pred_check
    _
  $region23: #{forward.5} parent=0 // pred_check_branch
    %210 = sbr.rel (0) target = $region25
  $region24: #{forward.5} parent=0 // pred_region
    _
  $region25: #{forward.5} parent=0 // pred_fallthru
    _
  // Predicated region
  $region26: #{forward.5} parent=0 // pred_check
    _
  $region27: #{forward.5} parent=0 // pred_check_branch
    %212 = sbr.rel (0) target = $region29
  $region28: #{forward.5} parent=0 // pred_region
    _
  $region29: #{forward.5} parent=0 // pred_fallthru
    _

</llo_original>
